<compile_context>
chip_gen: v5e
topology: v5e:2x2
jax: 0.10.0
libtpu: 0.0.40
codegen_flags: <defaults>
</compile_context>

<pallas_src>
import numpy as np
import jax
import jax.numpy as jnp
from jax.experimental import pallas as pl
from jax.experimental.pallas import tpu as pltpu


def _cfno_kernel(x_ref, dfwd_ref, dinv_ref, filt_ref, mlpw_ref, mlpb_ref, o_ref):
    bhw = x_ref.shape[0]                 # B * H * W (batch stacked on sublanes)
    x = x_ref[...]                       # (BHW, CP) f32
    dfwd = dfwd_ref[...]                 # (2*BHW, BHW) bf16 = [kron(I_B,Dr); kron(I_B,Di)]

    for k in range(filt_ref.shape[0]):   # 4 CFNO blocks, statically unrolled
        wr = filt_ref[k, 0]              # (BHW, CP) f32, zero-padded past c_in
        wi = filt_ref[k, 1]
        bnb = filt_ref[k, 2]             # BN bias, pre-broadcast over lanes
        dinv = dinv_ref[k]               # (BHW, 2*BHW) bf16, BN scale folded into rows

        # --- GlobalFilter: real(ifft2(fft2(x) * w)), ortho norm, as 2 fused MXU matmuls
        ar_ai = jnp.dot(dfwd, x.astype(jnp.bfloat16),
                        preferred_element_type=jnp.float32)       # (2*BHW, CP)
        ar = ar_ai[:bhw]
        ai = ar_ai[bhw:]
        zr = ar * wr - ai * wi
        zi = ar * wi + ai * wr
        z = jnp.concatenate([zr, zi], axis=0).astype(jnp.bfloat16)  # (2*BHW, CP)
        y = jnp.dot(dinv, z, preferred_element_type=jnp.float32)    # (BHW, CP)

        # --- BatchNorm2d(side), eval: scale already folded into dinv rows; add bias
        y = y + bnb
        # --- LeakyReLU(0.2)
        y = jnp.where(y > 0, y, 0.2 * y)

        # --- Mlp: fc1 -> LeakyReLU(0.2) -> fc2 (Dropout == identity in eval)
        h = jnp.dot(y, mlpw_ref[k, 0], preferred_element_type=jnp.float32) + mlpb_ref[k, 0]
        h = jnp.where(h > 0, h, 0.2 * h)
        x = jnp.dot(h, mlpw_ref[k, 1], preferred_element_type=jnp.float32) + mlpb_ref[k, 1]

    o_ref[...] = x


def _full_spec(arr):
    nd = arr.ndim
    return pl.BlockSpec(arr.shape, lambda i, _nd=nd: (0,) * _nd)


def cfno2d_forward(x_bhwc, packed):
    B, H, W, C = x_bhwc.shape
    HW, BHW = H * W, B * H * W
    cp, c_out = packed["cp"], packed["c_out"]
    assert C == cp, "input channel width must equal the packed lane width"
    x = x_bhwc.reshape(BHW, cp).astype(jnp.float32)

    operands = (x, packed["d_fwd"], packed["d_inv"], packed["filt"],
                packed["mlpw"], packed["mlpb"])
    out = pl.pallas_call(
        _cfno_kernel,
        out_shape=jax.ShapeDtypeStruct((BHW, cp), jnp.float32),
        grid_spec=pltpu.PrefetchScalarGridSpec(
            num_scalar_prefetch=0,
            grid=(1,),                                   # single step: batch folded in-kernel
            in_specs=[_full_spec(a) for a in operands],
            out_specs=pl.BlockSpec((BHW, cp), lambda i: (0, 0)),
        ),
        compiler_params=pltpu.CompilerParams(dimension_semantics=("arbitrary",)),
    )(*operands)
    return out[:, :c_out].reshape(B, H, W, c_out)


def pack_operands(blocks, side, batch):
    """Pack per-block parameters into 5 kernel operands; fold BN scale into the inverse DFT."""
    HW, BHW = side * side, batch * side * side
    cp = blocks[0]["w1"].shape[0]            # max channel width (dims shrink monotonically)
    n = len(blocks)

    # Ortho 2-D DFT as (HW x HW) kron(F, F); block-diagonal over batch.
    idx = np.arange(side)
    f = np.exp(-2j * np.pi * np.outer(idx, idx) / side) / np.sqrt(side)
    d = np.kron(f, f)
    dr, di = d.real.astype(np.float32), d.imag.astype(np.float32)
    eye_b = np.eye(batch, dtype=np.float32)
    dr_b, di_b = np.kron(eye_b, dr), np.kron(eye_b, di)              # (BHW, BHW)
    d_fwd = np.concatenate([dr_b, di_b], axis=0)                     # (2*BHW, BHW)
    d_inv_base = np.concatenate([dr_b, di_b], axis=1)                # (BHW, 2*BHW)

    d_inv_all = np.zeros((n, BHW, 2 * BHW), np.float32)
    filt_all = np.zeros((n, 3, BHW, cp), np.float32)
    mlpw_all = np.zeros((n, 2, cp, cp), np.float32)
    mlpb_all = np.zeros((n, 2, 1, cp), np.float32)

    for k, blk in enumerate(blocks):
        c_in, hid = blk["w1"].shape
        c_out = blk["w2"].shape[1]
        # BatchNorm2d(side) acts on the H axis of the channels-last tensor.
        bn_s = np.tile(np.repeat(np.asarray(blk["bn_scale"]), side), batch)   # (BHW,)
        bn_b = np.tile(np.repeat(np.asarray(blk["bn_bias"]), side), batch)    # (BHW,)
        d_inv_all[k] = bn_s[:, None] * d_inv_base                    # fold BN scale into rows

        cw = np.asarray(blk["cw"])                                   # (side, side, c_in, 2)
        filt_all[k, 0, :, :c_in] = np.tile(cw[..., 0].reshape(HW, c_in), (batch, 1))
        filt_all[k, 1, :, :c_in] = np.tile(cw[..., 1].reshape(HW, c_in), (batch, 1))
        filt_all[k, 2, :, :] = bn_b[:, None]                         # pre-broadcast bias

        mlpw_all[k, 0, :c_in, :hid] = np.asarray(blk["w1"])
        mlpw_all[k, 1, :hid, :c_out] = np.asarray(blk["w2"])
        mlpb_all[k, 0, 0, :hid] = np.asarray(blk["b1"])
        mlpb_all[k, 1, 0, :c_out] = np.asarray(blk["b2"])

    return dict(
        d_fwd=jnp.asarray(d_fwd, jnp.bfloat16),
        d_inv=jnp.asarray(d_inv_all, jnp.bfloat16),
        filt=jnp.asarray(filt_all, jnp.float32),
        mlpw=jnp.asarray(mlpw_all, jnp.float32),
        mlpb=jnp.asarray(mlpb_all, jnp.float32),
        cp=cp, c_out=blocks[-1]["w2"].shape[1],
    )


def init_params(key, side, dim):
    """Deterministic init matching the module's __init__ shapes (PyTorch-like scales)."""
    eps = 1e-5
    dims, hids = [dim], []
    for _ in range(4):
        hids.append(int(dims[-1] * 0.5))
        dims.append(int(dims[-1] * 0.8))

    blocks = []
    for k in range(4):
        c_in, hid, c_out = dims[k], hids[k], dims[k + 1]
        key, k1, k2, k3, k4, k5 = jax.random.split(key, 6)
        # GlobalFilter complex weight: randn(h, w, dim, 2) * 0.02
        cw = 0.02 * jax.random.normal(k1, (side, side, c_in, 2), dtype=jnp.float32)
        # torch Linear default init: U(-1/sqrt(fan_in), 1/sqrt(fan_in))
        b1v = 1.0 / np.sqrt(c_in)
        w1 = jax.random.uniform(k2, (hid, c_in), jnp.float32, -b1v, b1v)
        b1 = jax.random.uniform(k3, (hid,), jnp.float32, -b1v, b1v)
        b2v = 1.0 / np.sqrt(hid)
        w2 = jax.random.uniform(k4, (c_out, hid), jnp.float32, -b2v, b2v)
        b2 = jax.random.uniform(k5, (c_out,), jnp.float32, -b2v, b2v)
        # BatchNorm2d(side) defaults (eval): gamma=1, beta=0, running_mean=0, running_var=1
        gamma = jnp.ones((side,), jnp.float32)
        beta = jnp.zeros((side,), jnp.float32)
        r_mean = jnp.zeros((side,), jnp.float32)
        r_var = jnp.ones((side,), jnp.float32)
        scale = gamma / jnp.sqrt(r_var + eps)
        bias = beta - r_mean * scale
        blocks.append(dict(cw=cw, bn_scale=scale, bn_bias=bias,
                           w1=w1.T, b1=b1, w2=w2.T, b2=b2))
    return blocks


def reference(x, blocks):
    """Pure-JAX eval-mode reference matching the PyTorch forward."""
    for blk in blocks:
        B, H, W, C = x.shape
        xf = jnp.fft.fft2(x, axes=(1, 2), norm="ortho")
        w = blk["cw"][..., 0] + 1j * blk["cw"][..., 1]
        y = jnp.real(jnp.fft.ifft2(xf * w, s=(H, W), axes=(1, 2), norm="ortho"))
        y = y.astype(jnp.float32)
        y = y * blk["bn_scale"][None, :, None, None] + blk["bn_bias"][None, :, None, None]
        y = jnp.where(y > 0, y, 0.2 * y)
        h = y @ blk["w1"] + blk["b1"]
        h = jnp.where(h > 0, h, 0.2 * h)
        x = h @ blk["w2"] + blk["b2"]
    return x


if __name__ == "__main__":
    B, side, dim = 2, 8, 32                       # x: (B, side, side, dim), channels-last
    key = jax.random.PRNGKey(0)
    kx, kp = jax.random.split(key)
    x = jax.random.normal(kx, (B, side, side, dim), dtype=jnp.float32)
    blocks = init_params(kp, side, dim)
    packed = pack_operands(blocks, side, B)

    out = jax.block_until_ready(cfno2d_forward(x, packed))
    ref = jax.block_until_ready(reference(x, blocks))

    assert out.shape == ref.shape == (B, side, side, packed["c_out"]), (out.shape, ref.shape)
    err = float(jnp.max(jnp.abs(out - ref)))
    assert err < 1e-2, f"max abs err {err}"
    print("KERNEL_OK")
</pallas_src>

<mosaic_0001>
module attributes {stable_mosaic.version = 11 : i64} {
  func.func @_cfno_kernel(%arg0: i32, %arg1: memref<128x32xf32, #tpu.memory_space<vmem>>, %arg2: memref<256x128xbf16, #tpu.memory_space<vmem>>, %arg3: memref<4x128x256xbf16, #tpu.memory_space<vmem>>, %arg4: memref<4x3x128x32xf32, #tpu.memory_space<vmem>>, %arg5: memref<4x2x32x32xf32, #tpu.memory_space<vmem>>, %arg6: memref<4x2x1x32xf32, #tpu.memory_space<vmem>>, %arg7: memref<128x32xf32, #tpu.memory_space<vmem>>) attributes {dimension_semantics = [#tpu.dimension_semantics<arbitrary>], iteration_bounds = array<i64: 1>, scalar_prefetch = 0 : i64, scratch_operands = 0 : i64, tpu.core_type = #tpu.core_type<tc>, window_params = [{pipeline_mode = #tpu.pipeline_mode<synchronous>, transform_indices = @transform_0, window_bounds = array<i64: 128, 32>}, {pipeline_mode = #tpu.pipeline_mode<synchronous>, transform_indices = @transform_1, window_bounds = array<i64: 256, 128>}, {pipeline_mode = #tpu.pipeline_mode<synchronous>, transform_indices = @transform_2, window_bounds = array<i64: 4, 128, 256>}, {pipeline_mode = #tpu.pipeline_mode<synchronous>, transform_indices = @transform_3, window_bounds = array<i64: 4, 3, 128, 32>}, {pipeline_mode = #tpu.pipeline_mode<synchronous>, transform_indices = @transform_4, window_bounds = array<i64: 4, 2, 32, 32>}, {pipeline_mode = #tpu.pipeline_mode<synchronous>, transform_indices = @transform_5, window_bounds = array<i64: 4, 2, 1, 32>}, {pipeline_mode = #tpu.pipeline_mode<synchronous>, transform_indices = @transform_6, window_bounds = array<i64: 128, 32>}]} {
    %c0 = arith.constant 0 : index
    %c0_0 = arith.constant 0 : index
    %0 = vector.load %arg1[%c0, %c0_0] : memref<128x32xf32, #tpu.memory_space<vmem>>, vector<128x32xf32>
    %c0_1 = arith.constant 0 : index
    %c0_2 = arith.constant 0 : index
    %1 = vector.load %arg2[%c0_1, %c0_2] : memref<256x128xbf16, #tpu.memory_space<vmem>>, vector<256x128xbf16>
    %c0_3 = arith.constant 0 : index
    %c0_4 = arith.constant 0 : index
    %c0_5 = arith.constant 0 : index
    %c0_6 = arith.constant 0 : index
    %2 = vector.load %arg4[%c0_3, %c0_4, %c0_5, %c0_6] : memref<4x3x128x32xf32, #tpu.memory_space<vmem>>, vector<1x1x128x32xf32>
    %3 = vector.shape_cast %2 : vector<1x1x128x32xf32> to vector<128x32xf32>
    %c0_7 = arith.constant 0 : index
    %c1 = arith.constant 1 : index
    %c0_8 = arith.constant 0 : index
    %c0_9 = arith.constant 0 : index
    %4 = vector.load %arg4[%c0_7, %c1, %c0_8, %c0_9] : memref<4x3x128x32xf32, #tpu.memory_space<vmem>>, vector<1x1x128x32xf32>
    %5 = vector.shape_cast %4 : vector<1x1x128x32xf32> to vector<128x32xf32>
    %c0_10 = arith.constant 0 : index
    %c2 = arith.constant 2 : index
    %c0_11 = arith.constant 0 : index
    %c0_12 = arith.constant 0 : index
    %6 = vector.load %arg4[%c0_10, %c2, %c0_11, %c0_12] : memref<4x3x128x32xf32, #tpu.memory_space<vmem>>, vector<1x1x128x32xf32>
    %7 = vector.shape_cast %6 : vector<1x1x128x32xf32> to vector<128x32xf32>
    %c0_13 = arith.constant 0 : index
    %c0_14 = arith.constant 0 : index
    %c0_15 = arith.constant 0 : index
    %8 = vector.load %arg3[%c0_13, %c0_14, %c0_15] : memref<4x128x256xbf16, #tpu.memory_space<vmem>>, vector<1x128x256xbf16>
    %9 = vector.shape_cast %8 : vector<1x128x256xbf16> to vector<128x256xbf16>
    %10 = arith.truncf %0 : vector<128x32xf32> to vector<128x32xbf16>
    %cst = arith.constant dense<0.000000e+00> : vector<256x32xf32>
    %11 = tpu.matmul %1, %10, %cst {dimension_numbers = #tpu.dot_dimension_numbers<[1], [0], [0], [1], [0, 0, 1, 1], [], []>} : vector<256x128xbf16>, vector<128x32xbf16>, vector<256x32xf32> -> vector<256x32xf32>
    %12 = vector.extract_strided_slice %11 {offsets = [0, 0], sizes = [128, 32], strides = [1, 1]} : vector<256x32xf32> to vector<128x32xf32>
    %13 = vector.extract_strided_slice %11 {offsets = [128, 0], sizes = [128, 32], strides = [1, 1]} : vector<256x32xf32> to vector<128x32xf32>
    %14 = arith.mulf %12, %3 : vector<128x32xf32>
    %15 = arith.mulf %13, %5 : vector<128x32xf32>
    %16 = arith.subf %14, %15 : vector<128x32xf32>
    %17 = arith.mulf %12, %5 : vector<128x32xf32>
    %18 = arith.mulf %13, %3 : vector<128x32xf32>
    %19 = arith.addf %17, %18 : vector<128x32xf32>
    %20 = tpu.concatenate %16, %19 in 0 : vector<128x32xf32>, vector<128x32xf32> -> vector<256x32xf32>
    %21 = arith.truncf %20 : vector<256x32xf32> to vector<256x32xbf16>
    %cst_16 = arith.constant dense<0.000000e+00> : vector<128x32xf32>
    %22 = tpu.matmul %9, %21, %cst_16 {dimension_numbers = #tpu.dot_dimension_numbers<[1], [0], [0], [1], [0, 0, 1, 1], [], []>} : vector<128x256xbf16>, vector<256x32xbf16>, vector<128x32xf32> -> vector<128x32xf32>
    %23 = arith.addf %22, %7 : vector<128x32xf32>
    %cst_17 = arith.constant 0.000000e+00 : f32
    %24 = vector.broadcast %cst_17 : f32 to vector<128x32xf32>
    %25 = arith.cmpf ogt, %23, %24 : vector<128x32xf32>
    %cst_18 = arith.constant 2.000000e-01 : f32
    %26 = vector.broadcast %cst_18 : f32 to vector<128x32xf32>
    %27 = arith.mulf %26, %23 : vector<128x32xf32>
    %28 = arith.select %25, %23, %27 : vector<128x32xi1>, vector<128x32xf32>
    %c0_19 = arith.constant 0 : index
    %c0_20 = arith.constant 0 : index
    %c0_21 = arith.constant 0 : index
    %c0_22 = arith.constant 0 : index
    %29 = vector.load %arg5[%c0_19, %c0_20, %c0_21, %c0_22] : memref<4x2x32x32xf32, #tpu.memory_space<vmem>>, vector<1x1x32x32xf32>
    %30 = vector.shape_cast %29 : vector<1x1x32x32xf32> to vector<32x32xf32>
    %cst_23 = arith.constant dense<0.000000e+00> : vector<128x32xf32>
    %31 = tpu.matmul %28, %30, %cst_23 {dimension_numbers = #tpu.dot_dimension_numbers<[1], [0], [0], [1], [0, 0, 1, 1], [], []>} : vector<128x32xf32>, vector<32x32xf32>, vector<128x32xf32> -> vector<128x32xf32>
    %c0_24 = arith.constant 0 : index
    %c0_25 = arith.constant 0 : index
    %c0_26 = arith.constant 0 : index
    %c0_27 = arith.constant 0 : index
    %32 = vector.load %arg6[%c0_24, %c0_25, %c0_26, %c0_27] : memref<4x2x1x32xf32, #tpu.memory_space<vmem>>, vector<1x1x1x32xf32>
    %33 = vector.shape_cast %32 : vector<1x1x1x32xf32> to vector<1x32xf32>
    %34 = vector.broadcast %33 : vector<1x32xf32> to vector<128x32xf32>
    %35 = arith.addf %31, %34 : vector<128x32xf32>
    %cst_28 = arith.constant 0.000000e+00 : f32
    %36 = vector.broadcast %cst_28 : f32 to vector<128x32xf32>
    %37 = arith.cmpf ogt, %35, %36 : vector<128x32xf32>
    %cst_29 = arith.constant 2.000000e-01 : f32
    %38 = vector.broadcast %cst_29 : f32 to vector<128x32xf32>
    %39 = arith.mulf %38, %35 : vector<128x32xf32>
    %40 = arith.select %37, %35, %39 : vector<128x32xi1>, vector<128x32xf32>
    %c0_30 = arith.constant 0 : index
    %c1_31 = arith.constant 1 : index
    %c0_32 = arith.constant 0 : index
    %c0_33 = arith.constant 0 : index
    %41 = vector.load %arg5[%c0_30, %c1_31, %c0_32, %c0_33] : memref<4x2x32x32xf32, #tpu.memory_space<vmem>>, vector<1x1x32x32xf32>
    %42 = vector.shape_cast %41 : vector<1x1x32x32xf32> to vector<32x32xf32>
    %cst_34 = arith.constant dense<0.000000e+00> : vector<128x32xf32>
    %43 = tpu.matmul %40, %42, %cst_34 {dimension_numbers = #tpu.dot_dimension_numbers<[1], [0], [0], [1], [0, 0, 1, 1], [], []>} : vector<128x32xf32>, vector<32x32xf32>, vector<128x32xf32> -> vector<128x32xf32>
    %c0_35 = arith.constant 0 : index
    %c1_36 = arith.constant 1 : index
    %c0_37 = arith.constant 0 : index
    %c0_38 = arith.constant 0 : index
    %44 = vector.load %arg6[%c0_35, %c1_36, %c0_37, %c0_38] : memref<4x2x1x32xf32, #tpu.memory_space<vmem>>, vector<1x1x1x32xf32>
    %45 = vector.shape_cast %44 : vector<1x1x1x32xf32> to vector<1x32xf32>
    %46 = vector.broadcast %45 : vector<1x32xf32> to vector<128x32xf32>
    %47 = arith.addf %43, %46 : vector<128x32xf32>
    %c1_39 = arith.constant 1 : index
    %c0_40 = arith.constant 0 : index
    %c0_41 = arith.constant 0 : index
    %c0_42 = arith.constant 0 : index
    %48 = vector.load %arg4[%c1_39, %c0_40, %c0_41, %c0_42] : memref<4x3x128x32xf32, #tpu.memory_space<vmem>>, vector<1x1x128x32xf32>
    %49 = vector.shape_cast %48 : vector<1x1x128x32xf32> to vector<128x32xf32>
    %c1_43 = arith.constant 1 : index
    %c1_44 = arith.constant 1 : index
    %c0_45 = arith.constant 0 : index
    %c0_46 = arith.constant 0 : index
    %50 = vector.load %arg4[%c1_43, %c1_44, %c0_45, %c0_46] : memref<4x3x128x32xf32, #tpu.memory_space<vmem>>, vector<1x1x128x32xf32>
    %51 = vector.shape_cast %50 : vector<1x1x128x32xf32> to vector<128x32xf32>
    %c1_47 = arith.constant 1 : index
    %c2_48 = arith.constant 2 : index
    %c0_49 = arith.constant 0 : index
    %c0_50 = arith.constant 0 : index
    %52 = vector.load %arg4[%c1_47, %c2_48, %c0_49, %c0_50] : memref<4x3x128x32xf32, #tpu.memory_space<vmem>>, vector<1x1x128x32xf32>
    %53 = vector.shape_cast %52 : vector<1x1x128x32xf32> to vector<128x32xf32>
    %c1_51 = arith.constant 1 : index
    %c0_52 = arith.constant 0 : index
    %c0_53 = arith.constant 0 : index
    %54 = vector.load %arg3[%c1_51, %c0_52, %c0_53] : memref<4x128x256xbf16, #tpu.memory_space<vmem>>, vector<1x128x256xbf16>
    %55 = vector.shape_cast %54 : vector<1x128x256xbf16> to vector<128x256xbf16>
    %56 = arith.truncf %47 : vector<128x32xf32> to vector<128x32xbf16>
    %cst_54 = arith.constant dense<0.000000e+00> : vector<256x32xf32>
    %57 = tpu.matmul %1, %56, %cst_54 {dimension_numbers = #tpu.dot_dimension_numbers<[1], [0], [0], [1], [0, 0, 1, 1], [], []>} : vector<256x128xbf16>, vector<128x32xbf16>, vector<256x32xf32> -> vector<256x32xf32>
    %58 = vector.extract_strided_slice %57 {offsets = [0, 0], sizes = [128, 32], strides = [1, 1]} : vector<256x32xf32> to vector<128x32xf32>
    %59 = vector.extract_strided_slice %57 {offsets = [128, 0], sizes = [128, 32], strides = [1, 1]} : vector<256x32xf32> to vector<128x32xf32>
    %60 = arith.mulf %58, %49 : vector<128x32xf32>
    %61 = arith.mulf %59, %51 : vector<128x32xf32>
    %62 = arith.subf %60, %61 : vector<128x32xf32>
    %63 = arith.mulf %58, %51 : vector<128x32xf32>
    %64 = arith.mulf %59, %49 : vector<128x32xf32>
    %65 = arith.addf %63, %64 : vector<128x32xf32>
    %66 = tpu.concatenate %62, %65 in 0 : vector<128x32xf32>, vector<128x32xf32> -> vector<256x32xf32>
    %67 = arith.truncf %66 : vector<256x32xf32> to vector<256x32xbf16>
    %cst_55 = arith.constant dense<0.000000e+00> : vector<128x32xf32>
    %68 = tpu.matmul %55, %67, %cst_55 {dimension_numbers = #tpu.dot_dimension_numbers<[1], [0], [0], [1], [0, 0, 1, 1], [], []>} : vector<128x256xbf16>, vector<256x32xbf16>, vector<128x32xf32> -> vector<128x32xf32>
    %69 = arith.addf %68, %53 : vector<128x32xf32>
    %cst_56 = arith.constant 0.000000e+00 : f32
    %70 = vector.broadcast %cst_56 : f32 to vector<128x32xf32>
    %71 = arith.cmpf ogt, %69, %70 : vector<128x32xf32>
    %cst_57 = arith.constant 2.000000e-01 : f32
    %72 = vector.broadcast %cst_57 : f32 to vector<128x32xf32>
    %73 = arith.mulf %72, %69 : vector<128x32xf32>
    %74 = arith.select %71, %69, %73 : vector<128x32xi1>, vector<128x32xf32>
    %c1_58 = arith.constant 1 : index
    %c0_59 = arith.constant 0 : index
    %c0_60 = arith.constant 0 : index
    %c0_61 = arith.constant 0 : index
    %75 = vector.load %arg5[%c1_58, %c0_59, %c0_60, %c0_61] : memref<4x2x32x32xf32, #tpu.memory_space<vmem>>, vector<1x1x32x32xf32>
    %76 = vector.shape_cast %75 : vector<1x1x32x32xf32> to vector<32x32xf32>
    %cst_62 = arith.constant dense<0.000000e+00> : vector<128x32xf32>
    %77 = tpu.matmul %74, %76, %cst_62 {dimension_numbers = #tpu.dot_dimension_numbers<[1], [0], [0], [1], [0, 0, 1, 1], [], []>} : vector<128x32xf32>, vector<32x32xf32>, vector<128x32xf32> -> vector<128x32xf32>
    %c1_63 = arith.constant 1 : index
    %c0_64 = arith.constant 0 : index
    %c0_65 = arith.constant 0 : index
    %c0_66 = arith.constant 0 : index
    %78 = vector.load %arg6[%c1_63, %c0_64, %c0_65, %c0_66] : memref<4x2x1x32xf32, #tpu.memory_space<vmem>>, vector<1x1x1x32xf32>
    %79 = vector.shape_cast %78 : vector<1x1x1x32xf32> to vector<1x32xf32>
    %80 = vector.broadcast %79 : vector<1x32xf32> to vector<128x32xf32>
    %81 = arith.addf %77, %80 : vector<128x32xf32>
    %cst_67 = arith.constant 0.000000e+00 : f32
    %82 = vector.broadcast %cst_67 : f32 to vector<128x32xf32>
    %83 = arith.cmpf ogt, %81, %82 : vector<128x32xf32>
    %cst_68 = arith.constant 2.000000e-01 : f32
    %84 = vector.broadcast %cst_68 : f32 to vector<128x32xf32>
    %85 = arith.mulf %84, %81 : vector<128x32xf32>
    %86 = arith.select %83, %81, %85 : vector<128x32xi1>, vector<128x32xf32>
    %c1_69 = arith.constant 1 : index
    %c1_70 = arith.constant 1 : index
    %c0_71 = arith.constant 0 : index
    %c0_72 = arith.constant 0 : index
    %87 = vector.load %arg5[%c1_69, %c1_70, %c0_71, %c0_72] : memref<4x2x32x32xf32, #tpu.memory_space<vmem>>, vector<1x1x32x32xf32>
    %88 = vector.shape_cast %87 : vector<1x1x32x32xf32> to vector<32x32xf32>
    %cst_73 = arith.constant dense<0.000000e+00> : vector<128x32xf32>
    %89 = tpu.matmul %86, %88, %cst_73 {dimension_numbers = #tpu.dot_dimension_numbers<[1], [0], [0], [1], [0, 0, 1, 1], [], []>} : vector<128x32xf32>, vector<32x32xf32>, vector<128x32xf32> -> vector<128x32xf32>
    %c1_74 = arith.constant 1 : index
    %c1_75 = arith.constant 1 : index
    %c0_76 = arith.constant 0 : index
    %c0_77 = arith.constant 0 : index
    %90 = vector.load %arg6[%c1_74, %c1_75, %c0_76, %c0_77] : memref<4x2x1x32xf32, #tpu.memory_space<vmem>>, vector<1x1x1x32xf32>
    %91 = vector.shape_cast %90 : vector<1x1x1x32xf32> to vector<1x32xf32>
    %92 = vector.broadcast %91 : vector<1x32xf32> to vector<128x32xf32>
    %93 = arith.addf %89, %92 : vector<128x32xf32>
    %c2_78 = arith.constant 2 : index
    %c0_79 = arith.constant 0 : index
    %c0_80 = arith.constant 0 : index
    %c0_81 = arith.constant 0 : index
    %94 = vector.load %arg4[%c2_78, %c0_79, %c0_80, %c0_81] : memref<4x3x128x32xf32, #tpu.memory_space<vmem>>, vector<1x1x128x32xf32>
    %95 = vector.shape_cast %94 : vector<1x1x128x32xf32> to vector<128x32xf32>
    %c2_82 = arith.constant 2 : index
    %c1_83 = arith.constant 1 : index
    %c0_84 = arith.constant 0 : index
    %c0_85 = arith.constant 0 : index
    %96 = vector.load %arg4[%c2_82, %c1_83, %c0_84, %c0_85] : memref<4x3x128x32xf32, #tpu.memory_space<vmem>>, vector<1x1x128x32xf32>
    %97 = vector.shape_cast %96 : vector<1x1x128x32xf32> to vector<128x32xf32>
    %c2_86 = arith.constant 2 : index
    %c2_87 = arith.constant 2 : index
    %c0_88 = arith.constant 0 : index
    %c0_89 = arith.constant 0 : index
    %98 = vector.load %arg4[%c2_86, %c2_87, %c0_88, %c0_89] : memref<4x3x128x32xf32, #tpu.memory_space<vmem>>, vector<1x1x128x32xf32>
    %99 = vector.shape_cast %98 : vector<1x1x128x32xf32> to vector<128x32xf32>
    %c2_90 = arith.constant 2 : index
    %c0_91 = arith.constant 0 : index
    %c0_92 = arith.constant 0 : index
    %100 = vector.load %arg3[%c2_90, %c0_91, %c0_92] : memref<4x128x256xbf16, #tpu.memory_space<vmem>>, vector<1x128x256xbf16>
    %101 = vector.shape_cast %100 : vector<1x128x256xbf16> to vector<128x256xbf16>
    %102 = arith.truncf %93 : vector<128x32xf32> to vector<128x32xbf16>
    %cst_93 = arith.constant dense<0.000000e+00> : vector<256x32xf32>
    %103 = tpu.matmul %1, %102, %cst_93 {dimension_numbers = #tpu.dot_dimension_numbers<[1], [0], [0], [1], [0, 0, 1, 1], [], []>} : vector<256x128xbf16>, vector<128x32xbf16>, vector<256x32xf32> -> vector<256x32xf32>
    %104 = vector.extract_strided_slice %103 {offsets = [0, 0], sizes = [128, 32], strides = [1, 1]} : vector<256x32xf32> to vector<128x32xf32>
    %105 = vector.extract_strided_slice %103 {offsets = [128, 0], sizes = [128, 32], strides = [1, 1]} : vector<256x32xf32> to vector<128x32xf32>
    %106 = arith.mulf %104, %95 : vector<128x32xf32>
    %107 = arith.mulf %105, %97 : vector<128x32xf32>
    %108 = arith.subf %106, %107 : vector<128x32xf32>
    %109 = arith.mulf %104, %97 : vector<128x32xf32>
    %110 = arith.mulf %105, %95 : vector<128x32xf32>
    %111 = arith.addf %109, %110 : vector<128x32xf32>
    %112 = tpu.concatenate %108, %111 in 0 : vector<128x32xf32>, vector<128x32xf32> -> vector<256x32xf32>
    %113 = arith.truncf %112 : vector<256x32xf32> to vector<256x32xbf16>
    %cst_94 = arith.constant dense<0.000000e+00> : vector<128x32xf32>
    %114 = tpu.matmul %101, %113, %cst_94 {dimension_numbers = #tpu.dot_dimension_numbers<[1], [0], [0], [1], [0, 0, 1, 1], [], []>} : vector<128x256xbf16>, vector<256x32xbf16>, vector<128x32xf32> -> vector<128x32xf32>
    %115 = arith.addf %114, %99 : vector<128x32xf32>
    %cst_95 = arith.constant 0.000000e+00 : f32
    %116 = vector.broadcast %cst_95 : f32 to vector<128x32xf32>
    %117 = arith.cmpf ogt, %115, %116 : vector<128x32xf32>
    %cst_96 = arith.constant 2.000000e-01 : f32
    %118 = vector.broadcast %cst_96 : f32 to vector<128x32xf32>
    %119 = arith.mulf %118, %115 : vector<128x32xf32>
    %120 = arith.select %117, %115, %119 : vector<128x32xi1>, vector<128x32xf32>
    %c2_97 = arith.constant 2 : index
    %c0_98 = arith.constant 0 : index
    %c0_99 = arith.constant 0 : index
    %c0_100 = arith.constant 0 : index
    %121 = vector.load %arg5[%c2_97, %c0_98, %c0_99, %c0_100] : memref<4x2x32x32xf32, #tpu.memory_space<vmem>>, vector<1x1x32x32xf32>
    %122 = vector.shape_cast %121 : vector<1x1x32x32xf32> to vector<32x32xf32>
    %cst_101 = arith.constant dense<0.000000e+00> : vector<128x32xf32>
    %123 = tpu.matmul %120, %122, %cst_101 {dimension_numbers = #tpu.dot_dimension_numbers<[1], [0], [0], [1], [0, 0, 1, 1], [], []>} : vector<128x32xf32>, vector<32x32xf32>, vector<128x32xf32> -> vector<128x32xf32>
    %c2_102 = arith.constant 2 : index
    %c0_103 = arith.constant 0 : index
    %c0_104 = arith.constant 0 : index
    %c0_105 = arith.constant 0 : index
    %124 = vector.load %arg6[%c2_102, %c0_103, %c0_104, %c0_105] : memref<4x2x1x32xf32, #tpu.memory_space<vmem>>, vector<1x1x1x32xf32>
    %125 = vector.shape_cast %124 : vector<1x1x1x32xf32> to vector<1x32xf32>
    %126 = vector.broadcast %125 : vector<1x32xf32> to vector<128x32xf32>
    %127 = arith.addf %123, %126 : vector<128x32xf32>
    %cst_106 = arith.constant 0.000000e+00 : f32
    %128 = vector.broadcast %cst_106 : f32 to vector<128x32xf32>
    %129 = arith.cmpf ogt, %127, %128 : vector<128x32xf32>
    %cst_107 = arith.constant 2.000000e-01 : f32
    %130 = vector.broadcast %cst_107 : f32 to vector<128x32xf32>
    %131 = arith.mulf %130, %127 : vector<128x32xf32>
    %132 = arith.select %129, %127, %131 : vector<128x32xi1>, vector<128x32xf32>
    %c2_108 = arith.constant 2 : index
    %c1_109 = arith.constant 1 : index
    %c0_110 = arith.constant 0 : index
    %c0_111 = arith.constant 0 : index
    %133 = vector.load %arg5[%c2_108, %c1_109, %c0_110, %c0_111] : memref<4x2x32x32xf32, #tpu.memory_space<vmem>>, vector<1x1x32x32xf32>
    %134 = vector.shape_cast %133 : vector<1x1x32x32xf32> to vector<32x32xf32>
    %cst_112 = arith.constant dense<0.000000e+00> : vector<128x32xf32>
    %135 = tpu.matmul %132, %134, %cst_112 {dimension_numbers = #tpu.dot_dimension_numbers<[1], [0], [0], [1], [0, 0, 1, 1], [], []>} : vector<128x32xf32>, vector<32x32xf32>, vector<128x32xf32> -> vector<128x32xf32>
    %c2_113 = arith.constant 2 : index
    %c1_114 = arith.constant 1 : index
    %c0_115 = arith.constant 0 : index
    %c0_116 = arith.constant 0 : index
    %136 = vector.load %arg6[%c2_113, %c1_114, %c0_115, %c0_116] : memref<4x2x1x32xf32, #tpu.memory_space<vmem>>, vector<1x1x1x32xf32>
    %137 = vector.shape_cast %136 : vector<1x1x1x32xf32> to vector<1x32xf32>
    %138 = vector.broadcast %137 : vector<1x32xf32> to vector<128x32xf32>
    %139 = arith.addf %135, %138 : vector<128x32xf32>
    %c3 = arith.constant 3 : index
    %c0_117 = arith.constant 0 : index
    %c0_118 = arith.constant 0 : index
    %c0_119 = arith.constant 0 : index
    %140 = vector.load %arg4[%c3, %c0_117, %c0_118, %c0_119] : memref<4x3x128x32xf32, #tpu.memory_space<vmem>>, vector<1x1x128x32xf32>
    %141 = vector.shape_cast %140 : vector<1x1x128x32xf32> to vector<128x32xf32>
    %c3_120 = arith.constant 3 : index
    %c1_121 = arith.constant 1 : index
    %c0_122 = arith.constant 0 : index
    %c0_123 = arith.constant 0 : index
    %142 = vector.load %arg4[%c3_120, %c1_121, %c0_122, %c0_123] : memref<4x3x128x32xf32, #tpu.memory_space<vmem>>, vector<1x1x128x32xf32>
    %143 = vector.shape_cast %142 : vector<1x1x128x32xf32> to vector<128x32xf32>
    %c3_124 = arith.constant 3 : index
    %c2_125 = arith.constant 2 : index
    %c0_126 = arith.constant 0 : index
    %c0_127 = arith.constant 0 : index
    %144 = vector.load %arg4[%c3_124, %c2_125, %c0_126, %c0_127] : memref<4x3x128x32xf32, #tpu.memory_space<vmem>>, vector<1x1x128x32xf32>
    %145 = vector.shape_cast %144 : vector<1x1x128x32xf32> to vector<128x32xf32>
    %c3_128 = arith.constant 3 : index
    %c0_129 = arith.constant 0 : index
    %c0_130 = arith.constant 0 : index
    %146 = vector.load %arg3[%c3_128, %c0_129, %c0_130] : memref<4x128x256xbf16, #tpu.memory_space<vmem>>, vector<1x128x256xbf16>
    %147 = vector.shape_cast %146 : vector<1x128x256xbf16> to vector<128x256xbf16>
    %148 = arith.truncf %139 : vector<128x32xf32> to vector<128x32xbf16>
    %cst_131 = arith.constant dense<0.000000e+00> : vector<256x32xf32>
    %149 = tpu.matmul %1, %148, %cst_131 {dimension_numbers = #tpu.dot_dimension_numbers<[1], [0], [0], [1], [0, 0, 1, 1], [], []>} : vector<256x128xbf16>, vector<128x32xbf16>, vector<256x32xf32> -> vector<256x32xf32>
    %150 = vector.extract_strided_slice %149 {offsets = [0, 0], sizes = [128, 32], strides = [1, 1]} : vector<256x32xf32> to vector<128x32xf32>
    %151 = vector.extract_strided_slice %149 {offsets = [128, 0], sizes = [128, 32], strides = [1, 1]} : vector<256x32xf32> to vector<128x32xf32>
    %152 = arith.mulf %150, %141 : vector<128x32xf32>
    %153 = arith.mulf %151, %143 : vector<128x32xf32>
    %154 = arith.subf %152, %153 : vector<128x32xf32>
    %155 = arith.mulf %150, %143 : vector<128x32xf32>
    %156 = arith.mulf %151, %141 : vector<128x32xf32>
    %157 = arith.addf %155, %156 : vector<128x32xf32>
    %158 = tpu.concatenate %154, %157 in 0 : vector<128x32xf32>, vector<128x32xf32> -> vector<256x32xf32>
    %159 = arith.truncf %158 : vector<256x32xf32> to vector<256x32xbf16>
    %cst_132 = arith.constant dense<0.000000e+00> : vector<128x32xf32>
    %160 = tpu.matmul %147, %159, %cst_132 {dimension_numbers = #tpu.dot_dimension_numbers<[1], [0], [0], [1], [0, 0, 1, 1], [], []>} : vector<128x256xbf16>, vector<256x32xbf16>, vector<128x32xf32> -> vector<128x32xf32>
    %161 = arith.addf %160, %145 : vector<128x32xf32>
    %cst_133 = arith.constant 0.000000e+00 : f32
    %162 = vector.broadcast %cst_133 : f32 to vector<128x32xf32>
    %163 = arith.cmpf ogt, %161, %162 : vector<128x32xf32>
    %cst_134 = arith.constant 2.000000e-01 : f32
    %164 = vector.broadcast %cst_134 : f32 to vector<128x32xf32>
    %165 = arith.mulf %164, %161 : vector<128x32xf32>
    %166 = arith.select %163, %161, %165 : vector<128x32xi1>, vector<128x32xf32>
    %c3_135 = arith.constant 3 : index
    %c0_136 = arith.constant 0 : index
    %c0_137 = arith.constant 0 : index
    %c0_138 = arith.constant 0 : index
    %167 = vector.load %arg5[%c3_135, %c0_136, %c0_137, %c0_138] : memref<4x2x32x32xf32, #tpu.memory_space<vmem>>, vector<1x1x32x32xf32>
    %168 = vector.shape_cast %167 : vector<1x1x32x32xf32> to vector<32x32xf32>
    %cst_139 = arith.constant dense<0.000000e+00> : vector<128x32xf32>
    %169 = tpu.matmul %166, %168, %cst_139 {dimension_numbers = #tpu.dot_dimension_numbers<[1], [0], [0], [1], [0, 0, 1, 1], [], []>} : vector<128x32xf32>, vector<32x32xf32>, vector<128x32xf32> -> vector<128x32xf32>
    %c3_140 = arith.constant 3 : index
    %c0_141 = arith.constant 0 : index
    %c0_142 = arith.constant 0 : index
    %c0_143 = arith.constant 0 : index
    %170 = vector.load %arg6[%c3_140, %c0_141, %c0_142, %c0_143] : memref<4x2x1x32xf32, #tpu.memory_space<vmem>>, vector<1x1x1x32xf32>
    %171 = vector.shape_cast %170 : vector<1x1x1x32xf32> to vector<1x32xf32>
    %172 = vector.broadcast %171 : vector<1x32xf32> to vector<128x32xf32>
    %173 = arith.addf %169, %172 : vector<128x32xf32>
    %cst_144 = arith.constant 0.000000e+00 : f32
    %174 = vector.broadcast %cst_144 : f32 to vector<128x32xf32>
    %175 = arith.cmpf ogt, %173, %174 : vector<128x32xf32>
    %cst_145 = arith.constant 2.000000e-01 : f32
    %176 = vector.broadcast %cst_145 : f32 to vector<128x32xf32>
    %177 = arith.mulf %176, %173 : vector<128x32xf32>
    %178 = arith.select %175, %173, %177 : vector<128x32xi1>, vector<128x32xf32>
    %c3_146 = arith.constant 3 : index
    %c1_147 = arith.constant 1 : index
    %c0_148 = arith.constant 0 : index
    %c0_149 = arith.constant 0 : index
    %179 = vector.load %arg5[%c3_146, %c1_147, %c0_148, %c0_149] : memref<4x2x32x32xf32, #tpu.memory_space<vmem>>, vector<1x1x32x32xf32>
    %180 = vector.shape_cast %179 : vector<1x1x32x32xf32> to vector<32x32xf32>
    %cst_150 = arith.constant dense<0.000000e+00> : vector<128x32xf32>
    %181 = tpu.matmul %178, %180, %cst_150 {dimension_numbers = #tpu.dot_dimension_numbers<[1], [0], [0], [1], [0, 0, 1, 1], [], []>} : vector<128x32xf32>, vector<32x32xf32>, vector<128x32xf32> -> vector<128x32xf32>
    %c3_151 = arith.constant 3 : index
    %c1_152 = arith.constant 1 : index
    %c0_153 = arith.constant 0 : index
    %c0_154 = arith.constant 0 : index
    %182 = vector.load %arg6[%c3_151, %c1_152, %c0_153, %c0_154] : memref<4x2x1x32xf32, #tpu.memory_space<vmem>>, vector<1x1x1x32xf32>
    %183 = vector.shape_cast %182 : vector<1x1x1x32xf32> to vector<1x32xf32>
    %184 = vector.broadcast %183 : vector<1x32xf32> to vector<128x32xf32>
    %185 = arith.addf %181, %184 : vector<128x32xf32>
    %c0_155 = arith.constant 0 : index
    %c0_156 = arith.constant 0 : index
    %186 = vector.load %arg7[%c0_155, %c0_156] : memref<128x32xf32, #tpu.memory_space<vmem>>, vector<128x32xf32>
    tpu.vector_store %arg7[%c0_155, %c0_156], %185 {strides = array<i32>} : memref<128x32xf32, #tpu.memory_space<vmem>>, vector<128x32xf32>,
    return
  }
  func.func @transform_0(%arg0: i32) -> (i32, i32) {
    %c0_i32 = arith.constant 0 : i32
    %c0_i32_0 = arith.constant 0 : i32
    %c0_i32_1 = arith.constant 0 : i32
    return %c0_i32, %c0_i32_0 : i32, i32
  }
  func.func @transform_1(%arg0: i32) -> (i32, i32) {
    %c0_i32 = arith.constant 0 : i32
    %c0_i32_0 = arith.constant 0 : i32
    %c0_i32_1 = arith.constant 0 : i32
    return %c0_i32, %c0_i32_0 : i32, i32
  }
  func.func @transform_2(%arg0: i32) -> (i32, i32, i32) {
    %c0_i32 = arith.constant 0 : i32
    %c0_i32_0 = arith.constant 0 : i32
    %c0_i32_1 = arith.constant 0 : i32
    %c0_i32_2 = arith.constant 0 : i32
    return %c0_i32, %c0_i32_0, %c0_i32_1 : i32, i32, i32
  }
  func.func @transform_3(%arg0: i32) -> (i32, i32, i32, i32) {
    %c0_i32 = arith.constant 0 : i32
    %c0_i32_0 = arith.constant 0 : i32
    %c0_i32_1 = arith.constant 0 : i32
    %c0_i32_2 = arith.constant 0 : i32
    %c0_i32_3 = arith.constant 0 : i32
    return %c0_i32, %c0_i32_0, %c0_i32_1, %c0_i32_2 : i32, i32, i32, i32
  }
  func.func @transform_4(%arg0: i32) -> (i32, i32, i32, i32) {
    %c0_i32 = arith.constant 0 : i32
    %c0_i32_0 = arith.constant 0 : i32
    %c0_i32_1 = arith.constant 0 : i32
    %c0_i32_2 = arith.constant 0 : i32
    %c0_i32_3 = arith.constant 0 : i32
    return %c0_i32, %c0_i32_0, %c0_i32_1, %c0_i32_2 : i32, i32, i32, i32
  }
  func.func @transform_5(%arg0: i32) -> (i32, i32, i32, i32) {
    %c0_i32 = arith.constant 0 : i32
    %c0_i32_0 = arith.constant 0 : i32
    %c0_i32_1 = arith.constant 0 : i32
    %c0_i32_2 = arith.constant 0 : i32
    %c0_i32_3 = arith.constant 0 : i32
    return %c0_i32, %c0_i32_0, %c0_i32_1, %c0_i32_2 : i32, i32, i32, i32
  }
  func.func @transform_6(%arg0: i32) -> (i32, i32) {
    %c0_i32 = arith.constant 0 : i32
    %c0_i32_0 = arith.constant 0 : i32
    %c0_i32_1 = arith.constant 0 : i32
    return %c0_i32, %c0_i32_0 : i32, i32
  }
}

</mosaic_0001>

<llo_original>
// kernel: tpu_custom_call.1
$region0: #{tpu_custom_call.1}
  #allocation0 [shape = 'u32[]', space=smem, size = 0x4, offset = 0x4, fixed_abs, tag = 'smem constant byte address 0x4 - core index']
  #allocation1 [shape = 'u32[72,128]{1,0:T(1,128)}', space=vmem, size = 0x9000, scoped, tag = 'internal scratch']
  %s0 = inlined_call_operand.vmem [shape: f32[128,32], index: 0, kind: input, shape index: {}]
  %s1 = inlined_call_operand.vmem [shape: bf16[256,128], index: 1, kind: input, shape index: {}]
  %s2 = inlined_call_operand.vmem [shape: bf16[4,128,256], index: 2, kind: input, shape index: {}]
  %s3 = inlined_call_operand.vmem [shape: f32[4,3,128,32], index: 3, kind: input, shape index: {}]
  %s4 = inlined_call_operand.vmem [shape: f32[4,2,32,32], index: 4, kind: input, shape index: {}]
  %s5 = inlined_call_operand.vmem [shape: f32[4,2,1,32], index: 5, kind: input, shape index: {}]
  %s6 = inlined_call_operand.vmem [shape: f32[128,32], index: 6, kind: output, shape index: {}]
  %s7 = sld [smem:[#allocation0]]
  $region34: #{tpu_custom_call.1} parent=0
    _
  %s9 = ssub.s32 1, %s7
  %s10 = scalar_select 0, %s9, %s7
  // Predicated region
  $region2: #{tpu_custom_call.1} parent=0 // pred_check
    _
  $region3: #{tpu_custom_call.1} parent=0 // pred_check_branch
    %12 = sbr.rel (0) target = $region5
  $region4: #{tpu_custom_call.1} parent=0 // pred_region
    _
  $region5: #{tpu_custom_call.1} parent=0 // pred_fallthru
    _
  // Predicated region
  $region6: #{tpu_custom_call.1} parent=0 // pred_check
    _
  $region7: #{tpu_custom_call.1} parent=0 // pred_check_branch
    %14 = sbr.rel (0) target = $region9
  $region8: #{tpu_custom_call.1} parent=0 // pred_region
    _
  $region9: #{tpu_custom_call.1} parent=0 // pred_fallthru
    _
  // Predicated region
  $region10: #{tpu_custom_call.1} parent=0 // pred_check
    _
  $region11: #{tpu_custom_call.1} parent=0 // pred_check_branch
    %16 = sbr.rel (0) target = $region13
  $region12: #{tpu_custom_call.1} parent=0 // pred_region
    _
  $region13: #{tpu_custom_call.1} parent=0 // pred_fallthru
    _
  // Predicated region
  $region14: #{tpu_custom_call.1} parent=0 // pred_check
    _
  $region15: #{tpu_custom_call.1} parent=0 // pred_check_branch
    %18 = sbr.rel (0) target = $region17
  $region16: #{tpu_custom_call.1} parent=0 // pred_region
    _
  $region17: #{tpu_custom_call.1} parent=0 // pred_fallthru
    _
  // Predicated region
  $region18: #{tpu_custom_call.1} parent=0 // pred_check
    _
  $region19: #{tpu_custom_call.1} parent=0 // pred_check_branch
    %20 = sbr.rel (0) target = $region21
  $region20: #{tpu_custom_call.1} parent=0 // pred_region
    _
  $region21: #{tpu_custom_call.1} parent=0 // pred_fallthru
    _
  // Predicated region
  $region22: #{tpu_custom_call.1} parent=0 // pred_check
    _
  $region23: #{tpu_custom_call.1} parent=0 // pred_check_branch
    %22 = sbr.rel (0) target = $region25
  $region24: #{tpu_custom_call.1} parent=0 // pred_region
    _
  $region25: #{tpu_custom_call.1} parent=0 // pred_fallthru
    _
  %v23 = vld [vmem:[%s0] sm:$0xff]
  %v24 = vld [vmem:[%s0 + $0x8] sm:$0xff]
  %v25 = vld [vmem:[%s0 + $0x10] sm:$0xff]
  %v26 = vld [vmem:[%s0 + $0x18] sm:$0xff]
  %v27 = vld [vmem:[%s0 + $0x20] sm:$0xff]
  %v28 = vld [vmem:[%s0 + $0x28] sm:$0xff]
  %v29 = vld [vmem:[%s0 + $0x30] sm:$0xff]
  %v30 = vld [vmem:[%s0 + $0x38] sm:$0xff]
  %v31 = vld [vmem:[%s0 + $0x40] sm:$0xff]
  %v32 = vld [vmem:[%s0 + $0x48] sm:$0xff]
  %v33 = vld [vmem:[%s0 + $0x50] sm:$0xff]
  %v34 = vld [vmem:[%s0 + $0x58] sm:$0xff]
  %v35 = vld [vmem:[%s0 + $0x60] sm:$0xff]
  %v36 = vld [vmem:[%s0 + $0x68] sm:$0xff]
  %v37 = vld [vmem:[%s0 + $0x70] sm:$0xff]
  %v38 = vld [vmem:[%s0 + $0x78] sm:$0xff]
  %v39 = vld [vmem:[%s1] sm:$0xf]
  %v40 = vld [vmem:[%s1 + $0x4] sm:$0xf]
  %v41 = vld [vmem:[%s1 + $0x8] sm:$0xf]
  %v42 = vld [vmem:[%s1 + $0xc] sm:$0xf]
  %v43 = vld [vmem:[%s1 + $0x10] sm:$0xf]
  %v44 = vld [vmem:[%s1 + $0x14] sm:$0xf]
  %v45 = vld [vmem:[%s1 + $0x18] sm:$0xf]
  %v46 = vld [vmem:[%s1 + $0x1c] sm:$0xf]
  %v47 = vld [vmem:[%s1 + $0x20] sm:$0xf]
  %v48 = vld [vmem:[%s1 + $0x24] sm:$0xf]
  %v49 = vld [vmem:[%s1 + $0x28] sm:$0xf]
  %v50 = vld [vmem:[%s1 + $0x2c] sm:$0xf]
  %v51 = vld [vmem:[%s1 + $0x30] sm:$0xf]
  %v52 = vld [vmem:[%s1 + $0x34] sm:$0xf]
  %v53 = vld [vmem:[%s1 + $0x38] sm:$0xf]
  %v54 = vld [vmem:[%s1 + $0x3c] sm:$0xf]
  %v55 = vld [vmem:[%s1 + $0x40] sm:$0xf]
  %v56 = vld [vmem:[%s1 + $0x44] sm:$0xf]
  %v57 = vld [vmem:[%s1 + $0x48] sm:$0xf]
  %v58 = vld [vmem:[%s1 + $0x4c] sm:$0xf]
  %v59 = vld [vmem:[%s1 + $0x50] sm:$0xf]
  %v60 = vld [vmem:[%s1 + $0x54] sm:$0xf]
  %v61 = vld [vmem:[%s1 + $0x58] sm:$0xf]
  %v62 = vld [vmem:[%s1 + $0x5c] sm:$0xf]
  %v63 = vld [vmem:[%s1 + $0x60] sm:$0xf]
  %v64 = vld [vmem:[%s1 + $0x64] sm:$0xf]
  %v65 = vld [vmem:[%s1 + $0x68] sm:$0xf]
  %v66 = vld [vmem:[%s1 + $0x6c] sm:$0xf]
  %v67 = vld [vmem:[%s1 + $0x70] sm:$0xf]
  %v68 = vld [vmem:[%s1 + $0x74] sm:$0xf]
  %v69 = vld [vmem:[%s1 + $0x78] sm:$0xf]
  %v70 = vld [vmem:[%s1 + $0x7c] sm:$0xf]
  %v71 = vld [vmem:[%s3] sm:$0xff]
  %v72 = vld [vmem:[%s3 + $0x8] sm:$0xff]
  %v73 = vld [vmem:[%s3 + $0x10] sm:$0xff]
  %v74 = vld [vmem:[%s3 + $0x18] sm:$0xff]
  %v75 = vld [vmem:[%s3 + $0x20] sm:$0xff]
  %v76 = vld [vmem:[%s3 + $0x28] sm:$0xff]
  %v77 = vld [vmem:[%s3 + $0x30] sm:$0xff]
  %v78 = vld [vmem:[%s3 + $0x38] sm:$0xff]
  %v79 = vld [vmem:[%s3 + $0x40] sm:$0xff]
  %v80 = vld [vmem:[%s3 + $0x48] sm:$0xff]
  %v81 = vld [vmem:[%s3 + $0x50] sm:$0xff]
  %v82 = vld [vmem:[%s3 + $0x58] sm:$0xff]
  %v83 = vld [vmem:[%s3 + $0x60] sm:$0xff]
  %v84 = vld [vmem:[%s3 + $0x68] sm:$0xff]
  %v85 = vld [vmem:[%s3 + $0x70] sm:$0xff]
  %v86 = vld [vmem:[%s3 + $0x78] sm:$0xff]
  %s87 = scalar_lea.vmem %s3, 128
  %v88 = vld [vmem:[%s87] sm:$0xff]
  %v89 = vld [vmem:[%s87 + $0x8] sm:$0xff]
  %v90 = vld [vmem:[%s87 + $0x10] sm:$0xff]
  %v91 = vld [vmem:[%s87 + $0x18] sm:$0xff]
  %v92 = vld [vmem:[%s87 + $0x20] sm:$0xff]
  %v93 = vld [vmem:[%s87 + $0x28] sm:$0xff]
  %v94 = vld [vmem:[%s87 + $0x30] sm:$0xff]
  %v95 = vld [vmem:[%s87 + $0x38] sm:$0xff]
  %v96 = vld [vmem:[%s87 + $0x40] sm:$0xff]
  %v97 = vld [vmem:[%s87 + $0x48] sm:$0xff]
  %v98 = vld [vmem:[%s87 + $0x50] sm:$0xff]
  %v99 = vld [vmem:[%s87 + $0x58] sm:$0xff]
  %v100 = vld [vmem:[%s87 + $0x60] sm:$0xff]
  %v101 = vld [vmem:[%s87 + $0x68] sm:$0xff]
  %v102 = vld [vmem:[%s87 + $0x70] sm:$0xff]
  %v103 = vld [vmem:[%s87 + $0x78] sm:$0xff]
  %s104 = scalar_lea.vmem %s3, 256
  %v105 = vld [vmem:[%s104] sm:$0xff]
  %v106 = vld [vmem:[%s104 + $0x8] sm:$0xff]
  %v107 = vld [vmem:[%s104 + $0x10] sm:$0xff]
  %v108 = vld [vmem:[%s104 + $0x18] sm:$0xff]
  %v109 = vld [vmem:[%s104 + $0x20] sm:$0xff]
  %v110 = vld [vmem:[%s104 + $0x28] sm:$0xff]
  %v111 = vld [vmem:[%s104 + $0x30] sm:$0xff]
  %v112 = vld [vmem:[%s104 + $0x38] sm:$0xff]
  %v113 = vld [vmem:[%s104 + $0x40] sm:$0xff]
  %v114 = vld [vmem:[%s104 + $0x48] sm:$0xff]
  %v115 = vld [vmem:[%s104 + $0x50] sm:$0xff]
  %v116 = vld [vmem:[%s104 + $0x58] sm:$0xff]
  %v117 = vld [vmem:[%s104 + $0x60] sm:$0xff]
  %v118 = vld [vmem:[%s104 + $0x68] sm:$0xff]
  %v119 = vld [vmem:[%s104 + $0x70] sm:$0xff]
  %v120 = vld [vmem:[%s104 + $0x78] sm:$0xff]
  %v121 = vld [vmem:[%s2] sm:$0xff]
  %v122 = vld [vmem:[%s2 + $0x8] sm:$0xff]
  %v123 = vld [vmem:[%s2 + $0x10] sm:$0xff]
  %v124 = vld [vmem:[%s2 + $0x18] sm:$0xff]
  %v125 = vld [vmem:[%s2 + $0x20] sm:$0xff]
  %v126 = vld [vmem:[%s2 + $0x28] sm:$0xff]
  %v127 = vld [vmem:[%s2 + $0x30] sm:$0xff]
  %v128 = vld [vmem:[%s2 + $0x38] sm:$0xff]
  %v129 = vld [vmem:[%s2 + $0x40] sm:$0xff]
  %v130 = vld [vmem:[%s2 + $0x48] sm:$0xff]
  %v131 = vld [vmem:[%s2 + $0x50] sm:$0xff]
  %v132 = vld [vmem:[%s2 + $0x58] sm:$0xff]
  %v133 = vld [vmem:[%s2 + $0x60] sm:$0xff]
  %v134 = vld [vmem:[%s2 + $0x68] sm:$0xff]
  %v135 = vld [vmem:[%s2 + $0x70] sm:$0xff]
  %v136 = vld [vmem:[%s2 + $0x78] sm:$0xff]
  %v137 = vpack.c.bf16 %v24, %v23
  %v138 = vpack.c.bf16 %v26, %v25
  %v139 = vpack.c.bf16 %v28, %v27
  %v140 = vpack.c.bf16 %v30, %v29
  %v141 = vpack.c.bf16 %v32, %v31
  %v142 = vpack.c.bf16 %v34, %v33
  %v143 = vpack.c.bf16 %v36, %v35
  %v144 = vpack.c.bf16 %v38, %v37
  %v177 = vunpack.c.l.b16 %v39
  %v178 = vunpack.c.l.b16 %v40
  %v179 = vunpack.c.l.b16 %v41
  %v180 = vunpack.c.l.b16 %v42
  %v181 = vunpack.c.l.b16 %v43
  %v182 = vunpack.c.l.b16 %v44
  %v183 = vunpack.c.l.b16 %v45
  %v184 = vunpack.c.l.b16 %v46
  %v185 = vunpack.c.l.b16 %v47
  %v186 = vunpack.c.l.b16 %v48
  %v187 = vunpack.c.l.b16 %v49
  %v188 = vunpack.c.l.b16 %v50
  %v189 = vunpack.c.l.b16 %v51
  %v190 = vunpack.c.l.b16 %v52
  %v191 = vunpack.c.l.b16 %v53
  %v192 = vunpack.c.l.b16 %v54
  %v193 = vunpack.c.l.b16 %v55
  %v194 = vunpack.c.l.b16 %v56
  %v195 = vunpack.c.l.b16 %v57
  %v196 = vunpack.c.l.b16 %v58
  %v197 = vunpack.c.l.b16 %v59
  %v198 = vunpack.c.l.b16 %v60
  %v199 = vunpack.c.l.b16 %v61
  %v200 = vunpack.c.l.b16 %v62
  %v201 = vunpack.c.l.b16 %v63
  %v202 = vunpack.c.l.b16 %v64
  %v203 = vunpack.c.l.b16 %v65
  %v204 = vunpack.c.l.b16 %v66
  %v205 = vunpack.c.l.b16 %v67
  %v206 = vunpack.c.l.b16 %v68
  %v207 = vunpack.c.l.b16 %v69
  %v208 = vunpack.c.l.b16 %v70
  %v209 = vpack.c.b16 %v178, %v177
  %v210 = vpack.c.b16 %v180, %v179
  %v211 = vpack.c.b16 %v182, %v181
  %v212 = vpack.c.b16 %v184, %v183
  %v213 = vpack.c.b16 %v186, %v185
  %v214 = vpack.c.b16 %v188, %v187
  %v215 = vpack.c.b16 %v190, %v189
  %v216 = vpack.c.b16 %v192, %v191
  %v217 = vpack.c.b16 %v194, %v193
  %v218 = vpack.c.b16 %v196, %v195
  %v219 = vpack.c.b16 %v198, %v197
  %v220 = vpack.c.b16 %v200, %v199
  %v221 = vpack.c.b16 %v202, %v201
  %v222 = vpack.c.b16 %v204, %v203
  %v223 = vpack.c.b16 %v206, %v205
  %v224 = vpack.c.b16 %v208, %v207
  %241 = vmatpush.bf16.msra.mxu0 %v144
  %242 = vmatpush.bf16.msra.mxu0 %v143
  %243 = vmatpush.bf16.msra.mxu0 %v142
  %244 = vmatpush.bf16.msra.mxu0 %v141
  %245 = vmatpush.bf16.msra.mxu0 %v140
  %246 = vmatpush.bf16.msra.mxu0 %v139
  %247 = vmatpush.bf16.msra.mxu0 %v138
  %248 = vmatpush.bf16.msra.mxu0 %v137
  %249 = vmatmul.bf16.gmra.mxu0 %v209
  %v250 = vpop.f32.mrf.mxu0
  %v251 = vadd.f32 0.0, %v250
  %v252 = vpop.f32.mrf.mxu0
  %v253 = vadd.f32 0.0, %v252
  %254 = vmatmul.bf16.gmra.mxu0 %v210
  %v255 = vpop.f32.mrf.mxu0
  %v256 = vadd.f32 0.0, %v255
  %v257 = vpop.f32.mrf.mxu0
  %v258 = vadd.f32 0.0, %v257
  %259 = vmatmul.bf16.gmra.mxu0 %v211
  %v260 = vpop.f32.mrf.mxu0
  %v261 = vadd.f32 0.0, %v260
  %v262 = vpop.f32.mrf.mxu0
  %v263 = vadd.f32 0.0, %v262
  %264 = vmatmul.bf16.gmra.mxu0 %v212
  %v265 = vpop.f32.mrf.mxu0
  %v266 = vadd.f32 0.0, %v265
  %v267 = vpop.f32.mrf.mxu0
  %v268 = vadd.f32 0.0, %v267
  %269 = vmatmul.bf16.gmra.mxu0 %v213
  %v270 = vpop.f32.mrf.mxu0
  %v271 = vadd.f32 0.0, %v270
  %v272 = vpop.f32.mrf.mxu0
  %v273 = vadd.f32 0.0, %v272
  %274 = vmatmul.bf16.gmra.mxu0 %v214
  %v275 = vpop.f32.mrf.mxu0
  %v276 = vadd.f32 0.0, %v275
  %v277 = vpop.f32.mrf.mxu0
  %v278 = vadd.f32 0.0, %v277
  %279 = vmatmul.bf16.gmra.mxu0 %v215
  %v280 = vpop.f32.mrf.mxu0
  %v281 = vadd.f32 0.0, %v280
  %v282 = vpop.f32.mrf.mxu0
  %v283 = vadd.f32 0.0, %v282
  %284 = vmatmul.bf16.gmra.mxu0 %v216
  %v285 = vpop.f32.mrf.mxu0
  %v286 = vadd.f32 0.0, %v285
  %v287 = vpop.f32.mrf.mxu0
  %v288 = vadd.f32 0.0, %v287
  %289 = vmatmul.bf16.gmra.mxu0 %v217
  %v290 = vpop.f32.mrf.mxu0
  %v291 = vadd.f32 0.0, %v290
  %v292 = vpop.f32.mrf.mxu0
  %v293 = vadd.f32 0.0, %v292
  %294 = vmatmul.bf16.gmra.mxu0 %v218
  %v295 = vpop.f32.mrf.mxu0
  %v296 = vadd.f32 0.0, %v295
  %v297 = vpop.f32.mrf.mxu0
  %v298 = vadd.f32 0.0, %v297
  %299 = vmatmul.bf16.gmra.mxu0 %v219
  %v300 = vpop.f32.mrf.mxu0
  %v301 = vadd.f32 0.0, %v300
  %v302 = vpop.f32.mrf.mxu0
  %v303 = vadd.f32 0.0, %v302
  %304 = vmatmul.bf16.gmra.mxu0 %v220
  %v305 = vpop.f32.mrf.mxu0
  %v306 = vadd.f32 0.0, %v305
  %v307 = vpop.f32.mrf.mxu0
  %v308 = vadd.f32 0.0, %v307
  %309 = vmatmul.bf16.gmra.mxu0 %v221
  %v310 = vpop.f32.mrf.mxu0
  %v311 = vadd.f32 0.0, %v310
  %v312 = vpop.f32.mrf.mxu0
  %v313 = vadd.f32 0.0, %v312
  %314 = vmatmul.bf16.gmra.mxu0 %v222
  %v315 = vpop.f32.mrf.mxu0
  %v316 = vadd.f32 0.0, %v315
  %v317 = vpop.f32.mrf.mxu0
  %v318 = vadd.f32 0.0, %v317
  %319 = vmatmul.bf16.gmra.mxu0 %v223
  %v320 = vpop.f32.mrf.mxu0
  %v321 = vadd.f32 0.0, %v320
  %v322 = vpop.f32.mrf.mxu0
  %v323 = vadd.f32 0.0, %v322
  %324 = vmatmul.bf16.gmra.mxu0 %v224
  %v325 = vpop.f32.mrf.mxu0
  %v326 = vadd.f32 0.0, %v325
  %v327 = vpop.f32.mrf.mxu0
  %v328 = vadd.f32 0.0, %v327
  %329 = vdwg.mxu0
  %v330 = vmul.f32 %v251, %v71
  %v331 = vmul.f32 %v253, %v72
  %v332 = vmul.f32 %v256, %v73
  %v333 = vmul.f32 %v258, %v74
  %v334 = vmul.f32 %v261, %v75
  %v335 = vmul.f32 %v263, %v76
  %v336 = vmul.f32 %v266, %v77
  %v337 = vmul.f32 %v268, %v78
  %v338 = vmul.f32 %v271, %v79
  %v339 = vmul.f32 %v273, %v80
  %v340 = vmul.f32 %v276, %v81
  %v341 = vmul.f32 %v278, %v82
  %v342 = vmul.f32 %v281, %v83
  %v343 = vmul.f32 %v283, %v84
  %v344 = vmul.f32 %v286, %v85
  %v345 = vmul.f32 %v288, %v86
  %v346 = vmul.f32 %v291, %v88
  %v347 = vmul.f32 %v293, %v89
  %v348 = vmul.f32 %v296, %v90
  %v349 = vmul.f32 %v298, %v91
  %v350 = vmul.f32 %v301, %v92
  %v351 = vmul.f32 %v303, %v93
  %v352 = vmul.f32 %v306, %v94
  %v353 = vmul.f32 %v308, %v95
  %v354 = vmul.f32 %v311, %v96
  %v355 = vmul.f32 %v313, %v97
  %v356 = vmul.f32 %v316, %v98
  %v357 = vmul.f32 %v318, %v99
  %v358 = vmul.f32 %v321, %v100
  %v359 = vmul.f32 %v323, %v101
  %v360 = vmul.f32 %v326, %v102
  %v361 = vmul.f32 %v328, %v103
  %v362 = vsub.f32 %v330, %v346
  %v363 = vsub.f32 %v331, %v347
  %v364 = vsub.f32 %v332, %v348
  %v365 = vsub.f32 %v333, %v349
  %v366 = vsub.f32 %v334, %v350
  %v367 = vsub.f32 %v335, %v351
  %v368 = vsub.f32 %v336, %v352
  %v369 = vsub.f32 %v337, %v353
  %v370 = vsub.f32 %v338, %v354
  %v371 = vsub.f32 %v339, %v355
  %v372 = vsub.f32 %v340, %v356
  %v373 = vsub.f32 %v341, %v357
  %v374 = vsub.f32 %v342, %v358
  %v375 = vsub.f32 %v343, %v359
  %v376 = vsub.f32 %v344, %v360
  %v377 = vsub.f32 %v345, %v361
  %v378 = vmul.f32 %v251, %v88
  %v379 = vmul.f32 %v253, %v89
  %v380 = vmul.f32 %v256, %v90
  %v381 = vmul.f32 %v258, %v91
  %v382 = vmul.f32 %v261, %v92
  %v383 = vmul.f32 %v263, %v93
  %v384 = vmul.f32 %v266, %v94
  %v385 = vmul.f32 %v268, %v95
  %v386 = vmul.f32 %v271, %v96
  %v387 = vmul.f32 %v273, %v97
  %v388 = vmul.f32 %v276, %v98
  %v389 = vmul.f32 %v278, %v99
  %v390 = vmul.f32 %v281, %v100
  %v391 = vmul.f32 %v283, %v101
  %v392 = vmul.f32 %v286, %v102
  %v393 = vmul.f32 %v288, %v103
  %v394 = vmul.f32 %v291, %v71
  %v395 = vmul.f32 %v293, %v72
  %v396 = vmul.f32 %v296, %v73
  %v397 = vmul.f32 %v298, %v74
  %v398 = vmul.f32 %v301, %v75
  %v399 = vmul.f32 %v303, %v76
  %v400 = vmul.f32 %v306, %v77
  %v401 = vmul.f32 %v308, %v78
  %v402 = vmul.f32 %v311, %v79
  %v403 = vmul.f32 %v313, %v80
  %v404 = vmul.f32 %v316, %v81
  %v405 = vmul.f32 %v318, %v82
  %v406 = vmul.f32 %v321, %v83
  %v407 = vmul.f32 %v323, %v84
  %v408 = vmul.f32 %v326, %v85
  %v409 = vmul.f32 %v328, %v86
  %v410 = vadd.f32 %v378, %v394
  %v411 = vadd.f32 %v379, %v395
  %v412 = vadd.f32 %v380, %v396
  %v413 = vadd.f32 %v381, %v397
  %v414 = vadd.f32 %v382, %v398
  %v415 = vadd.f32 %v383, %v399
  %v416 = vadd.f32 %v384, %v400
  %v417 = vadd.f32 %v385, %v401
  %v418 = vadd.f32 %v386, %v402
  %v419 = vadd.f32 %v387, %v403
  %v420 = vadd.f32 %v388, %v404
  %v421 = vadd.f32 %v389, %v405
  %v422 = vadd.f32 %v390, %v406
  %v423 = vadd.f32 %v391, %v407
  %v424 = vadd.f32 %v392, %v408
  %v425 = vadd.f32 %v393, %v409
  %v426 = vpack.c.bf16 %v363, %v362
  %v427 = vpack.c.bf16 %v365, %v364
  %v428 = vpack.c.bf16 %v367, %v366
  %v429 = vpack.c.bf16 %v369, %v368
  %v430 = vpack.c.bf16 %v371, %v370
  %v431 = vpack.c.bf16 %v373, %v372
  %v432 = vpack.c.bf16 %v375, %v374
  %v433 = vpack.c.bf16 %v377, %v376
  %v434 = vpack.c.bf16 %v411, %v410
  %v435 = vpack.c.bf16 %v413, %v412
  %v436 = vpack.c.bf16 %v415, %v414
  %v437 = vpack.c.bf16 %v417, %v416
  %v438 = vpack.c.bf16 %v419, %v418
  %v439 = vpack.c.bf16 %v421, %v420
  %v440 = vpack.c.bf16 %v423, %v422
  %v441 = vpack.c.bf16 %v425, %v424
  %v458 = vunpack.c.l.b16 %v121
  %v459 = vunpack.c.h.b16 %v121
  %v460 = vunpack.c.l.b16 %v122
  %v461 = vunpack.c.h.b16 %v122
  %v462 = vunpack.c.l.b16 %v123
  %v463 = vunpack.c.h.b16 %v123
  %v464 = vunpack.c.l.b16 %v124
  %v465 = vunpack.c.h.b16 %v124
  %v466 = vunpack.c.l.b16 %v125
  %v467 = vunpack.c.h.b16 %v125
  %v468 = vunpack.c.l.b16 %v126
  %v469 = vunpack.c.h.b16 %v126
  %v470 = vunpack.c.l.b16 %v127
  %v471 = vunpack.c.h.b16 %v127
  %v472 = vunpack.c.l.b16 %v128
  %v473 = vunpack.c.h.b16 %v128
  %v474 = vunpack.c.l.b16 %v129
  %v475 = vunpack.c.h.b16 %v129
  %v476 = vunpack.c.l.b16 %v130
  %v477 = vunpack.c.h.b16 %v130
  %v478 = vunpack.c.l.b16 %v131
  %v479 = vunpack.c.h.b16 %v131
  %v480 = vunpack.c.l.b16 %v132
  %v481 = vunpack.c.h.b16 %v132
  %v482 = vunpack.c.l.b16 %v133
  %v483 = vunpack.c.h.b16 %v133
  %v484 = vunpack.c.l.b16 %v134
  %v485 = vunpack.c.h.b16 %v134
  %v486 = vunpack.c.l.b16 %v135
  %v487 = vunpack.c.h.b16 %v135
  %v488 = vunpack.c.l.b16 %v136
  %v489 = vunpack.c.h.b16 %v136
  %v490 = vpack.c.b16 %v460, %v458
  %v491 = vpack.c.b16 %v461, %v459
  %v492 = vpack.c.b16 %v464, %v462
  %v493 = vpack.c.b16 %v465, %v463
  %v494 = vpack.c.b16 %v468, %v466
  %v495 = vpack.c.b16 %v469, %v467
  %v496 = vpack.c.b16 %v472, %v470
  %v497 = vpack.c.b16 %v473, %v471
  %v498 = vpack.c.b16 %v476, %v474
  %v499 = vpack.c.b16 %v477, %v475
  %v500 = vpack.c.b16 %v480, %v478
  %v501 = vpack.c.b16 %v481, %v479
  %v502 = vpack.c.b16 %v484, %v482
  %v503 = vpack.c.b16 %v485, %v483
  %v504 = vpack.c.b16 %v488, %v486
  %v505 = vpack.c.b16 %v489, %v487
  %522 = vmatpush.bf16.msra.mxu0 %v433
  %523 = vmatpush.bf16.msra.mxu0 %v432
  %524 = vmatpush.bf16.msra.mxu0 %v431
  %525 = vmatpush.bf16.msra.mxu0 %v430
  %526 = vmatpush.bf16.msra.mxu0 %v429
  %527 = vmatpush.bf16.msra.mxu0 %v428
  %528 = vmatpush.bf16.msra.mxu0 %v427
  %529 = vmatpush.bf16.msra.mxu0 %v426
  %530 = vmatmul.bf16.gmra.mxu0 %v490
  %v531 = vpop.f32.mrf.mxu0
  %v532 = vadd.f32 %v105, %v531
  %v533 = vpop.f32.mrf.mxu0
  %v534 = vadd.f32 %v106, %v533
  %535 = vmatmul.bf16.gmra.mxu0 %v492
  %v536 = vpop.f32.mrf.mxu0
  %v537 = vadd.f32 %v107, %v536
  %v538 = vpop.f32.mrf.mxu0
  %v539 = vadd.f32 %v108, %v538
  %540 = vmatmul.bf16.gmra.mxu0 %v494
  %v541 = vpop.f32.mrf.mxu0
  %v542 = vadd.f32 %v109, %v541
  %v543 = vpop.f32.mrf.mxu0
  %v544 = vadd.f32 %v110, %v543
  %545 = vmatmul.bf16.gmra.mxu0 %v496
  %v546 = vpop.f32.mrf.mxu0
  %v547 = vadd.f32 %v111, %v546
  %v548 = vpop.f32.mrf.mxu0
  %v549 = vadd.f32 %v112, %v548
  %550 = vmatmul.bf16.gmra.mxu0 %v498
  %v551 = vpop.f32.mrf.mxu0
  %v552 = vadd.f32 %v113, %v551
  %v553 = vpop.f32.mrf.mxu0
  %v554 = vadd.f32 %v114, %v553
  %555 = vmatmul.bf16.gmra.mxu0 %v500
  %v556 = vpop.f32.mrf.mxu0
  %v557 = vadd.f32 %v115, %v556
  %v558 = vpop.f32.mrf.mxu0
  %v559 = vadd.f32 %v116, %v558
  %560 = vmatmul.bf16.gmra.mxu0 %v502
  %v561 = vpop.f32.mrf.mxu0
  %v562 = vadd.f32 %v117, %v561
  %v563 = vpop.f32.mrf.mxu0
  %v564 = vadd.f32 %v118, %v563
  %565 = vmatmul.bf16.gmra.mxu0 %v504
  %v566 = vpop.f32.mrf.mxu0
  %v567 = vadd.f32 %v119, %v566
  %v568 = vpop.f32.mrf.mxu0
  %v569 = vadd.f32 %v120, %v568
  %570 = vdwg.mxu0
  %571 = vmatpush.bf16.msra.mxu0 %v441
  %572 = vmatpush.bf16.msra.mxu0 %v440
  %573 = vmatpush.bf16.msra.mxu0 %v439
  %574 = vmatpush.bf16.msra.mxu0 %v438
  %575 = vmatpush.bf16.msra.mxu0 %v437
  %576 = vmatpush.bf16.msra.mxu0 %v436
  %577 = vmatpush.bf16.msra.mxu0 %v435
  %578 = vmatpush.bf16.msra.mxu0 %v434
  %579 = vmatmul.bf16.gmra.mxu0 %v491
  %v580 = vpop.f32.mrf.mxu0
  %v581 = vadd.f32 %v532, %v580
  %v582 = vpop.f32.mrf.mxu0
  %v583 = vadd.f32 %v534, %v582
  %584 = vmatmul.bf16.gmra.mxu0 %v493
  %v585 = vpop.f32.mrf.mxu0
  %v586 = vadd.f32 %v537, %v585
  %v587 = vpop.f32.mrf.mxu0
  %v588 = vadd.f32 %v539, %v587
  %589 = vmatmul.bf16.gmra.mxu0 %v495
  %v590 = vpop.f32.mrf.mxu0
  %v591 = vadd.f32 %v542, %v590
  %v592 = vpop.f32.mrf.mxu0
  %v593 = vadd.f32 %v544, %v592
  %594 = vmatmul.bf16.gmra.mxu0 %v497
  %v595 = vpop.f32.mrf.mxu0
  %v596 = vadd.f32 %v547, %v595
  %v597 = vpop.f32.mrf.mxu0
  %v598 = vadd.f32 %v549, %v597
  %599 = vmatmul.bf16.gmra.mxu0 %v499
  %v600 = vpop.f32.mrf.mxu0
  %v601 = vadd.f32 %v552, %v600
  %v602 = vpop.f32.mrf.mxu0
  %v603 = vadd.f32 %v554, %v602
  %604 = vmatmul.bf16.gmra.mxu0 %v501
  %v605 = vpop.f32.mrf.mxu0
  %v606 = vadd.f32 %v557, %v605
  %v607 = vpop.f32.mrf.mxu0
  %v608 = vadd.f32 %v559, %v607
  %609 = vmatmul.bf16.gmra.mxu0 %v503
  %v610 = vpop.f32.mrf.mxu0
  %v611 = vadd.f32 %v562, %v610
  %v612 = vpop.f32.mrf.mxu0
  %v613 = vadd.f32 %v564, %v612
  %614 = vmatmul.bf16.gmra.mxu0 %v505
  %v615 = vpop.f32.mrf.mxu0
  %v616 = vadd.f32 %v567, %v615
  %v617 = vpop.f32.mrf.mxu0
  %v618 = vadd.f32 %v569, %v617
  %619 = vdwg.mxu0
  %vm620 = vcmp.gt.f32.partialorder %v581, 0.0
  %vm621 = vcmp.gt.f32.partialorder %v583, 0.0
  %vm622 = vcmp.gt.f32.partialorder %v586, 0.0
  %vm623 = vcmp.gt.f32.partialorder %v588, 0.0
  %vm624 = vcmp.gt.f32.partialorder %v591, 0.0
  %vm625 = vcmp.gt.f32.partialorder %v593, 0.0
  %vm626 = vcmp.gt.f32.partialorder %v596, 0.0
  %vm627 = vcmp.gt.f32.partialorder %v598, 0.0
  %vm628 = vcmp.gt.f32.partialorder %v601, 0.0
  %vm629 = vcmp.gt.f32.partialorder %v603, 0.0
  %vm630 = vcmp.gt.f32.partialorder %v606, 0.0
  %vm631 = vcmp.gt.f32.partialorder %v608, 0.0
  %vm632 = vcmp.gt.f32.partialorder %v611, 0.0
  %vm633 = vcmp.gt.f32.partialorder %v613, 0.0
  %vm634 = vcmp.gt.f32.partialorder %v616, 0.0
  %vm635 = vcmp.gt.f32.partialorder %v618, 0.0
  %v636 = vmul.f32 %v581, 0.2
  %v637 = vmul.f32 %v583, 0.2
  %v638 = vmul.f32 %v586, 0.2
  %v639 = vmul.f32 %v588, 0.2
  %v640 = vmul.f32 %v591, 0.2
  %v641 = vmul.f32 %v593, 0.2
  %v642 = vmul.f32 %v596, 0.2
  %v643 = vmul.f32 %v598, 0.2
  %v644 = vmul.f32 %v601, 0.2
  %v645 = vmul.f32 %v603, 0.2
  %v646 = vmul.f32 %v606, 0.2
  %v647 = vmul.f32 %v608, 0.2
  %v648 = vmul.f32 %v611, 0.2
  %v649 = vmul.f32 %v613, 0.2
  %v650 = vmul.f32 %v616, 0.2
  %v651 = vmul.f32 %v618, 0.2
  %v652 = vsel %vm620, %v581, %v636
  %v653 = vsel %vm621, %v583, %v637
  %v654 = vsel %vm622, %v586, %v638
  %v655 = vsel %vm623, %v588, %v639
  %v656 = vsel %vm624, %v591, %v640
  %v657 = vsel %vm625, %v593, %v641
  %v658 = vsel %vm626, %v596, %v642
  %v659 = vsel %vm627, %v598, %v643
  %v660 = vsel %vm628, %v601, %v644
  %v661 = vsel %vm629, %v603, %v645
  %v662 = vsel %vm630, %v606, %v646
  %v663 = vsel %vm631, %v608, %v647
  %v664 = vsel %vm632, %v611, %v648
  %v665 = vsel %vm633, %v613, %v649
  %v666 = vsel %vm634, %v616, %v650
  %v667 = vsel %vm635, %v618, %v651
  %v668 = vld [vmem:[%s4] sm:$0xff]
  %v669 = vld [vmem:[%s4 + $0x8] sm:$0xff]
  %v670 = vld [vmem:[%s4 + $0x10] sm:$0xff]
  %v671 = vld [vmem:[%s4 + $0x18] sm:$0xff]
  %v672 = vld [vmem:[%s5] sm:$0x1]
  %v674 = vperm.slane %v672, 0
  %vm676 = vcmask 261120
  %v678 = vsel %vm676, %v652, 0
  %v681 = vsel %vm676, %v653, 0
  %v684 = vsel %vm676, %v654, 0
  %v687 = vsel %vm676, %v655, 0
  %v690 = vsel %vm676, %v656, 0
  %v693 = vsel %vm676, %v657, 0
  %v696 = vsel %vm676, %v658, 0
  %v699 = vsel %vm676, %v659, 0
  %v702 = vsel %vm676, %v660, 0
  %v705 = vsel %vm676, %v661, 0
  %v708 = vsel %vm676, %v662, 0
  %v711 = vsel %vm676, %v663, 0
  %v714 = vsel %vm676, %v664, 0
  %v717 = vsel %vm676, %v665, 0
  %v720 = vsel %vm676, %v666, 0
  %v723 = vsel %vm676, %v667, 0
  %725 = vmatpush.msra.mxu0 0.0
  %726 = vmatpush.msra.mxu0 0.0
  %727 = vmatpush.msra.mxu0 0.0
  %728 = vmatpush.msra.mxu0 0.0
  %729 = vmatpush.msra.mxu0 0.0
  %730 = vmatpush.msra.mxu0 0.0
  %731 = vmatpush.msra.mxu0 0.0
  %732 = vmatpush.msra.mxu0 0.0
  %733 = vmatpush.msra.mxu0 0.0
  %734 = vmatpush.msra.mxu0 0.0
  %735 = vmatpush.msra.mxu0 0.0
  %736 = vmatpush.msra.mxu0 0.0
  %737 = vmatpush.msra.mxu0 %v671
  %738 = vmatpush.msra.mxu0 %v670
  %739 = vmatpush.msra.mxu0 %v669
  %740 = vmatpush.msra.mxu0 %v668
  %741 = vmatmul.f32.gmra.mxu0 %v678
  %v742 = vpop.f32.mrf.mxu0
  %v743 = vadd.f32 %v674, %v742
  %744 = vmatmul.f32.gmra.mxu0 %v681
  %v745 = vpop.f32.mrf.mxu0
  %v746 = vadd.f32 %v674, %v745
  %747 = vmatmul.f32.gmra.mxu0 %v684
  %v748 = vpop.f32.mrf.mxu0
  %v749 = vadd.f32 %v674, %v748
  %750 = vmatmul.f32.gmra.mxu0 %v687
  %v751 = vpop.f32.mrf.mxu0
  %v752 = vadd.f32 %v674, %v751
  %753 = vmatmul.f32.gmra.mxu0 %v690
  %v754 = vpop.f32.mrf.mxu0
  %v755 = vadd.f32 %v674, %v754
  %756 = vmatmul.f32.gmra.mxu0 %v693
  %v757 = vpop.f32.mrf.mxu0
  %v758 = vadd.f32 %v674, %v757
  %759 = vmatmul.f32.gmra.mxu0 %v696
  %v760 = vpop.f32.mrf.mxu0
  %v761 = vadd.f32 %v674, %v760
  %762 = vmatmul.f32.gmra.mxu0 %v699
  %v763 = vpop.f32.mrf.mxu0
  %v764 = vadd.f32 %v674, %v763
  %765 = vmatmul.f32.gmra.mxu0 %v702
  %v766 = vpop.f32.mrf.mxu0
  %v767 = vadd.f32 %v674, %v766
  %768 = vmatmul.f32.gmra.mxu0 %v705
  %v769 = vpop.f32.mrf.mxu0
  %v770 = vadd.f32 %v674, %v769
  %771 = vmatmul.f32.gmra.mxu0 %v708
  %v772 = vpop.f32.mrf.mxu0
  %v773 = vadd.f32 %v674, %v772
  %774 = vmatmul.f32.gmra.mxu0 %v711
  %v775 = vpop.f32.mrf.mxu0
  %v776 = vadd.f32 %v674, %v775
  %777 = vmatmul.f32.gmra.mxu0 %v714
  %v778 = vpop.f32.mrf.mxu0
  %v779 = vadd.f32 %v674, %v778
  %780 = vmatmul.f32.gmra.mxu0 %v717
  %v781 = vpop.f32.mrf.mxu0
  %v782 = vadd.f32 %v674, %v781
  %783 = vmatmul.f32.gmra.mxu0 %v720
  %v784 = vpop.f32.mrf.mxu0
  %v785 = vadd.f32 %v674, %v784
  %786 = vmatmul.f32.gmra.mxu0 %v723
  %v787 = vpop.f32.mrf.mxu0
  %v788 = vadd.f32 %v674, %v787
  %789 = vdwg.mxu0
  %vm790 = vcmp.gt.f32.partialorder %v743, 0.0
  %vm791 = vcmp.gt.f32.partialorder %v746, 0.0
  %vm792 = vcmp.gt.f32.partialorder %v749, 0.0
  %vm793 = vcmp.gt.f32.partialorder %v752, 0.0
  %vm794 = vcmp.gt.f32.partialorder %v755, 0.0
  %vm795 = vcmp.gt.f32.partialorder %v758, 0.0
  %vm796 = vcmp.gt.f32.partialorder %v761, 0.0
  %vm797 = vcmp.gt.f32.partialorder %v764, 0.0
  %vm798 = vcmp.gt.f32.partialorder %v767, 0.0
  %vm799 = vcmp.gt.f32.partialorder %v770, 0.0
  %vm800 = vcmp.gt.f32.partialorder %v773, 0.0
  %vm801 = vcmp.gt.f32.partialorder %v776, 0.0
  %vm802 = vcmp.gt.f32.partialorder %v779, 0.0
  %vm803 = vcmp.gt.f32.partialorder %v782, 0.0
  %vm804 = vcmp.gt.f32.partialorder %v785, 0.0
  %vm805 = vcmp.gt.f32.partialorder %v788, 0.0
  %v806 = vmul.f32 %v743, 0.2
  %v807 = vmul.f32 %v746, 0.2
  %v808 = vmul.f32 %v749, 0.2
  %v809 = vmul.f32 %v752, 0.2
  %v810 = vmul.f32 %v755, 0.2
  %v811 = vmul.f32 %v758, 0.2
  %v812 = vmul.f32 %v761, 0.2
  %v813 = vmul.f32 %v764, 0.2
  %v814 = vmul.f32 %v767, 0.2
  %v815 = vmul.f32 %v770, 0.2
  %v816 = vmul.f32 %v773, 0.2
  %v817 = vmul.f32 %v776, 0.2
  %v818 = vmul.f32 %v779, 0.2
  %v819 = vmul.f32 %v782, 0.2
  %v820 = vmul.f32 %v785, 0.2
  %v821 = vmul.f32 %v788, 0.2
  %v822 = vsel %vm790, %v743, %v806
  %v823 = vsel %vm791, %v746, %v807
  %v824 = vsel %vm792, %v749, %v808
  %v825 = vsel %vm793, %v752, %v809
  %v826 = vsel %vm794, %v755, %v810
  %v827 = vsel %vm795, %v758, %v811
  %v828 = vsel %vm796, %v761, %v812
  %v829 = vsel %vm797, %v764, %v813
  %v830 = vsel %vm798, %v767, %v814
  %v831 = vsel %vm799, %v770, %v815
  %v832 = vsel %vm800, %v773, %v816
  %v833 = vsel %vm801, %v776, %v817
  %v834 = vsel %vm802, %v779, %v818
  %v835 = vsel %vm803, %v782, %v819
  %v836 = vsel %vm804, %v785, %v820
  %v837 = vsel %vm805, %v788, %v821
  %s838 = scalar_lea.vmem %s4, 32
  %v839 = vld [vmem:[%s838] sm:$0xff]
  %v840 = vld [vmem:[%s838 + $0x8] sm:$0xff]
  %v841 = vld [vmem:[%s838 + $0x10] sm:$0xff]
  %v842 = vld [vmem:[%s838 + $0x18] sm:$0xff]
  %s843 = scalar_lea.vmem %s5, 1
  %v844 = vld [vmem:[%s843] sm:$0x1]
  %v846 = vperm.slane %v844, 0
  %v849 = vsel %vm676, %v822, 0
  %v852 = vsel %vm676, %v823, 0
  %v855 = vsel %vm676, %v824, 0
  %v858 = vsel %vm676, %v825, 0
  %v861 = vsel %vm676, %v826, 0
  %v864 = vsel %vm676, %v827, 0
  %v867 = vsel %vm676, %v828, 0
  %v870 = vsel %vm676, %v829, 0
  %v873 = vsel %vm676, %v830, 0
  %v876 = vsel %vm676, %v831, 0
  %v879 = vsel %vm676, %v832, 0
  %v882 = vsel %vm676, %v833, 0
  %v885 = vsel %vm676, %v834, 0
  %v888 = vsel %vm676, %v835, 0
  %v891 = vsel %vm676, %v836, 0
  %v894 = vsel %vm676, %v837, 0
  %896 = vmatpush.msra.mxu0 0.0
  %897 = vmatpush.msra.mxu0 0.0
  %898 = vmatpush.msra.mxu0 0.0
  %899 = vmatpush.msra.mxu0 0.0
  %900 = vmatpush.msra.mxu0 0.0
  %901 = vmatpush.msra.mxu0 0.0
  %902 = vmatpush.msra.mxu0 0.0
  %903 = vmatpush.msra.mxu0 0.0
  %904 = vmatpush.msra.mxu0 0.0
  %905 = vmatpush.msra.mxu0 0.0
  %906 = vmatpush.msra.mxu0 0.0
  %907 = vmatpush.msra.mxu0 0.0
  %908 = vmatpush.msra.mxu0 %v842
  %909 = vmatpush.msra.mxu0 %v841
  %910 = vmatpush.msra.mxu0 %v840
  %911 = vmatpush.msra.mxu0 %v839
  %912 = vmatmul.f32.gmra.mxu0 %v849
  %v913 = vpop.f32.mrf.mxu0
  %v914 = vadd.f32 %v846, %v913
  %915 = vmatmul.f32.gmra.mxu0 %v852
  %v916 = vpop.f32.mrf.mxu0
  %v917 = vadd.f32 %v846, %v916
  %918 = vmatmul.f32.gmra.mxu0 %v855
  %v919 = vpop.f32.mrf.mxu0
  %v920 = vadd.f32 %v846, %v919
  %921 = vmatmul.f32.gmra.mxu0 %v858
  %v922 = vpop.f32.mrf.mxu0
  %v923 = vadd.f32 %v846, %v922
  %924 = vmatmul.f32.gmra.mxu0 %v861
  %v925 = vpop.f32.mrf.mxu0
  %v926 = vadd.f32 %v846, %v925
  %927 = vmatmul.f32.gmra.mxu0 %v864
  %v928 = vpop.f32.mrf.mxu0
  %v929 = vadd.f32 %v846, %v928
  %930 = vmatmul.f32.gmra.mxu0 %v867
  %v931 = vpop.f32.mrf.mxu0
  %v932 = vadd.f32 %v846, %v931
  %933 = vmatmul.f32.gmra.mxu0 %v870
  %v934 = vpop.f32.mrf.mxu0
  %v935 = vadd.f32 %v846, %v934
  %936 = vmatmul.f32.gmra.mxu0 %v873
  %v937 = vpop.f32.mrf.mxu0
  %v938 = vadd.f32 %v846, %v937
  %939 = vmatmul.f32.gmra.mxu0 %v876
  %v940 = vpop.f32.mrf.mxu0
  %v941 = vadd.f32 %v846, %v940
  %942 = vmatmul.f32.gmra.mxu0 %v879
  %v943 = vpop.f32.mrf.mxu0
  %v944 = vadd.f32 %v846, %v943
  %945 = vmatmul.f32.gmra.mxu0 %v882
  %v946 = vpop.f32.mrf.mxu0
  %v947 = vadd.f32 %v846, %v946
  %948 = vmatmul.f32.gmra.mxu0 %v885
  %v949 = vpop.f32.mrf.mxu0
  %v950 = vadd.f32 %v846, %v949
  %951 = vmatmul.f32.gmra.mxu0 %v888
  %v952 = vpop.f32.mrf.mxu0
  %v953 = vadd.f32 %v846, %v952
  %954 = vmatmul.f32.gmra.mxu0 %v891
  %v955 = vpop.f32.mrf.mxu0
  %v956 = vadd.f32 %v846, %v955
  %957 = vmatmul.f32.gmra.mxu0 %v894
  %v958 = vpop.f32.mrf.mxu0
  %v959 = vadd.f32 %v846, %v958
  %960 = vdwg.mxu0
  %s961 = scalar_lea.vmem %s3, 384
  %v962 = vld [vmem:[%s961] sm:$0xff]
  %v963 = vld [vmem:[%s961 + $0x8] sm:$0xff]
  %v964 = vld [vmem:[%s961 + $0x10] sm:$0xff]
  %v965 = vld [vmem:[%s961 + $0x18] sm:$0xff]
  %v966 = vld [vmem:[%s961 + $0x20] sm:$0xff]
  %v967 = vld [vmem:[%s961 + $0x28] sm:$0xff]
  %v968 = vld [vmem:[%s961 + $0x30] sm:$0xff]
  %v969 = vld [vmem:[%s961 + $0x38] sm:$0xff]
  %v970 = vld [vmem:[%s961 + $0x40] sm:$0xff]
  %v971 = vld [vmem:[%s961 + $0x48] sm:$0xff]
  %v972 = vld [vmem:[%s961 + $0x50] sm:$0xff]
  %v973 = vld [vmem:[%s961 + $0x58] sm:$0xff]
  %v974 = vld [vmem:[%s961 + $0x60] sm:$0xff]
  %v975 = vld [vmem:[%s961 + $0x68] sm:$0xff]
  %v976 = vld [vmem:[%s961 + $0x70] sm:$0xff]
  %v977 = vld [vmem:[%s961 + $0x78] sm:$0xff]
  %s978 = scalar_lea.vmem %s3, 512
  %v979 = vld [vmem:[%s978] sm:$0xff]
  %v980 = vld [vmem:[%s978 + $0x8] sm:$0xff]
  %v981 = vld [vmem:[%s978 + $0x10] sm:$0xff]
  %v982 = vld [vmem:[%s978 + $0x18] sm:$0xff]
  %v983 = vld [vmem:[%s978 + $0x20] sm:$0xff]
  %v984 = vld [vmem:[%s978 + $0x28] sm:$0xff]
  %v985 = vld [vmem:[%s978 + $0x30] sm:$0xff]
  %v986 = vld [vmem:[%s978 + $0x38] sm:$0xff]
  %v987 = vld [vmem:[%s978 + $0x40] sm:$0xff]
  %v988 = vld [vmem:[%s978 + $0x48] sm:$0xff]
  %v989 = vld [vmem:[%s978 + $0x50] sm:$0xff]
  %v990 = vld [vmem:[%s978 + $0x58] sm:$0xff]
  %v991 = vld [vmem:[%s978 + $0x60] sm:$0xff]
  %v992 = vld [vmem:[%s978 + $0x68] sm:$0xff]
  %v993 = vld [vmem:[%s978 + $0x70] sm:$0xff]
  %v994 = vld [vmem:[%s978 + $0x78] sm:$0xff]
  %s995 = scalar_lea.vmem %s3, 640
  %v996 = vld [vmem:[%s995] sm:$0xff]
  %v997 = vld [vmem:[%s995 + $0x8] sm:$0xff]
  %v998 = vld [vmem:[%s995 + $0x10] sm:$0xff]
  %v999 = vld [vmem:[%s995 + $0x18] sm:$0xff]
  %v1000 = vld [vmem:[%s995 + $0x20] sm:$0xff]
  %v1001 = vld [vmem:[%s995 + $0x28] sm:$0xff]
  %v1002 = vld [vmem:[%s995 + $0x30] sm:$0xff]
  %v1003 = vld [vmem:[%s995 + $0x38] sm:$0xff]
  %v1004 = vld [vmem:[%s995 + $0x40] sm:$0xff]
  %v1005 = vld [vmem:[%s995 + $0x48] sm:$0xff]
  %v1006 = vld [vmem:[%s995 + $0x50] sm:$0xff]
  %v1007 = vld [vmem:[%s995 + $0x58] sm:$0xff]
  %v1008 = vld [vmem:[%s995 + $0x60] sm:$0xff]
  %v1009 = vld [vmem:[%s995 + $0x68] sm:$0xff]
  %v1010 = vld [vmem:[%s995 + $0x70] sm:$0xff]
  %v1011 = vld [vmem:[%s995 + $0x78] sm:$0xff]
  %s1012 = scalar_lea.vmem %s2, 128
  %v1013 = vld [vmem:[%s1012] sm:$0xff]
  %v1014 = vld [vmem:[%s1012 + $0x8] sm:$0xff]
  %v1015 = vld [vmem:[%s1012 + $0x10] sm:$0xff]
  %v1016 = vld [vmem:[%s1012 + $0x18] sm:$0xff]
  %v1017 = vld [vmem:[%s1012 + $0x20] sm:$0xff]
  %v1018 = vld [vmem:[%s1012 + $0x28] sm:$0xff]
  %v1019 = vld [vmem:[%s1012 + $0x30] sm:$0xff]
  %v1020 = vld [vmem:[%s1012 + $0x38] sm:$0xff]
  %v1021 = vld [vmem:[%s1012 + $0x40] sm:$0xff]
  %v1022 = vld [vmem:[%s1012 + $0x48] sm:$0xff]
  %v1023 = vld [vmem:[%s1012 + $0x50] sm:$0xff]
  %v1024 = vld [vmem:[%s1012 + $0x58] sm:$0xff]
  %v1025 = vld [vmem:[%s1012 + $0x60] sm:$0xff]
  %v1026 = vld [vmem:[%s1012 + $0x68] sm:$0xff]
  %v1027 = vld [vmem:[%s1012 + $0x70] sm:$0xff]
  %v1028 = vld [vmem:[%s1012 + $0x78] sm:$0xff]
  %v1029 = vpack.c.bf16 %v917, %v914
  %v1030 = vpack.c.bf16 %v923, %v920
  %v1031 = vpack.c.bf16 %v929, %v926
  %v1032 = vpack.c.bf16 %v935, %v932
  %v1033 = vpack.c.bf16 %v941, %v938
  %v1034 = vpack.c.bf16 %v947, %v944
  %v1035 = vpack.c.bf16 %v953, %v950
  %v1036 = vpack.c.bf16 %v959, %v956
  %1037 = vmatpush.bf16.msra.mxu0 %v1036
  %1038 = vmatpush.bf16.msra.mxu0 %v1035
  %1039 = vmatpush.bf16.msra.mxu0 %v1034
  %1040 = vmatpush.bf16.msra.mxu0 %v1033
  %1041 = vmatpush.bf16.msra.mxu0 %v1032
  %1042 = vmatpush.bf16.msra.mxu0 %v1031
  %1043 = vmatpush.bf16.msra.mxu0 %v1030
  %1044 = vmatpush.bf16.msra.mxu0 %v1029
  %1045 = vmatmul.bf16.gmra.mxu0 %v209
  %v1046 = vpop.f32.mrf.mxu0
  %v1047 = vadd.f32 0.0, %v1046
  %v1048 = vpop.f32.mrf.mxu0
  %v1049 = vadd.f32 0.0, %v1048
  %1050 = vmatmul.bf16.gmra.mxu0 %v210
  %v1051 = vpop.f32.mrf.mxu0
  %v1052 = vadd.f32 0.0, %v1051
  %v1053 = vpop.f32.mrf.mxu0
  %v1054 = vadd.f32 0.0, %v1053
  %1055 = vmatmul.bf16.gmra.mxu0 %v211
  %v1056 = vpop.f32.mrf.mxu0
  %v1057 = vadd.f32 0.0, %v1056
  %v1058 = vpop.f32.mrf.mxu0
  %v1059 = vadd.f32 0.0, %v1058
  %1060 = vmatmul.bf16.gmra.mxu0 %v212
  %v1061 = vpop.f32.mrf.mxu0
  %v1062 = vadd.f32 0.0, %v1061
  %v1063 = vpop.f32.mrf.mxu0
  %v1064 = vadd.f32 0.0, %v1063
  %1065 = vmatmul.bf16.gmra.mxu0 %v213
  %v1066 = vpop.f32.mrf.mxu0
  %v1067 = vadd.f32 0.0, %v1066
  %v1068 = vpop.f32.mrf.mxu0
  %v1069 = vadd.f32 0.0, %v1068
  %1070 = vmatmul.bf16.gmra.mxu0 %v214
  %v1071 = vpop.f32.mrf.mxu0
  %v1072 = vadd.f32 0.0, %v1071
  %v1073 = vpop.f32.mrf.mxu0
  %v1074 = vadd.f32 0.0, %v1073
  %1075 = vmatmul.bf16.gmra.mxu0 %v215
  %v1076 = vpop.f32.mrf.mxu0
  %v1077 = vadd.f32 0.0, %v1076
  %v1078 = vpop.f32.mrf.mxu0
  %v1079 = vadd.f32 0.0, %v1078
  %1080 = vmatmul.bf16.gmra.mxu0 %v216
  %v1081 = vpop.f32.mrf.mxu0
  %v1082 = vadd.f32 0.0, %v1081
  %v1083 = vpop.f32.mrf.mxu0
  %v1084 = vadd.f32 0.0, %v1083
  %1085 = vmatmul.bf16.gmra.mxu0 %v217
  %v1086 = vpop.f32.mrf.mxu0
  %v1087 = vadd.f32 0.0, %v1086
  %v1088 = vpop.f32.mrf.mxu0
  %v1089 = vadd.f32 0.0, %v1088
  %1090 = vmatmul.bf16.gmra.mxu0 %v218
  %v1091 = vpop.f32.mrf.mxu0
  %v1092 = vadd.f32 0.0, %v1091
  %v1093 = vpop.f32.mrf.mxu0
  %v1094 = vadd.f32 0.0, %v1093
  %1095 = vmatmul.bf16.gmra.mxu0 %v219
  %v1096 = vpop.f32.mrf.mxu0
  %v1097 = vadd.f32 0.0, %v1096
  %v1098 = vpop.f32.mrf.mxu0
  %v1099 = vadd.f32 0.0, %v1098
  %1100 = vmatmul.bf16.gmra.mxu0 %v220
  %v1101 = vpop.f32.mrf.mxu0
  %v1102 = vadd.f32 0.0, %v1101
  %v1103 = vpop.f32.mrf.mxu0
  %v1104 = vadd.f32 0.0, %v1103
  %1105 = vmatmul.bf16.gmra.mxu0 %v221
  %v1106 = vpop.f32.mrf.mxu0
  %v1107 = vadd.f32 0.0, %v1106
  %v1108 = vpop.f32.mrf.mxu0
  %v1109 = vadd.f32 0.0, %v1108
  %1110 = vmatmul.bf16.gmra.mxu0 %v222
  %v1111 = vpop.f32.mrf.mxu0
  %v1112 = vadd.f32 0.0, %v1111
  %v1113 = vpop.f32.mrf.mxu0
  %v1114 = vadd.f32 0.0, %v1113
  %1115 = vmatmul.bf16.gmra.mxu0 %v223
  %v1116 = vpop.f32.mrf.mxu0
  %v1117 = vadd.f32 0.0, %v1116
  %v1118 = vpop.f32.mrf.mxu0
  %v1119 = vadd.f32 0.0, %v1118
  %1120 = vmatmul.bf16.gmra.mxu0 %v224
  %v1121 = vpop.f32.mrf.mxu0
  %v1122 = vadd.f32 0.0, %v1121
  %v1123 = vpop.f32.mrf.mxu0
  %v1124 = vadd.f32 0.0, %v1123
  %1125 = vdwg.mxu0
  %v1126 = vmul.f32 %v1047, %v962
  %v1127 = vmul.f32 %v1049, %v963
  %v1128 = vmul.f32 %v1052, %v964
  %v1129 = vmul.f32 %v1054, %v965
  %v1130 = vmul.f32 %v1057, %v966
  %v1131 = vmul.f32 %v1059, %v967
  %v1132 = vmul.f32 %v1062, %v968
  %v1133 = vmul.f32 %v1064, %v969
  %v1134 = vmul.f32 %v1067, %v970
  %v1135 = vmul.f32 %v1069, %v971
  %v1136 = vmul.f32 %v1072, %v972
  %v1137 = vmul.f32 %v1074, %v973
  %v1138 = vmul.f32 %v1077, %v974
  %v1139 = vmul.f32 %v1079, %v975
  %v1140 = vmul.f32 %v1082, %v976
  %v1141 = vmul.f32 %v1084, %v977
  %v1142 = vmul.f32 %v1087, %v979
  %v1143 = vmul.f32 %v1089, %v980
  %v1144 = vmul.f32 %v1092, %v981
  %v1145 = vmul.f32 %v1094, %v982
  %v1146 = vmul.f32 %v1097, %v983
  %v1147 = vmul.f32 %v1099, %v984
  %v1148 = vmul.f32 %v1102, %v985
  %v1149 = vmul.f32 %v1104, %v986
  %v1150 = vmul.f32 %v1107, %v987
  %v1151 = vmul.f32 %v1109, %v988
  %v1152 = vmul.f32 %v1112, %v989
  %v1153 = vmul.f32 %v1114, %v990
  %v1154 = vmul.f32 %v1117, %v991
  %v1155 = vmul.f32 %v1119, %v992
  %v1156 = vmul.f32 %v1122, %v993
  %v1157 = vmul.f32 %v1124, %v994
  %v1158 = vsub.f32 %v1126, %v1142
  %v1159 = vsub.f32 %v1127, %v1143
  %v1160 = vsub.f32 %v1128, %v1144
  %v1161 = vsub.f32 %v1129, %v1145
  %v1162 = vsub.f32 %v1130, %v1146
  %v1163 = vsub.f32 %v1131, %v1147
  %v1164 = vsub.f32 %v1132, %v1148
  %v1165 = vsub.f32 %v1133, %v1149
  %v1166 = vsub.f32 %v1134, %v1150
  %v1167 = vsub.f32 %v1135, %v1151
  %v1168 = vsub.f32 %v1136, %v1152
  %v1169 = vsub.f32 %v1137, %v1153
  %v1170 = vsub.f32 %v1138, %v1154
  %v1171 = vsub.f32 %v1139, %v1155
  %v1172 = vsub.f32 %v1140, %v1156
  %v1173 = vsub.f32 %v1141, %v1157
  %v1174 = vmul.f32 %v1047, %v979
  %v1175 = vmul.f32 %v1049, %v980
  %v1176 = vmul.f32 %v1052, %v981
  %v1177 = vmul.f32 %v1054, %v982
  %v1178 = vmul.f32 %v1057, %v983
  %v1179 = vmul.f32 %v1059, %v984
  %v1180 = vmul.f32 %v1062, %v985
  %v1181 = vmul.f32 %v1064, %v986
  %v1182 = vmul.f32 %v1067, %v987
  %v1183 = vmul.f32 %v1069, %v988
  %v1184 = vmul.f32 %v1072, %v989
  %v1185 = vmul.f32 %v1074, %v990
  %v1186 = vmul.f32 %v1077, %v991
  %v1187 = vmul.f32 %v1079, %v992
  %v1188 = vmul.f32 %v1082, %v993
  %v1189 = vmul.f32 %v1084, %v994
  %v1190 = vmul.f32 %v1087, %v962
  %v1191 = vmul.f32 %v1089, %v963
  %v1192 = vmul.f32 %v1092, %v964
  %v1193 = vmul.f32 %v1094, %v965
  %v1194 = vmul.f32 %v1097, %v966
  %v1195 = vmul.f32 %v1099, %v967
  %v1196 = vmul.f32 %v1102, %v968
  %v1197 = vmul.f32 %v1104, %v969
  %v1198 = vmul.f32 %v1107, %v970
  %v1199 = vmul.f32 %v1109, %v971
  %v1200 = vmul.f32 %v1112, %v972
  %v1201 = vmul.f32 %v1114, %v973
  %v1202 = vmul.f32 %v1117, %v974
  %v1203 = vmul.f32 %v1119, %v975
  %v1204 = vmul.f32 %v1122, %v976
  %v1205 = vmul.f32 %v1124, %v977
  %v1206 = vadd.f32 %v1174, %v1190
  %v1207 = vadd.f32 %v1175, %v1191
  %v1208 = vadd.f32 %v1176, %v1192
  %v1209 = vadd.f32 %v1177, %v1193
  %v1210 = vadd.f32 %v1178, %v1194
  %v1211 = vadd.f32 %v1179, %v1195
  %v1212 = vadd.f32 %v1180, %v1196
  %v1213 = vadd.f32 %v1181, %v1197
  %v1214 = vadd.f32 %v1182, %v1198
  %v1215 = vadd.f32 %v1183, %v1199
  %v1216 = vadd.f32 %v1184, %v1200
  %v1217 = vadd.f32 %v1185, %v1201
  %v1218 = vadd.f32 %v1186, %v1202
  %v1219 = vadd.f32 %v1187, %v1203
  %v1220 = vadd.f32 %v1188, %v1204
  %v1221 = vadd.f32 %v1189, %v1205
  %v1222 = vpack.c.bf16 %v1159, %v1158
  %v1223 = vpack.c.bf16 %v1161, %v1160
  %v1224 = vpack.c.bf16 %v1163, %v1162
  %v1225 = vpack.c.bf16 %v1165, %v1164
  %v1226 = vpack.c.bf16 %v1167, %v1166
  %v1227 = vpack.c.bf16 %v1169, %v1168
  %v1228 = vpack.c.bf16 %v1171, %v1170
  %v1229 = vpack.c.bf16 %v1173, %v1172
  %v1230 = vpack.c.bf16 %v1207, %v1206
  %v1231 = vpack.c.bf16 %v1209, %v1208
  %v1232 = vpack.c.bf16 %v1211, %v1210
  %v1233 = vpack.c.bf16 %v1213, %v1212
  %v1234 = vpack.c.bf16 %v1215, %v1214
  %v1235 = vpack.c.bf16 %v1217, %v1216
  %v1236 = vpack.c.bf16 %v1219, %v1218
  %v1237 = vpack.c.bf16 %v1221, %v1220
  %v1254 = vunpack.c.l.b16 %v1013
  %v1255 = vunpack.c.h.b16 %v1013
  %v1256 = vunpack.c.l.b16 %v1014
  %v1257 = vunpack.c.h.b16 %v1014
  %v1258 = vunpack.c.l.b16 %v1015
  %v1259 = vunpack.c.h.b16 %v1015
  %v1260 = vunpack.c.l.b16 %v1016
  %v1261 = vunpack.c.h.b16 %v1016
  %v1262 = vunpack.c.l.b16 %v1017
  %v1263 = vunpack.c.h.b16 %v1017
  %v1264 = vunpack.c.l.b16 %v1018
  %v1265 = vunpack.c.h.b16 %v1018
  %v1266 = vunpack.c.l.b16 %v1019
  %v1267 = vunpack.c.h.b16 %v1019
  %v1268 = vunpack.c.l.b16 %v1020
  %v1269 = vunpack.c.h.b16 %v1020
  %v1270 = vunpack.c.l.b16 %v1021
  %v1271 = vunpack.c.h.b16 %v1021
  %v1272 = vunpack.c.l.b16 %v1022
  %v1273 = vunpack.c.h.b16 %v1022
  %v1274 = vunpack.c.l.b16 %v1023
  %v1275 = vunpack.c.h.b16 %v1023
  %v1276 = vunpack.c.l.b16 %v1024
  %v1277 = vunpack.c.h.b16 %v1024
  %v1278 = vunpack.c.l.b16 %v1025
  %v1279 = vunpack.c.h.b16 %v1025
  %v1280 = vunpack.c.l.b16 %v1026
  %v1281 = vunpack.c.h.b16 %v1026
  %v1282 = vunpack.c.l.b16 %v1027
  %v1283 = vunpack.c.h.b16 %v1027
  %v1284 = vunpack.c.l.b16 %v1028
  %v1285 = vunpack.c.h.b16 %v1028
  %v1286 = vpack.c.b16 %v1256, %v1254
  %v1287 = vpack.c.b16 %v1257, %v1255
  %v1288 = vpack.c.b16 %v1260, %v1258
  %v1289 = vpack.c.b16 %v1261, %v1259
  %v1290 = vpack.c.b16 %v1264, %v1262
  %v1291 = vpack.c.b16 %v1265, %v1263
  %v1292 = vpack.c.b16 %v1268, %v1266
  %v1293 = vpack.c.b16 %v1269, %v1267
  %v1294 = vpack.c.b16 %v1272, %v1270
  %v1295 = vpack.c.b16 %v1273, %v1271
  %v1296 = vpack.c.b16 %v1276, %v1274
  %v1297 = vpack.c.b16 %v1277, %v1275
  %v1298 = vpack.c.b16 %v1280, %v1278
  %v1299 = vpack.c.b16 %v1281, %v1279
  %v1300 = vpack.c.b16 %v1284, %v1282
  %v1301 = vpack.c.b16 %v1285, %v1283
  %1318 = vmatpush.bf16.msra.mxu0 %v1229
  %1319 = vmatpush.bf16.msra.mxu0 %v1228
  %1320 = vmatpush.bf16.msra.mxu0 %v1227
  %1321 = vmatpush.bf16.msra.mxu0 %v1226
  %1322 = vmatpush.bf16.msra.mxu0 %v1225
  %1323 = vmatpush.bf16.msra.mxu0 %v1224
  %1324 = vmatpush.bf16.msra.mxu0 %v1223
  %1325 = vmatpush.bf16.msra.mxu0 %v1222
  %1326 = vmatmul.bf16.gmra.mxu0 %v1286
  %v1327 = vpop.f32.mrf.mxu0
  %v1328 = vadd.f32 %v996, %v1327
  %v1329 = vpop.f32.mrf.mxu0
  %v1330 = vadd.f32 %v997, %v1329
  %1331 = vmatmul.bf16.gmra.mxu0 %v1288
  %v1332 = vpop.f32.mrf.mxu0
  %v1333 = vadd.f32 %v998, %v1332
  %v1334 = vpop.f32.mrf.mxu0
  %v1335 = vadd.f32 %v999, %v1334
  %1336 = vmatmul.bf16.gmra.mxu0 %v1290
  %v1337 = vpop.f32.mrf.mxu0
  %v1338 = vadd.f32 %v1000, %v1337
  %v1339 = vpop.f32.mrf.mxu0
  %v1340 = vadd.f32 %v1001, %v1339
  %1341 = vmatmul.bf16.gmra.mxu0 %v1292
  %v1342 = vpop.f32.mrf.mxu0
  %v1343 = vadd.f32 %v1002, %v1342
  %v1344 = vpop.f32.mrf.mxu0
  %v1345 = vadd.f32 %v1003, %v1344
  %1346 = vmatmul.bf16.gmra.mxu0 %v1294
  %v1347 = vpop.f32.mrf.mxu0
  %v1348 = vadd.f32 %v1004, %v1347
  %v1349 = vpop.f32.mrf.mxu0
  %v1350 = vadd.f32 %v1005, %v1349
  %1351 = vmatmul.bf16.gmra.mxu0 %v1296
  %v1352 = vpop.f32.mrf.mxu0
  %v1353 = vadd.f32 %v1006, %v1352
  %v1354 = vpop.f32.mrf.mxu0
  %v1355 = vadd.f32 %v1007, %v1354
  %1356 = vmatmul.bf16.gmra.mxu0 %v1298
  %v1357 = vpop.f32.mrf.mxu0
  %v1358 = vadd.f32 %v1008, %v1357
  %v1359 = vpop.f32.mrf.mxu0
  %v1360 = vadd.f32 %v1009, %v1359
  %1361 = vmatmul.bf16.gmra.mxu0 %v1300
  %v1362 = vpop.f32.mrf.mxu0
  %v1363 = vadd.f32 %v1010, %v1362
  %v1364 = vpop.f32.mrf.mxu0
  %v1365 = vadd.f32 %v1011, %v1364
  %1366 = vdwg.mxu0
  %1367 = vmatpush.bf16.msra.mxu0 %v1237
  %1368 = vmatpush.bf16.msra.mxu0 %v1236
  %1369 = vmatpush.bf16.msra.mxu0 %v1235
  %1370 = vmatpush.bf16.msra.mxu0 %v1234
  %1371 = vmatpush.bf16.msra.mxu0 %v1233
  %1372 = vmatpush.bf16.msra.mxu0 %v1232
  %1373 = vmatpush.bf16.msra.mxu0 %v1231
  %1374 = vmatpush.bf16.msra.mxu0 %v1230
  %1375 = vmatmul.bf16.gmra.mxu0 %v1287
  %v1376 = vpop.f32.mrf.mxu0
  %v1377 = vadd.f32 %v1328, %v1376
  %v1378 = vpop.f32.mrf.mxu0
  %v1379 = vadd.f32 %v1330, %v1378
  %1380 = vmatmul.bf16.gmra.mxu0 %v1289
  %v1381 = vpop.f32.mrf.mxu0
  %v1382 = vadd.f32 %v1333, %v1381
  %v1383 = vpop.f32.mrf.mxu0
  %v1384 = vadd.f32 %v1335, %v1383
  %1385 = vmatmul.bf16.gmra.mxu0 %v1291
  %v1386 = vpop.f32.mrf.mxu0
  %v1387 = vadd.f32 %v1338, %v1386
  %v1388 = vpop.f32.mrf.mxu0
  %v1389 = vadd.f32 %v1340, %v1388
  %1390 = vmatmul.bf16.gmra.mxu0 %v1293
  %v1391 = vpop.f32.mrf.mxu0
  %v1392 = vadd.f32 %v1343, %v1391
  %v1393 = vpop.f32.mrf.mxu0
  %v1394 = vadd.f32 %v1345, %v1393
  %1395 = vmatmul.bf16.gmra.mxu0 %v1295
  %v1396 = vpop.f32.mrf.mxu0
  %v1397 = vadd.f32 %v1348, %v1396
  %v1398 = vpop.f32.mrf.mxu0
  %v1399 = vadd.f32 %v1350, %v1398
  %1400 = vmatmul.bf16.gmra.mxu0 %v1297
  %v1401 = vpop.f32.mrf.mxu0
  %v1402 = vadd.f32 %v1353, %v1401
  %v1403 = vpop.f32.mrf.mxu0
  %v1404 = vadd.f32 %v1355, %v1403
  %1405 = vmatmul.bf16.gmra.mxu0 %v1299
  %v1406 = vpop.f32.mrf.mxu0
  %v1407 = vadd.f32 %v1358, %v1406
  %v1408 = vpop.f32.mrf.mxu0
  %v1409 = vadd.f32 %v1360, %v1408
  %1410 = vmatmul.bf16.gmra.mxu0 %v1301
  %v1411 = vpop.f32.mrf.mxu0
  %v1412 = vadd.f32 %v1363, %v1411
  %v1413 = vpop.f32.mrf.mxu0
  %v1414 = vadd.f32 %v1365, %v1413
  %1415 = vdwg.mxu0
  %vm1416 = vcmp.gt.f32.partialorder %v1377, 0.0
  %vm1417 = vcmp.gt.f32.partialorder %v1379, 0.0
  %vm1418 = vcmp.gt.f32.partialorder %v1382, 0.0
  %vm1419 = vcmp.gt.f32.partialorder %v1384, 0.0
  %vm1420 = vcmp.gt.f32.partialorder %v1387, 0.0
  %vm1421 = vcmp.gt.f32.partialorder %v1389, 0.0
  %vm1422 = vcmp.gt.f32.partialorder %v1392, 0.0
  %vm1423 = vcmp.gt.f32.partialorder %v1394, 0.0
  %vm1424 = vcmp.gt.f32.partialorder %v1397, 0.0
  %vm1425 = vcmp.gt.f32.partialorder %v1399, 0.0
  %vm1426 = vcmp.gt.f32.partialorder %v1402, 0.0
  %vm1427 = vcmp.gt.f32.partialorder %v1404, 0.0
  %vm1428 = vcmp.gt.f32.partialorder %v1407, 0.0
  %vm1429 = vcmp.gt.f32.partialorder %v1409, 0.0
  %vm1430 = vcmp.gt.f32.partialorder %v1412, 0.0
  %vm1431 = vcmp.gt.f32.partialorder %v1414, 0.0
  %v1432 = vmul.f32 %v1377, 0.2
  %v1433 = vmul.f32 %v1379, 0.2
  %v1434 = vmul.f32 %v1382, 0.2
  %v1435 = vmul.f32 %v1384, 0.2
  %v1436 = vmul.f32 %v1387, 0.2
  %v1437 = vmul.f32 %v1389, 0.2
  %v1438 = vmul.f32 %v1392, 0.2
  %v1439 = vmul.f32 %v1394, 0.2
  %v1440 = vmul.f32 %v1397, 0.2
  %v1441 = vmul.f32 %v1399, 0.2
  %v1442 = vmul.f32 %v1402, 0.2
  %v1443 = vmul.f32 %v1404, 0.2
  %v1444 = vmul.f32 %v1407, 0.2
  %v1445 = vmul.f32 %v1409, 0.2
  %v1446 = vmul.f32 %v1412, 0.2
  %v1447 = vmul.f32 %v1414, 0.2
  %v1448 = vsel %vm1416, %v1377, %v1432
  %v1449 = vsel %vm1417, %v1379, %v1433
  %v1450 = vsel %vm1418, %v1382, %v1434
  %v1451 = vsel %vm1419, %v1384, %v1435
  %v1452 = vsel %vm1420, %v1387, %v1436
  %v1453 = vsel %vm1421, %v1389, %v1437
  %v1454 = vsel %vm1422, %v1392, %v1438
  %v1455 = vsel %vm1423, %v1394, %v1439
  %v1456 = vsel %vm1424, %v1397, %v1440
  %v1457 = vsel %vm1425, %v1399, %v1441
  %v1458 = vsel %vm1426, %v1402, %v1442
  %v1459 = vsel %vm1427, %v1404, %v1443
  %v1460 = vsel %vm1428, %v1407, %v1444
  %v1461 = vsel %vm1429, %v1409, %v1445
  %v1462 = vsel %vm1430, %v1412, %v1446
  %v1463 = vsel %vm1431, %v1414, %v1447
  %s1464 = scalar_lea.vmem %s4, 64
  %v1465 = vld [vmem:[%s1464] sm:$0xff]
  %v1466 = vld [vmem:[%s1464 + $0x8] sm:$0xff]
  %v1467 = vld [vmem:[%s1464 + $0x10] sm:$0xff]
  %v1468 = vld [vmem:[%s1464 + $0x18] sm:$0xff]
  %s1469 = scalar_lea.vmem %s5, 2
  %v1470 = vld [vmem:[%s1469] sm:$0x1]
  %v1472 = vperm.slane %v1470, 0
  %v1475 = vsel %vm676, %v1448, 0
  %v1478 = vsel %vm676, %v1449, 0
  %v1481 = vsel %vm676, %v1450, 0
  %v1484 = vsel %vm676, %v1451, 0
  %v1487 = vsel %vm676, %v1452, 0
  %v1490 = vsel %vm676, %v1453, 0
  %v1493 = vsel %vm676, %v1454, 0
  %v1496 = vsel %vm676, %v1455, 0
  %v1499 = vsel %vm676, %v1456, 0
  %v1502 = vsel %vm676, %v1457, 0
  %v1505 = vsel %vm676, %v1458, 0
  %v1508 = vsel %vm676, %v1459, 0
  %v1511 = vsel %vm676, %v1460, 0
  %v1514 = vsel %vm676, %v1461, 0
  %v1517 = vsel %vm676, %v1462, 0
  %v1520 = vsel %vm676, %v1463, 0
  %1522 = vmatpush.msra.mxu0 0.0
  %1523 = vmatpush.msra.mxu0 0.0
  %1524 = vmatpush.msra.mxu0 0.0
  %1525 = vmatpush.msra.mxu0 0.0
  %1526 = vmatpush.msra.mxu0 0.0
  %1527 = vmatpush.msra.mxu0 0.0
  %1528 = vmatpush.msra.mxu0 0.0
  %1529 = vmatpush.msra.mxu0 0.0
  %1530 = vmatpush.msra.mxu0 0.0
  %1531 = vmatpush.msra.mxu0 0.0
  %1532 = vmatpush.msra.mxu0 0.0
  %1533 = vmatpush.msra.mxu0 0.0
  %1534 = vmatpush.msra.mxu0 %v1468
  %1535 = vmatpush.msra.mxu0 %v1467
  %1536 = vmatpush.msra.mxu0 %v1466
  %1537 = vmatpush.msra.mxu0 %v1465
  %1538 = vmatmul.f32.gmra.mxu0 %v1475
  %v1539 = vpop.f32.mrf.mxu0
  %v1540 = vadd.f32 %v1472, %v1539
  %1541 = vmatmul.f32.gmra.mxu0 %v1478
  %v1542 = vpop.f32.mrf.mxu0
  %v1543 = vadd.f32 %v1472, %v1542
  %1544 = vmatmul.f32.gmra.mxu0 %v1481
  %v1545 = vpop.f32.mrf.mxu0
  %v1546 = vadd.f32 %v1472, %v1545
  %1547 = vmatmul.f32.gmra.mxu0 %v1484
  %v1548 = vpop.f32.mrf.mxu0
  %v1549 = vadd.f32 %v1472, %v1548
  %1550 = vmatmul.f32.gmra.mxu0 %v1487
  %v1551 = vpop.f32.mrf.mxu0
  %v1552 = vadd.f32 %v1472, %v1551
  %1553 = vmatmul.f32.gmra.mxu0 %v1490
  %v1554 = vpop.f32.mrf.mxu0
  %v1555 = vadd.f32 %v1472, %v1554
  %1556 = vmatmul.f32.gmra.mxu0 %v1493
  %v1557 = vpop.f32.mrf.mxu0
  %v1558 = vadd.f32 %v1472, %v1557
  %1559 = vmatmul.f32.gmra.mxu0 %v1496
  %v1560 = vpop.f32.mrf.mxu0
  %v1561 = vadd.f32 %v1472, %v1560
  %1562 = vmatmul.f32.gmra.mxu0 %v1499
  %v1563 = vpop.f32.mrf.mxu0
  %v1564 = vadd.f32 %v1472, %v1563
  %1565 = vmatmul.f32.gmra.mxu0 %v1502
  %v1566 = vpop.f32.mrf.mxu0
  %v1567 = vadd.f32 %v1472, %v1566
  %1568 = vmatmul.f32.gmra.mxu0 %v1505
  %v1569 = vpop.f32.mrf.mxu0
  %v1570 = vadd.f32 %v1472, %v1569
  %1571 = vmatmul.f32.gmra.mxu0 %v1508
  %v1572 = vpop.f32.mrf.mxu0
  %v1573 = vadd.f32 %v1472, %v1572
  %1574 = vmatmul.f32.gmra.mxu0 %v1511
  %v1575 = vpop.f32.mrf.mxu0
  %v1576 = vadd.f32 %v1472, %v1575
  %1577 = vmatmul.f32.gmra.mxu0 %v1514
  %v1578 = vpop.f32.mrf.mxu0
  %v1579 = vadd.f32 %v1472, %v1578
  %1580 = vmatmul.f32.gmra.mxu0 %v1517
  %v1581 = vpop.f32.mrf.mxu0
  %v1582 = vadd.f32 %v1472, %v1581
  %1583 = vmatmul.f32.gmra.mxu0 %v1520
  %v1584 = vpop.f32.mrf.mxu0
  %v1585 = vadd.f32 %v1472, %v1584
  %1586 = vdwg.mxu0
  %vm1587 = vcmp.gt.f32.partialorder %v1540, 0.0
  %vm1588 = vcmp.gt.f32.partialorder %v1543, 0.0
  %vm1589 = vcmp.gt.f32.partialorder %v1546, 0.0
  %vm1590 = vcmp.gt.f32.partialorder %v1549, 0.0
  %vm1591 = vcmp.gt.f32.partialorder %v1552, 0.0
  %vm1592 = vcmp.gt.f32.partialorder %v1555, 0.0
  %vm1593 = vcmp.gt.f32.partialorder %v1558, 0.0
  %vm1594 = vcmp.gt.f32.partialorder %v1561, 0.0
  %vm1595 = vcmp.gt.f32.partialorder %v1564, 0.0
  %vm1596 = vcmp.gt.f32.partialorder %v1567, 0.0
  %vm1597 = vcmp.gt.f32.partialorder %v1570, 0.0
  %vm1598 = vcmp.gt.f32.partialorder %v1573, 0.0
  %vm1599 = vcmp.gt.f32.partialorder %v1576, 0.0
  %vm1600 = vcmp.gt.f32.partialorder %v1579, 0.0
  %vm1601 = vcmp.gt.f32.partialorder %v1582, 0.0
  %vm1602 = vcmp.gt.f32.partialorder %v1585, 0.0
  %v1603 = vmul.f32 %v1540, 0.2
  %v1604 = vmul.f32 %v1543, 0.2
  %v1605 = vmul.f32 %v1546, 0.2
  %v1606 = vmul.f32 %v1549, 0.2
  %v1607 = vmul.f32 %v1552, 0.2
  %v1608 = vmul.f32 %v1555, 0.2
  %v1609 = vmul.f32 %v1558, 0.2
  %v1610 = vmul.f32 %v1561, 0.2
  %v1611 = vmul.f32 %v1564, 0.2
  %v1612 = vmul.f32 %v1567, 0.2
  %v1613 = vmul.f32 %v1570, 0.2
  %v1614 = vmul.f32 %v1573, 0.2
  %v1615 = vmul.f32 %v1576, 0.2
  %v1616 = vmul.f32 %v1579, 0.2
  %v1617 = vmul.f32 %v1582, 0.2
  %v1618 = vmul.f32 %v1585, 0.2
  %v1619 = vsel %vm1587, %v1540, %v1603
  %v1620 = vsel %vm1588, %v1543, %v1604
  %v1621 = vsel %vm1589, %v1546, %v1605
  %v1622 = vsel %vm1590, %v1549, %v1606
  %v1623 = vsel %vm1591, %v1552, %v1607
  %v1624 = vsel %vm1592, %v1555, %v1608
  %v1625 = vsel %vm1593, %v1558, %v1609
  %v1626 = vsel %vm1594, %v1561, %v1610
  %v1627 = vsel %vm1595, %v1564, %v1611
  %v1628 = vsel %vm1596, %v1567, %v1612
  %v1629 = vsel %vm1597, %v1570, %v1613
  %v1630 = vsel %vm1598, %v1573, %v1614
  %v1631 = vsel %vm1599, %v1576, %v1615
  %v1632 = vsel %vm1600, %v1579, %v1616
  %v1633 = vsel %vm1601, %v1582, %v1617
  %v1634 = vsel %vm1602, %v1585, %v1618
  %s1635 = scalar_lea.vmem %s4, 96
  %v1636 = vld [vmem:[%s1635] sm:$0xff]
  %v1637 = vld [vmem:[%s1635 + $0x8] sm:$0xff]
  %v1638 = vld [vmem:[%s1635 + $0x10] sm:$0xff]
  %v1639 = vld [vmem:[%s1635 + $0x18] sm:$0xff]
  %s1640 = scalar_lea.vmem %s5, 3
  %v1641 = vld [vmem:[%s1640] sm:$0x1]
  %v1643 = vperm.slane %v1641, 0
  %v1646 = vsel %vm676, %v1619, 0
  %v1649 = vsel %vm676, %v1620, 0
  %v1652 = vsel %vm676, %v1621, 0
  %v1655 = vsel %vm676, %v1622, 0
  %v1658 = vsel %vm676, %v1623, 0
  %v1661 = vsel %vm676, %v1624, 0
  %v1664 = vsel %vm676, %v1625, 0
  %v1667 = vsel %vm676, %v1626, 0
  %v1670 = vsel %vm676, %v1627, 0
  %v1673 = vsel %vm676, %v1628, 0
  %v1676 = vsel %vm676, %v1629, 0
  %v1679 = vsel %vm676, %v1630, 0
  %v1682 = vsel %vm676, %v1631, 0
  %v1685 = vsel %vm676, %v1632, 0
  %v1688 = vsel %vm676, %v1633, 0
  %v1691 = vsel %vm676, %v1634, 0
  %1693 = vmatpush.msra.mxu0 0.0
  %1694 = vmatpush.msra.mxu0 0.0
  %1695 = vmatpush.msra.mxu0 0.0
  %1696 = vmatpush.msra.mxu0 0.0
  %1697 = vmatpush.msra.mxu0 0.0
  %1698 = vmatpush.msra.mxu0 0.0
  %1699 = vmatpush.msra.mxu0 0.0
  %1700 = vmatpush.msra.mxu0 0.0
  %1701 = vmatpush.msra.mxu0 0.0
  %1702 = vmatpush.msra.mxu0 0.0
  %1703 = vmatpush.msra.mxu0 0.0
  %1704 = vmatpush.msra.mxu0 0.0
  %1705 = vmatpush.msra.mxu0 %v1639
  %1706 = vmatpush.msra.mxu0 %v1638
  %1707 = vmatpush.msra.mxu0 %v1637
  %1708 = vmatpush.msra.mxu0 %v1636
  %1709 = vmatmul.f32.gmra.mxu0 %v1646
  %v1710 = vpop.f32.mrf.mxu0
  %v1711 = vadd.f32 %v1643, %v1710
  %1712 = vmatmul.f32.gmra.mxu0 %v1649
  %v1713 = vpop.f32.mrf.mxu0
  %v1714 = vadd.f32 %v1643, %v1713
  %1715 = vmatmul.f32.gmra.mxu0 %v1652
  %v1716 = vpop.f32.mrf.mxu0
  %v1717 = vadd.f32 %v1643, %v1716
  %1718 = vmatmul.f32.gmra.mxu0 %v1655
  %v1719 = vpop.f32.mrf.mxu0
  %v1720 = vadd.f32 %v1643, %v1719
  %1721 = vmatmul.f32.gmra.mxu0 %v1658
  %v1722 = vpop.f32.mrf.mxu0
  %v1723 = vadd.f32 %v1643, %v1722
  %1724 = vmatmul.f32.gmra.mxu0 %v1661
  %v1725 = vpop.f32.mrf.mxu0
  %v1726 = vadd.f32 %v1643, %v1725
  %1727 = vmatmul.f32.gmra.mxu0 %v1664
  %v1728 = vpop.f32.mrf.mxu0
  %v1729 = vadd.f32 %v1643, %v1728
  %1730 = vmatmul.f32.gmra.mxu0 %v1667
  %v1731 = vpop.f32.mrf.mxu0
  %v1732 = vadd.f32 %v1643, %v1731
  %1733 = vmatmul.f32.gmra.mxu0 %v1670
  %v1734 = vpop.f32.mrf.mxu0
  %v1735 = vadd.f32 %v1643, %v1734
  %1736 = vmatmul.f32.gmra.mxu0 %v1673
  %v1737 = vpop.f32.mrf.mxu0
  %v1738 = vadd.f32 %v1643, %v1737
  %1739 = vmatmul.f32.gmra.mxu0 %v1676
  %v1740 = vpop.f32.mrf.mxu0
  %v1741 = vadd.f32 %v1643, %v1740
  %1742 = vmatmul.f32.gmra.mxu0 %v1679
  %v1743 = vpop.f32.mrf.mxu0
  %v1744 = vadd.f32 %v1643, %v1743
  %1745 = vmatmul.f32.gmra.mxu0 %v1682
  %v1746 = vpop.f32.mrf.mxu0
  %v1747 = vadd.f32 %v1643, %v1746
  %1748 = vmatmul.f32.gmra.mxu0 %v1685
  %v1749 = vpop.f32.mrf.mxu0
  %v1750 = vadd.f32 %v1643, %v1749
  %1751 = vmatmul.f32.gmra.mxu0 %v1688
  %v1752 = vpop.f32.mrf.mxu0
  %v1753 = vadd.f32 %v1643, %v1752
  %1754 = vmatmul.f32.gmra.mxu0 %v1691
  %v1755 = vpop.f32.mrf.mxu0
  %v1756 = vadd.f32 %v1643, %v1755
  %1757 = vdwg.mxu0
  %s1758 = scalar_lea.vmem %s3, 768
  %v1759 = vld [vmem:[%s1758] sm:$0xff]
  %v1760 = vld [vmem:[%s1758 + $0x8] sm:$0xff]
  %v1761 = vld [vmem:[%s1758 + $0x10] sm:$0xff]
  %v1762 = vld [vmem:[%s1758 + $0x18] sm:$0xff]
  %v1763 = vld [vmem:[%s1758 + $0x20] sm:$0xff]
  %v1764 = vld [vmem:[%s1758 + $0x28] sm:$0xff]
  %v1765 = vld [vmem:[%s1758 + $0x30] sm:$0xff]
  %v1766 = vld [vmem:[%s1758 + $0x38] sm:$0xff]
  %v1767 = vld [vmem:[%s1758 + $0x40] sm:$0xff]
  %v1768 = vld [vmem:[%s1758 + $0x48] sm:$0xff]
  %v1769 = vld [vmem:[%s1758 + $0x50] sm:$0xff]
  %v1770 = vld [vmem:[%s1758 + $0x58] sm:$0xff]
  %v1771 = vld [vmem:[%s1758 + $0x60] sm:$0xff]
  %v1772 = vld [vmem:[%s1758 + $0x68] sm:$0xff]
  %v1773 = vld [vmem:[%s1758 + $0x70] sm:$0xff]
  %v1774 = vld [vmem:[%s1758 + $0x78] sm:$0xff]
  %s1775 = scalar_lea.vmem %s3, 896
  %v1776 = vld [vmem:[%s1775] sm:$0xff]
  %v1777 = vld [vmem:[%s1775 + $0x8] sm:$0xff]
  %v1778 = vld [vmem:[%s1775 + $0x10] sm:$0xff]
  %v1779 = vld [vmem:[%s1775 + $0x18] sm:$0xff]
  %v1780 = vld [vmem:[%s1775 + $0x20] sm:$0xff]
  %v1781 = vld [vmem:[%s1775 + $0x28] sm:$0xff]
  %v1782 = vld [vmem:[%s1775 + $0x30] sm:$0xff]
  %v1783 = vld [vmem:[%s1775 + $0x38] sm:$0xff]
  %v1784 = vld [vmem:[%s1775 + $0x40] sm:$0xff]
  %v1785 = vld [vmem:[%s1775 + $0x48] sm:$0xff]
  %v1786 = vld [vmem:[%s1775 + $0x50] sm:$0xff]
  %v1787 = vld [vmem:[%s1775 + $0x58] sm:$0xff]
  %v1788 = vld [vmem:[%s1775 + $0x60] sm:$0xff]
  %v1789 = vld [vmem:[%s1775 + $0x68] sm:$0xff]
  %v1790 = vld [vmem:[%s1775 + $0x70] sm:$0xff]
  %v1791 = vld [vmem:[%s1775 + $0x78] sm:$0xff]
  %s1792 = scalar_lea.vmem %s3, 1024
  %v1793 = vld [vmem:[%s1792] sm:$0xff]
  %v1794 = vld [vmem:[%s1792 + $0x8] sm:$0xff]
  %v1795 = vld [vmem:[%s1792 + $0x10] sm:$0xff]
  %v1796 = vld [vmem:[%s1792 + $0x18] sm:$0xff]
  %v1797 = vld [vmem:[%s1792 + $0x20] sm:$0xff]
  %v1798 = vld [vmem:[%s1792 + $0x28] sm:$0xff]
  %v1799 = vld [vmem:[%s1792 + $0x30] sm:$0xff]
  %v1800 = vld [vmem:[%s1792 + $0x38] sm:$0xff]
  %v1801 = vld [vmem:[%s1792 + $0x40] sm:$0xff]
  %v1802 = vld [vmem:[%s1792 + $0x48] sm:$0xff]
  %v1803 = vld [vmem:[%s1792 + $0x50] sm:$0xff]
  %v1804 = vld [vmem:[%s1792 + $0x58] sm:$0xff]
  %v1805 = vld [vmem:[%s1792 + $0x60] sm:$0xff]
  %v1806 = vld [vmem:[%s1792 + $0x68] sm:$0xff]
  %v1807 = vld [vmem:[%s1792 + $0x70] sm:$0xff]
  %v1808 = vld [vmem:[%s1792 + $0x78] sm:$0xff]
  %s1809 = scalar_lea.vmem %s2, 256
  %v1810 = vld [vmem:[%s1809] sm:$0xff]
  %v1811 = vld [vmem:[%s1809 + $0x8] sm:$0xff]
  %v1812 = vld [vmem:[%s1809 + $0x10] sm:$0xff]
  %v1813 = vld [vmem:[%s1809 + $0x18] sm:$0xff]
  %v1814 = vld [vmem:[%s1809 + $0x20] sm:$0xff]
  %v1815 = vld [vmem:[%s1809 + $0x28] sm:$0xff]
  %v1816 = vld [vmem:[%s1809 + $0x30] sm:$0xff]
  %v1817 = vld [vmem:[%s1809 + $0x38] sm:$0xff]
  %v1818 = vld [vmem:[%s1809 + $0x40] sm:$0xff]
  %v1819 = vld [vmem:[%s1809 + $0x48] sm:$0xff]
  %v1820 = vld [vmem:[%s1809 + $0x50] sm:$0xff]
  %v1821 = vld [vmem:[%s1809 + $0x58] sm:$0xff]
  %v1822 = vld [vmem:[%s1809 + $0x60] sm:$0xff]
  %v1823 = vld [vmem:[%s1809 + $0x68] sm:$0xff]
  %v1824 = vld [vmem:[%s1809 + $0x70] sm:$0xff]
  %v1825 = vld [vmem:[%s1809 + $0x78] sm:$0xff]
  %v1826 = vpack.c.bf16 %v1714, %v1711
  %v1827 = vpack.c.bf16 %v1720, %v1717
  %v1828 = vpack.c.bf16 %v1726, %v1723
  %v1829 = vpack.c.bf16 %v1732, %v1729
  %v1830 = vpack.c.bf16 %v1738, %v1735
  %v1831 = vpack.c.bf16 %v1744, %v1741
  %v1832 = vpack.c.bf16 %v1750, %v1747
  %v1833 = vpack.c.bf16 %v1756, %v1753
  %1834 = vmatpush.bf16.msra.mxu0 %v1833
  %1835 = vmatpush.bf16.msra.mxu0 %v1832
  %1836 = vmatpush.bf16.msra.mxu0 %v1831
  %1837 = vmatpush.bf16.msra.mxu0 %v1830
  %1838 = vmatpush.bf16.msra.mxu0 %v1829
  %1839 = vmatpush.bf16.msra.mxu0 %v1828
  %1840 = vmatpush.bf16.msra.mxu0 %v1827
  %1841 = vmatpush.bf16.msra.mxu0 %v1826
  %1842 = vmatmul.bf16.gmra.mxu0 %v209
  %v1843 = vpop.f32.mrf.mxu0
  %v1844 = vadd.f32 0.0, %v1843
  %v1845 = vpop.f32.mrf.mxu0
  %v1846 = vadd.f32 0.0, %v1845
  %1847 = vmatmul.bf16.gmra.mxu0 %v210
  %v1848 = vpop.f32.mrf.mxu0
  %v1849 = vadd.f32 0.0, %v1848
  %v1850 = vpop.f32.mrf.mxu0
  %v1851 = vadd.f32 0.0, %v1850
  %1852 = vmatmul.bf16.gmra.mxu0 %v211
  %v1853 = vpop.f32.mrf.mxu0
  %v1854 = vadd.f32 0.0, %v1853
  %v1855 = vpop.f32.mrf.mxu0
  %v1856 = vadd.f32 0.0, %v1855
  %1857 = vmatmul.bf16.gmra.mxu0 %v212
  %v1858 = vpop.f32.mrf.mxu0
  %v1859 = vadd.f32 0.0, %v1858
  %v1860 = vpop.f32.mrf.mxu0
  %v1861 = vadd.f32 0.0, %v1860
  %1862 = vmatmul.bf16.gmra.mxu0 %v213
  %v1863 = vpop.f32.mrf.mxu0
  %v1864 = vadd.f32 0.0, %v1863
  %v1865 = vpop.f32.mrf.mxu0
  %v1866 = vadd.f32 0.0, %v1865
  %1867 = vmatmul.bf16.gmra.mxu0 %v214
  %v1868 = vpop.f32.mrf.mxu0
  %v1869 = vadd.f32 0.0, %v1868
  %v1870 = vpop.f32.mrf.mxu0
  %v1871 = vadd.f32 0.0, %v1870
  %1872 = vmatmul.bf16.gmra.mxu0 %v215
  %v1873 = vpop.f32.mrf.mxu0
  %v1874 = vadd.f32 0.0, %v1873
  %v1875 = vpop.f32.mrf.mxu0
  %v1876 = vadd.f32 0.0, %v1875
  %1877 = vmatmul.bf16.gmra.mxu0 %v216
  %v1878 = vpop.f32.mrf.mxu0
  %v1879 = vadd.f32 0.0, %v1878
  %v1880 = vpop.f32.mrf.mxu0
  %v1881 = vadd.f32 0.0, %v1880
  %1882 = vmatmul.bf16.gmra.mxu0 %v217
  %v1883 = vpop.f32.mrf.mxu0
  %v1884 = vadd.f32 0.0, %v1883
  %v1885 = vpop.f32.mrf.mxu0
  %v1886 = vadd.f32 0.0, %v1885
  %1887 = vmatmul.bf16.gmra.mxu0 %v218
  %v1888 = vpop.f32.mrf.mxu0
  %v1889 = vadd.f32 0.0, %v1888
  %v1890 = vpop.f32.mrf.mxu0
  %v1891 = vadd.f32 0.0, %v1890
  %1892 = vmatmul.bf16.gmra.mxu0 %v219
  %v1893 = vpop.f32.mrf.mxu0
  %v1894 = vadd.f32 0.0, %v1893
  %v1895 = vpop.f32.mrf.mxu0
  %v1896 = vadd.f32 0.0, %v1895
  %1897 = vmatmul.bf16.gmra.mxu0 %v220
  %v1898 = vpop.f32.mrf.mxu0
  %v1899 = vadd.f32 0.0, %v1898
  %v1900 = vpop.f32.mrf.mxu0
  %v1901 = vadd.f32 0.0, %v1900
  %1902 = vmatmul.bf16.gmra.mxu0 %v221
  %v1903 = vpop.f32.mrf.mxu0
  %v1904 = vadd.f32 0.0, %v1903
  %v1905 = vpop.f32.mrf.mxu0
  %v1906 = vadd.f32 0.0, %v1905
  %1907 = vmatmul.bf16.gmra.mxu0 %v222
  %v1908 = vpop.f32.mrf.mxu0
  %v1909 = vadd.f32 0.0, %v1908
  %v1910 = vpop.f32.mrf.mxu0
  %v1911 = vadd.f32 0.0, %v1910
  %1912 = vmatmul.bf16.gmra.mxu0 %v223
  %v1913 = vpop.f32.mrf.mxu0
  %v1914 = vadd.f32 0.0, %v1913
  %v1915 = vpop.f32.mrf.mxu0
  %v1916 = vadd.f32 0.0, %v1915
  %1917 = vmatmul.bf16.gmra.mxu0 %v224
  %v1918 = vpop.f32.mrf.mxu0
  %v1919 = vadd.f32 0.0, %v1918
  %v1920 = vpop.f32.mrf.mxu0
  %v1921 = vadd.f32 0.0, %v1920
  %1922 = vdwg.mxu0
  %v1923 = vmul.f32 %v1844, %v1759
  %v1924 = vmul.f32 %v1846, %v1760
  %v1925 = vmul.f32 %v1849, %v1761
  %v1926 = vmul.f32 %v1851, %v1762
  %v1927 = vmul.f32 %v1854, %v1763
  %v1928 = vmul.f32 %v1856, %v1764
  %v1929 = vmul.f32 %v1859, %v1765
  %v1930 = vmul.f32 %v1861, %v1766
  %v1931 = vmul.f32 %v1864, %v1767
  %v1932 = vmul.f32 %v1866, %v1768
  %v1933 = vmul.f32 %v1869, %v1769
  %v1934 = vmul.f32 %v1871, %v1770
  %v1935 = vmul.f32 %v1874, %v1771
  %v1936 = vmul.f32 %v1876, %v1772
  %v1937 = vmul.f32 %v1879, %v1773
  %v1938 = vmul.f32 %v1881, %v1774
  %v1939 = vmul.f32 %v1884, %v1776
  %v1940 = vmul.f32 %v1886, %v1777
  %v1941 = vmul.f32 %v1889, %v1778
  %v1942 = vmul.f32 %v1891, %v1779
  %v1943 = vmul.f32 %v1894, %v1780
  %v1944 = vmul.f32 %v1896, %v1781
  %v1945 = vmul.f32 %v1899, %v1782
  %v1946 = vmul.f32 %v1901, %v1783
  %v1947 = vmul.f32 %v1904, %v1784
  %v1948 = vmul.f32 %v1906, %v1785
  %v1949 = vmul.f32 %v1909, %v1786
  %v1950 = vmul.f32 %v1911, %v1787
  %v1951 = vmul.f32 %v1914, %v1788
  %v1952 = vmul.f32 %v1916, %v1789
  %v1953 = vmul.f32 %v1919, %v1790
  %v1954 = vmul.f32 %v1921, %v1791
  %v1955 = vsub.f32 %v1923, %v1939
  %v1956 = vsub.f32 %v1924, %v1940
  %v1957 = vsub.f32 %v1925, %v1941
  %v1958 = vsub.f32 %v1926, %v1942
  %v1959 = vsub.f32 %v1927, %v1943
  %v1960 = vsub.f32 %v1928, %v1944
  %v1961 = vsub.f32 %v1929, %v1945
  %v1962 = vsub.f32 %v1930, %v1946
  %v1963 = vsub.f32 %v1931, %v1947
  %v1964 = vsub.f32 %v1932, %v1948
  %v1965 = vsub.f32 %v1933, %v1949
  %v1966 = vsub.f32 %v1934, %v1950
  %v1967 = vsub.f32 %v1935, %v1951
  %v1968 = vsub.f32 %v1936, %v1952
  %v1969 = vsub.f32 %v1937, %v1953
  %v1970 = vsub.f32 %v1938, %v1954
  %v1971 = vmul.f32 %v1844, %v1776
  %v1972 = vmul.f32 %v1846, %v1777
  %v1973 = vmul.f32 %v1849, %v1778
  %v1974 = vmul.f32 %v1851, %v1779
  %v1975 = vmul.f32 %v1854, %v1780
  %v1976 = vmul.f32 %v1856, %v1781
  %v1977 = vmul.f32 %v1859, %v1782
  %v1978 = vmul.f32 %v1861, %v1783
  %v1979 = vmul.f32 %v1864, %v1784
  %v1980 = vmul.f32 %v1866, %v1785
  %v1981 = vmul.f32 %v1869, %v1786
  %v1982 = vmul.f32 %v1871, %v1787
  %v1983 = vmul.f32 %v1874, %v1788
  %v1984 = vmul.f32 %v1876, %v1789
  %v1985 = vmul.f32 %v1879, %v1790
  %v1986 = vmul.f32 %v1881, %v1791
  %v1987 = vmul.f32 %v1884, %v1759
  %v1988 = vmul.f32 %v1886, %v1760
  %v1989 = vmul.f32 %v1889, %v1761
  %v1990 = vmul.f32 %v1891, %v1762
  %v1991 = vmul.f32 %v1894, %v1763
  %v1992 = vmul.f32 %v1896, %v1764
  %v1993 = vmul.f32 %v1899, %v1765
  %v1994 = vmul.f32 %v1901, %v1766
  %v1995 = vmul.f32 %v1904, %v1767
  %v1996 = vmul.f32 %v1906, %v1768
  %v1997 = vmul.f32 %v1909, %v1769
  %v1998 = vmul.f32 %v1911, %v1770
  %v1999 = vmul.f32 %v1914, %v1771
  %v2000 = vmul.f32 %v1916, %v1772
  %v2001 = vmul.f32 %v1919, %v1773
  %v2002 = vmul.f32 %v1921, %v1774
  %v2003 = vadd.f32 %v1971, %v1987
  %v2004 = vadd.f32 %v1972, %v1988
  %v2005 = vadd.f32 %v1973, %v1989
  %v2006 = vadd.f32 %v1974, %v1990
  %v2007 = vadd.f32 %v1975, %v1991
  %v2008 = vadd.f32 %v1976, %v1992
  %v2009 = vadd.f32 %v1977, %v1993
  %v2010 = vadd.f32 %v1978, %v1994
  %v2011 = vadd.f32 %v1979, %v1995
  %v2012 = vadd.f32 %v1980, %v1996
  %v2013 = vadd.f32 %v1981, %v1997
  %v2014 = vadd.f32 %v1982, %v1998
  %v2015 = vadd.f32 %v1983, %v1999
  %v2016 = vadd.f32 %v1984, %v2000
  %v2017 = vadd.f32 %v1985, %v2001
  %v2018 = vadd.f32 %v1986, %v2002
  %v2019 = vpack.c.bf16 %v1956, %v1955
  %v2020 = vpack.c.bf16 %v1958, %v1957
  %v2021 = vpack.c.bf16 %v1960, %v1959
  %v2022 = vpack.c.bf16 %v1962, %v1961
  %v2023 = vpack.c.bf16 %v1964, %v1963
  %v2024 = vpack.c.bf16 %v1966, %v1965
  %v2025 = vpack.c.bf16 %v1968, %v1967
  %v2026 = vpack.c.bf16 %v1970, %v1969
  %v2027 = vpack.c.bf16 %v2004, %v2003
  %v2028 = vpack.c.bf16 %v2006, %v2005
  %v2029 = vpack.c.bf16 %v2008, %v2007
  %v2030 = vpack.c.bf16 %v2010, %v2009
  %v2031 = vpack.c.bf16 %v2012, %v2011
  %v2032 = vpack.c.bf16 %v2014, %v2013
  %v2033 = vpack.c.bf16 %v2016, %v2015
  %v2034 = vpack.c.bf16 %v2018, %v2017
  %v2051 = vunpack.c.l.b16 %v1810
  %v2052 = vunpack.c.h.b16 %v1810
  %v2053 = vunpack.c.l.b16 %v1811
  %v2054 = vunpack.c.h.b16 %v1811
  %v2055 = vunpack.c.l.b16 %v1812
  %v2056 = vunpack.c.h.b16 %v1812
  %v2057 = vunpack.c.l.b16 %v1813
  %v2058 = vunpack.c.h.b16 %v1813
  %v2059 = vunpack.c.l.b16 %v1814
  %v2060 = vunpack.c.h.b16 %v1814
  %v2061 = vunpack.c.l.b16 %v1815
  %v2062 = vunpack.c.h.b16 %v1815
  %v2063 = vunpack.c.l.b16 %v1816
  %v2064 = vunpack.c.h.b16 %v1816
  %v2065 = vunpack.c.l.b16 %v1817
  %v2066 = vunpack.c.h.b16 %v1817
  %v2067 = vunpack.c.l.b16 %v1818
  %v2068 = vunpack.c.h.b16 %v1818
  %v2069 = vunpack.c.l.b16 %v1819
  %v2070 = vunpack.c.h.b16 %v1819
  %v2071 = vunpack.c.l.b16 %v1820
  %v2072 = vunpack.c.h.b16 %v1820
  %v2073 = vunpack.c.l.b16 %v1821
  %v2074 = vunpack.c.h.b16 %v1821
  %v2075 = vunpack.c.l.b16 %v1822
  %v2076 = vunpack.c.h.b16 %v1822
  %v2077 = vunpack.c.l.b16 %v1823
  %v2078 = vunpack.c.h.b16 %v1823
  %v2079 = vunpack.c.l.b16 %v1824
  %v2080 = vunpack.c.h.b16 %v1824
  %v2081 = vunpack.c.l.b16 %v1825
  %v2082 = vunpack.c.h.b16 %v1825
  %v2083 = vpack.c.b16 %v2053, %v2051
  %v2084 = vpack.c.b16 %v2054, %v2052
  %v2085 = vpack.c.b16 %v2057, %v2055
  %v2086 = vpack.c.b16 %v2058, %v2056
  %v2087 = vpack.c.b16 %v2061, %v2059
  %v2088 = vpack.c.b16 %v2062, %v2060
  %v2089 = vpack.c.b16 %v2065, %v2063
  %v2090 = vpack.c.b16 %v2066, %v2064
  %v2091 = vpack.c.b16 %v2069, %v2067
  %v2092 = vpack.c.b16 %v2070, %v2068
  %v2093 = vpack.c.b16 %v2073, %v2071
  %v2094 = vpack.c.b16 %v2074, %v2072
  %v2095 = vpack.c.b16 %v2077, %v2075
  %v2096 = vpack.c.b16 %v2078, %v2076
  %v2097 = vpack.c.b16 %v2081, %v2079
  %v2098 = vpack.c.b16 %v2082, %v2080
  %2115 = vmatpush.bf16.msra.mxu0 %v2026
  %2116 = vmatpush.bf16.msra.mxu0 %v2025
  %2117 = vmatpush.bf16.msra.mxu0 %v2024
  %2118 = vmatpush.bf16.msra.mxu0 %v2023
  %2119 = vmatpush.bf16.msra.mxu0 %v2022
  %2120 = vmatpush.bf16.msra.mxu0 %v2021
  %2121 = vmatpush.bf16.msra.mxu0 %v2020
  %2122 = vmatpush.bf16.msra.mxu0 %v2019
  %2123 = vmatmul.bf16.gmra.mxu0 %v2083
  %v2124 = vpop.f32.mrf.mxu0
  %v2125 = vadd.f32 %v1793, %v2124
  %v2126 = vpop.f32.mrf.mxu0
  %v2127 = vadd.f32 %v1794, %v2126
  %2128 = vmatmul.bf16.gmra.mxu0 %v2085
  %v2129 = vpop.f32.mrf.mxu0
  %v2130 = vadd.f32 %v1795, %v2129
  %v2131 = vpop.f32.mrf.mxu0
  %v2132 = vadd.f32 %v1796, %v2131
  %2133 = vmatmul.bf16.gmra.mxu0 %v2087
  %v2134 = vpop.f32.mrf.mxu0
  %v2135 = vadd.f32 %v1797, %v2134
  %v2136 = vpop.f32.mrf.mxu0
  %v2137 = vadd.f32 %v1798, %v2136
  %2138 = vmatmul.bf16.gmra.mxu0 %v2089
  %v2139 = vpop.f32.mrf.mxu0
  %v2140 = vadd.f32 %v1799, %v2139
  %v2141 = vpop.f32.mrf.mxu0
  %v2142 = vadd.f32 %v1800, %v2141
  %2143 = vmatmul.bf16.gmra.mxu0 %v2091
  %v2144 = vpop.f32.mrf.mxu0
  %v2145 = vadd.f32 %v1801, %v2144
  %v2146 = vpop.f32.mrf.mxu0
  %v2147 = vadd.f32 %v1802, %v2146
  %2148 = vmatmul.bf16.gmra.mxu0 %v2093
  %v2149 = vpop.f32.mrf.mxu0
  %v2150 = vadd.f32 %v1803, %v2149
  %v2151 = vpop.f32.mrf.mxu0
  %v2152 = vadd.f32 %v1804, %v2151
  %2153 = vmatmul.bf16.gmra.mxu0 %v2095
  %v2154 = vpop.f32.mrf.mxu0
  %v2155 = vadd.f32 %v1805, %v2154
  %v2156 = vpop.f32.mrf.mxu0
  %v2157 = vadd.f32 %v1806, %v2156
  %2158 = vmatmul.bf16.gmra.mxu0 %v2097
  %v2159 = vpop.f32.mrf.mxu0
  %v2160 = vadd.f32 %v1807, %v2159
  %v2161 = vpop.f32.mrf.mxu0
  %v2162 = vadd.f32 %v1808, %v2161
  %2163 = vdwg.mxu0
  %2164 = vmatpush.bf16.msra.mxu0 %v2034
  %2165 = vmatpush.bf16.msra.mxu0 %v2033
  %2166 = vmatpush.bf16.msra.mxu0 %v2032
  %2167 = vmatpush.bf16.msra.mxu0 %v2031
  %2168 = vmatpush.bf16.msra.mxu0 %v2030
  %2169 = vmatpush.bf16.msra.mxu0 %v2029
  %2170 = vmatpush.bf16.msra.mxu0 %v2028
  %2171 = vmatpush.bf16.msra.mxu0 %v2027
  %2172 = vmatmul.bf16.gmra.mxu0 %v2084
  %v2173 = vpop.f32.mrf.mxu0
  %v2174 = vadd.f32 %v2125, %v2173
  %v2175 = vpop.f32.mrf.mxu0
  %v2176 = vadd.f32 %v2127, %v2175
  %2177 = vmatmul.bf16.gmra.mxu0 %v2086
  %v2178 = vpop.f32.mrf.mxu0
  %v2179 = vadd.f32 %v2130, %v2178
  %v2180 = vpop.f32.mrf.mxu0
  %v2181 = vadd.f32 %v2132, %v2180
  %2182 = vmatmul.bf16.gmra.mxu0 %v2088
  %v2183 = vpop.f32.mrf.mxu0
  %v2184 = vadd.f32 %v2135, %v2183
  %v2185 = vpop.f32.mrf.mxu0
  %v2186 = vadd.f32 %v2137, %v2185
  %2187 = vmatmul.bf16.gmra.mxu0 %v2090
  %v2188 = vpop.f32.mrf.mxu0
  %v2189 = vadd.f32 %v2140, %v2188
  %v2190 = vpop.f32.mrf.mxu0
  %v2191 = vadd.f32 %v2142, %v2190
  %2192 = vmatmul.bf16.gmra.mxu0 %v2092
  %v2193 = vpop.f32.mrf.mxu0
  %v2194 = vadd.f32 %v2145, %v2193
  %v2195 = vpop.f32.mrf.mxu0
  %v2196 = vadd.f32 %v2147, %v2195
  %2197 = vmatmul.bf16.gmra.mxu0 %v2094
  %v2198 = vpop.f32.mrf.mxu0
  %v2199 = vadd.f32 %v2150, %v2198
  %v2200 = vpop.f32.mrf.mxu0
  %v2201 = vadd.f32 %v2152, %v2200
  %2202 = vmatmul.bf16.gmra.mxu0 %v2096
  %v2203 = vpop.f32.mrf.mxu0
  %v2204 = vadd.f32 %v2155, %v2203
  %v2205 = vpop.f32.mrf.mxu0
  %v2206 = vadd.f32 %v2157, %v2205
  %2207 = vmatmul.bf16.gmra.mxu0 %v2098
  %v2208 = vpop.f32.mrf.mxu0
  %v2209 = vadd.f32 %v2160, %v2208
  %v2210 = vpop.f32.mrf.mxu0
  %v2211 = vadd.f32 %v2162, %v2210
  %2212 = vdwg.mxu0
  %vm2213 = vcmp.gt.f32.partialorder %v2174, 0.0
  %vm2214 = vcmp.gt.f32.partialorder %v2176, 0.0
  %vm2215 = vcmp.gt.f32.partialorder %v2179, 0.0
  %vm2216 = vcmp.gt.f32.partialorder %v2181, 0.0
  %vm2217 = vcmp.gt.f32.partialorder %v2184, 0.0
  %vm2218 = vcmp.gt.f32.partialorder %v2186, 0.0
  %vm2219 = vcmp.gt.f32.partialorder %v2189, 0.0
  %vm2220 = vcmp.gt.f32.partialorder %v2191, 0.0
  %vm2221 = vcmp.gt.f32.partialorder %v2194, 0.0
  %vm2222 = vcmp.gt.f32.partialorder %v2196, 0.0
  %vm2223 = vcmp.gt.f32.partialorder %v2199, 0.0
  %vm2224 = vcmp.gt.f32.partialorder %v2201, 0.0
  %vm2225 = vcmp.gt.f32.partialorder %v2204, 0.0
  %vm2226 = vcmp.gt.f32.partialorder %v2206, 0.0
  %vm2227 = vcmp.gt.f32.partialorder %v2209, 0.0
  %vm2228 = vcmp.gt.f32.partialorder %v2211, 0.0
  %v2229 = vmul.f32 %v2174, 0.2
  %v2230 = vmul.f32 %v2176, 0.2
  %v2231 = vmul.f32 %v2179, 0.2
  %v2232 = vmul.f32 %v2181, 0.2
  %v2233 = vmul.f32 %v2184, 0.2
  %v2234 = vmul.f32 %v2186, 0.2
  %v2235 = vmul.f32 %v2189, 0.2
  %v2236 = vmul.f32 %v2191, 0.2
  %v2237 = vmul.f32 %v2194, 0.2
  %v2238 = vmul.f32 %v2196, 0.2
  %v2239 = vmul.f32 %v2199, 0.2
  %v2240 = vmul.f32 %v2201, 0.2
  %v2241 = vmul.f32 %v2204, 0.2
  %v2242 = vmul.f32 %v2206, 0.2
  %v2243 = vmul.f32 %v2209, 0.2
  %v2244 = vmul.f32 %v2211, 0.2
  %v2245 = vsel %vm2213, %v2174, %v2229
  %v2246 = vsel %vm2214, %v2176, %v2230
  %v2247 = vsel %vm2215, %v2179, %v2231
  %v2248 = vsel %vm2216, %v2181, %v2232
  %v2249 = vsel %vm2217, %v2184, %v2233
  %v2250 = vsel %vm2218, %v2186, %v2234
  %v2251 = vsel %vm2219, %v2189, %v2235
  %v2252 = vsel %vm2220, %v2191, %v2236
  %v2253 = vsel %vm2221, %v2194, %v2237
  %v2254 = vsel %vm2222, %v2196, %v2238
  %v2255 = vsel %vm2223, %v2199, %v2239
  %v2256 = vsel %vm2224, %v2201, %v2240
  %v2257 = vsel %vm2225, %v2204, %v2241
  %v2258 = vsel %vm2226, %v2206, %v2242
  %v2259 = vsel %vm2227, %v2209, %v2243
  %v2260 = vsel %vm2228, %v2211, %v2244
  %s2261 = scalar_lea.vmem %s4, 128
  %v2262 = vld [vmem:[%s2261] sm:$0xff]
  %v2263 = vld [vmem:[%s2261 + $0x8] sm:$0xff]
  %v2264 = vld [vmem:[%s2261 + $0x10] sm:$0xff]
  %v2265 = vld [vmem:[%s2261 + $0x18] sm:$0xff]
  %s2266 = scalar_lea.vmem %s5, 4
  %v2267 = vld [vmem:[%s2266] sm:$0x1]
  %v2269 = vperm.slane %v2267, 0
  %v2272 = vsel %vm676, %v2245, 0
  %v2275 = vsel %vm676, %v2246, 0
  %v2278 = vsel %vm676, %v2247, 0
  %v2281 = vsel %vm676, %v2248, 0
  %v2284 = vsel %vm676, %v2249, 0
  %v2287 = vsel %vm676, %v2250, 0
  %v2290 = vsel %vm676, %v2251, 0
  %v2293 = vsel %vm676, %v2252, 0
  %v2296 = vsel %vm676, %v2253, 0
  %v2299 = vsel %vm676, %v2254, 0
  %v2302 = vsel %vm676, %v2255, 0
  %v2305 = vsel %vm676, %v2256, 0
  %v2308 = vsel %vm676, %v2257, 0
  %v2311 = vsel %vm676, %v2258, 0
  %v2314 = vsel %vm676, %v2259, 0
  %v2317 = vsel %vm676, %v2260, 0
  %2319 = vmatpush.msra.mxu0 0.0
  %2320 = vmatpush.msra.mxu0 0.0
  %2321 = vmatpush.msra.mxu0 0.0
  %2322 = vmatpush.msra.mxu0 0.0
  %2323 = vmatpush.msra.mxu0 0.0
  %2324 = vmatpush.msra.mxu0 0.0
  %2325 = vmatpush.msra.mxu0 0.0
  %2326 = vmatpush.msra.mxu0 0.0
  %2327 = vmatpush.msra.mxu0 0.0
  %2328 = vmatpush.msra.mxu0 0.0
  %2329 = vmatpush.msra.mxu0 0.0
  %2330 = vmatpush.msra.mxu0 0.0
  %2331 = vmatpush.msra.mxu0 %v2265
  %2332 = vmatpush.msra.mxu0 %v2264
  %2333 = vmatpush.msra.mxu0 %v2263
  %2334 = vmatpush.msra.mxu0 %v2262
  %2335 = vmatmul.f32.gmra.mxu0 %v2272
  %v2336 = vpop.f32.mrf.mxu0
  %v2337 = vadd.f32 %v2269, %v2336
  %2338 = vmatmul.f32.gmra.mxu0 %v2275
  %v2339 = vpop.f32.mrf.mxu0
  %v2340 = vadd.f32 %v2269, %v2339
  %2341 = vmatmul.f32.gmra.mxu0 %v2278
  %v2342 = vpop.f32.mrf.mxu0
  %v2343 = vadd.f32 %v2269, %v2342
  %2344 = vmatmul.f32.gmra.mxu0 %v2281
  %v2345 = vpop.f32.mrf.mxu0
  %v2346 = vadd.f32 %v2269, %v2345
  %2347 = vmatmul.f32.gmra.mxu0 %v2284
  %v2348 = vpop.f32.mrf.mxu0
  %v2349 = vadd.f32 %v2269, %v2348
  %2350 = vmatmul.f32.gmra.mxu0 %v2287
  %v2351 = vpop.f32.mrf.mxu0
  %v2352 = vadd.f32 %v2269, %v2351
  %2353 = vmatmul.f32.gmra.mxu0 %v2290
  %v2354 = vpop.f32.mrf.mxu0
  %v2355 = vadd.f32 %v2269, %v2354
  %2356 = vmatmul.f32.gmra.mxu0 %v2293
  %v2357 = vpop.f32.mrf.mxu0
  %v2358 = vadd.f32 %v2269, %v2357
  %2359 = vmatmul.f32.gmra.mxu0 %v2296
  %v2360 = vpop.f32.mrf.mxu0
  %v2361 = vadd.f32 %v2269, %v2360
  %2362 = vmatmul.f32.gmra.mxu0 %v2299
  %v2363 = vpop.f32.mrf.mxu0
  %v2364 = vadd.f32 %v2269, %v2363
  %2365 = vmatmul.f32.gmra.mxu0 %v2302
  %v2366 = vpop.f32.mrf.mxu0
  %v2367 = vadd.f32 %v2269, %v2366
  %2368 = vmatmul.f32.gmra.mxu0 %v2305
  %v2369 = vpop.f32.mrf.mxu0
  %v2370 = vadd.f32 %v2269, %v2369
  %2371 = vmatmul.f32.gmra.mxu0 %v2308
  %v2372 = vpop.f32.mrf.mxu0
  %v2373 = vadd.f32 %v2269, %v2372
  %2374 = vmatmul.f32.gmra.mxu0 %v2311
  %v2375 = vpop.f32.mrf.mxu0
  %v2376 = vadd.f32 %v2269, %v2375
  %2377 = vmatmul.f32.gmra.mxu0 %v2314
  %v2378 = vpop.f32.mrf.mxu0
  %v2379 = vadd.f32 %v2269, %v2378
  %2380 = vmatmul.f32.gmra.mxu0 %v2317
  %v2381 = vpop.f32.mrf.mxu0
  %v2382 = vadd.f32 %v2269, %v2381
  %2383 = vdwg.mxu0
  %vm2384 = vcmp.gt.f32.partialorder %v2337, 0.0
  %vm2385 = vcmp.gt.f32.partialorder %v2340, 0.0
  %vm2386 = vcmp.gt.f32.partialorder %v2343, 0.0
  %vm2387 = vcmp.gt.f32.partialorder %v2346, 0.0
  %vm2388 = vcmp.gt.f32.partialorder %v2349, 0.0
  %vm2389 = vcmp.gt.f32.partialorder %v2352, 0.0
  %vm2390 = vcmp.gt.f32.partialorder %v2355, 0.0
  %vm2391 = vcmp.gt.f32.partialorder %v2358, 0.0
  %vm2392 = vcmp.gt.f32.partialorder %v2361, 0.0
  %vm2393 = vcmp.gt.f32.partialorder %v2364, 0.0
  %vm2394 = vcmp.gt.f32.partialorder %v2367, 0.0
  %vm2395 = vcmp.gt.f32.partialorder %v2370, 0.0
  %vm2396 = vcmp.gt.f32.partialorder %v2373, 0.0
  %vm2397 = vcmp.gt.f32.partialorder %v2376, 0.0
  %vm2398 = vcmp.gt.f32.partialorder %v2379, 0.0
  %vm2399 = vcmp.gt.f32.partialorder %v2382, 0.0
  %v2400 = vmul.f32 %v2337, 0.2
  %v2401 = vmul.f32 %v2340, 0.2
  %v2402 = vmul.f32 %v2343, 0.2
  %v2403 = vmul.f32 %v2346, 0.2
  %v2404 = vmul.f32 %v2349, 0.2
  %v2405 = vmul.f32 %v2352, 0.2
  %v2406 = vmul.f32 %v2355, 0.2
  %v2407 = vmul.f32 %v2358, 0.2
  %v2408 = vmul.f32 %v2361, 0.2
  %v2409 = vmul.f32 %v2364, 0.2
  %v2410 = vmul.f32 %v2367, 0.2
  %v2411 = vmul.f32 %v2370, 0.2
  %v2412 = vmul.f32 %v2373, 0.2
  %v2413 = vmul.f32 %v2376, 0.2
  %v2414 = vmul.f32 %v2379, 0.2
  %v2415 = vmul.f32 %v2382, 0.2
  %v2416 = vsel %vm2384, %v2337, %v2400
  %v2417 = vsel %vm2385, %v2340, %v2401
  %v2418 = vsel %vm2386, %v2343, %v2402
  %v2419 = vsel %vm2387, %v2346, %v2403
  %v2420 = vsel %vm2388, %v2349, %v2404
  %v2421 = vsel %vm2389, %v2352, %v2405
  %v2422 = vsel %vm2390, %v2355, %v2406
  %v2423 = vsel %vm2391, %v2358, %v2407
  %v2424 = vsel %vm2392, %v2361, %v2408
  %v2425 = vsel %vm2393, %v2364, %v2409
  %v2426 = vsel %vm2394, %v2367, %v2410
  %v2427 = vsel %vm2395, %v2370, %v2411
  %v2428 = vsel %vm2396, %v2373, %v2412
  %v2429 = vsel %vm2397, %v2376, %v2413
  %v2430 = vsel %vm2398, %v2379, %v2414
  %v2431 = vsel %vm2399, %v2382, %v2415
  %s2432 = scalar_lea.vmem %s4, 160
  %v2433 = vld [vmem:[%s2432] sm:$0xff]
  %v2434 = vld [vmem:[%s2432 + $0x8] sm:$0xff]
  %v2435 = vld [vmem:[%s2432 + $0x10] sm:$0xff]
  %v2436 = vld [vmem:[%s2432 + $0x18] sm:$0xff]
  %s2437 = scalar_lea.vmem %s5, 5
  %v2438 = vld [vmem:[%s2437] sm:$0x1]
  %v2440 = vperm.slane %v2438, 0
  %v2443 = vsel %vm676, %v2416, 0
  %v2446 = vsel %vm676, %v2417, 0
  %v2449 = vsel %vm676, %v2418, 0
  %v2452 = vsel %vm676, %v2419, 0
  %v2455 = vsel %vm676, %v2420, 0
  %v2458 = vsel %vm676, %v2421, 0
  %v2461 = vsel %vm676, %v2422, 0
  %v2464 = vsel %vm676, %v2423, 0
  %v2467 = vsel %vm676, %v2424, 0
  %v2470 = vsel %vm676, %v2425, 0
  %v2473 = vsel %vm676, %v2426, 0
  %v2476 = vsel %vm676, %v2427, 0
  %v2479 = vsel %vm676, %v2428, 0
  %v2482 = vsel %vm676, %v2429, 0
  %v2485 = vsel %vm676, %v2430, 0
  %v2488 = vsel %vm676, %v2431, 0
  %2490 = vmatpush.msra.mxu0 0.0
  %2491 = vmatpush.msra.mxu0 0.0
  %2492 = vmatpush.msra.mxu0 0.0
  %2493 = vmatpush.msra.mxu0 0.0
  %2494 = vmatpush.msra.mxu0 0.0
  %2495 = vmatpush.msra.mxu0 0.0
  %2496 = vmatpush.msra.mxu0 0.0
  %2497 = vmatpush.msra.mxu0 0.0
  %2498 = vmatpush.msra.mxu0 0.0
  %2499 = vmatpush.msra.mxu0 0.0
  %2500 = vmatpush.msra.mxu0 0.0
  %2501 = vmatpush.msra.mxu0 0.0
  %2502 = vmatpush.msra.mxu0 %v2436
  %2503 = vmatpush.msra.mxu0 %v2435
  %2504 = vmatpush.msra.mxu0 %v2434
  %2505 = vmatpush.msra.mxu0 %v2433
  %2506 = vmatmul.f32.gmra.mxu0 %v2443
  %v2507 = vpop.f32.mrf.mxu0
  %v2508 = vadd.f32 %v2440, %v2507
  %2509 = vmatmul.f32.gmra.mxu0 %v2446
  %v2510 = vpop.f32.mrf.mxu0
  %v2511 = vadd.f32 %v2440, %v2510
  %2512 = vmatmul.f32.gmra.mxu0 %v2449
  %v2513 = vpop.f32.mrf.mxu0
  %v2514 = vadd.f32 %v2440, %v2513
  %2515 = vmatmul.f32.gmra.mxu0 %v2452
  %v2516 = vpop.f32.mrf.mxu0
  %v2517 = vadd.f32 %v2440, %v2516
  %2518 = vmatmul.f32.gmra.mxu0 %v2455
  %v2519 = vpop.f32.mrf.mxu0
  %v2520 = vadd.f32 %v2440, %v2519
  %2521 = vmatmul.f32.gmra.mxu0 %v2458
  %v2522 = vpop.f32.mrf.mxu0
  %v2523 = vadd.f32 %v2440, %v2522
  %2524 = vmatmul.f32.gmra.mxu0 %v2461
  %v2525 = vpop.f32.mrf.mxu0
  %v2526 = vadd.f32 %v2440, %v2525
  %2527 = vmatmul.f32.gmra.mxu0 %v2464
  %v2528 = vpop.f32.mrf.mxu0
  %v2529 = vadd.f32 %v2440, %v2528
  %2530 = vmatmul.f32.gmra.mxu0 %v2467
  %v2531 = vpop.f32.mrf.mxu0
  %v2532 = vadd.f32 %v2440, %v2531
  %2533 = vmatmul.f32.gmra.mxu0 %v2470
  %v2534 = vpop.f32.mrf.mxu0
  %v2535 = vadd.f32 %v2440, %v2534
  %2536 = vmatmul.f32.gmra.mxu0 %v2473
  %v2537 = vpop.f32.mrf.mxu0
  %v2538 = vadd.f32 %v2440, %v2537
  %2539 = vmatmul.f32.gmra.mxu0 %v2476
  %v2540 = vpop.f32.mrf.mxu0
  %v2541 = vadd.f32 %v2440, %v2540
  %2542 = vmatmul.f32.gmra.mxu0 %v2479
  %v2543 = vpop.f32.mrf.mxu0
  %v2544 = vadd.f32 %v2440, %v2543
  %2545 = vmatmul.f32.gmra.mxu0 %v2482
  %v2546 = vpop.f32.mrf.mxu0
  %v2547 = vadd.f32 %v2440, %v2546
  %2548 = vmatmul.f32.gmra.mxu0 %v2485
  %v2549 = vpop.f32.mrf.mxu0
  %v2550 = vadd.f32 %v2440, %v2549
  %2551 = vmatmul.f32.gmra.mxu0 %v2488
  %v2552 = vpop.f32.mrf.mxu0
  %v2553 = vadd.f32 %v2440, %v2552
  %2554 = vdwg.mxu0
  %s2555 = scalar_lea.vmem %s3, 1152
  %v2556 = vld [vmem:[%s2555] sm:$0xff]
  %v2557 = vld [vmem:[%s2555 + $0x8] sm:$0xff]
  %v2558 = vld [vmem:[%s2555 + $0x10] sm:$0xff]
  %v2559 = vld [vmem:[%s2555 + $0x18] sm:$0xff]
  %v2560 = vld [vmem:[%s2555 + $0x20] sm:$0xff]
  %v2561 = vld [vmem:[%s2555 + $0x28] sm:$0xff]
  %v2562 = vld [vmem:[%s2555 + $0x30] sm:$0xff]
  %v2563 = vld [vmem:[%s2555 + $0x38] sm:$0xff]
  %v2564 = vld [vmem:[%s2555 + $0x40] sm:$0xff]
  %v2565 = vld [vmem:[%s2555 + $0x48] sm:$0xff]
  %v2566 = vld [vmem:[%s2555 + $0x50] sm:$0xff]
  %v2567 = vld [vmem:[%s2555 + $0x58] sm:$0xff]
  %v2568 = vld [vmem:[%s2555 + $0x60] sm:$0xff]
  %v2569 = vld [vmem:[%s2555 + $0x68] sm:$0xff]
  %v2570 = vld [vmem:[%s2555 + $0x70] sm:$0xff]
  %v2571 = vld [vmem:[%s2555 + $0x78] sm:$0xff]
  %s2572 = scalar_lea.vmem %s3, 1280
  %v2573 = vld [vmem:[%s2572] sm:$0xff]
  %v2574 = vld [vmem:[%s2572 + $0x8] sm:$0xff]
  %v2575 = vld [vmem:[%s2572 + $0x10] sm:$0xff]
  %v2576 = vld [vmem:[%s2572 + $0x18] sm:$0xff]
  %v2577 = vld [vmem:[%s2572 + $0x20] sm:$0xff]
  %v2578 = vld [vmem:[%s2572 + $0x28] sm:$0xff]
  %v2579 = vld [vmem:[%s2572 + $0x30] sm:$0xff]
  %v2580 = vld [vmem:[%s2572 + $0x38] sm:$0xff]
  %v2581 = vld [vmem:[%s2572 + $0x40] sm:$0xff]
  %v2582 = vld [vmem:[%s2572 + $0x48] sm:$0xff]
  %v2583 = vld [vmem:[%s2572 + $0x50] sm:$0xff]
  %v2584 = vld [vmem:[%s2572 + $0x58] sm:$0xff]
  %v2585 = vld [vmem:[%s2572 + $0x60] sm:$0xff]
  %v2586 = vld [vmem:[%s2572 + $0x68] sm:$0xff]
  %v2587 = vld [vmem:[%s2572 + $0x70] sm:$0xff]
  %v2588 = vld [vmem:[%s2572 + $0x78] sm:$0xff]
  %s2589 = scalar_lea.vmem %s3, 1408
  %v2590 = vld [vmem:[%s2589] sm:$0xff]
  %v2591 = vld [vmem:[%s2589 + $0x8] sm:$0xff]
  %v2592 = vld [vmem:[%s2589 + $0x10] sm:$0xff]
  %v2593 = vld [vmem:[%s2589 + $0x18] sm:$0xff]
  %v2594 = vld [vmem:[%s2589 + $0x20] sm:$0xff]
  %v2595 = vld [vmem:[%s2589 + $0x28] sm:$0xff]
  %v2596 = vld [vmem:[%s2589 + $0x30] sm:$0xff]
  %v2597 = vld [vmem:[%s2589 + $0x38] sm:$0xff]
  %v2598 = vld [vmem:[%s2589 + $0x40] sm:$0xff]
  %v2599 = vld [vmem:[%s2589 + $0x48] sm:$0xff]
  %v2600 = vld [vmem:[%s2589 + $0x50] sm:$0xff]
  %v2601 = vld [vmem:[%s2589 + $0x58] sm:$0xff]
  %v2602 = vld [vmem:[%s2589 + $0x60] sm:$0xff]
  %v2603 = vld [vmem:[%s2589 + $0x68] sm:$0xff]
  %v2604 = vld [vmem:[%s2589 + $0x70] sm:$0xff]
  %v2605 = vld [vmem:[%s2589 + $0x78] sm:$0xff]
  %s2606 = scalar_lea.vmem %s2, 384
  %v2607 = vld [vmem:[%s2606] sm:$0xff]
  %v2608 = vld [vmem:[%s2606 + $0x8] sm:$0xff]
  %v2609 = vld [vmem:[%s2606 + $0x10] sm:$0xff]
  %v2610 = vld [vmem:[%s2606 + $0x18] sm:$0xff]
  %v2611 = vld [vmem:[%s2606 + $0x20] sm:$0xff]
  %v2612 = vld [vmem:[%s2606 + $0x28] sm:$0xff]
  %v2613 = vld [vmem:[%s2606 + $0x30] sm:$0xff]
  %v2614 = vld [vmem:[%s2606 + $0x38] sm:$0xff]
  %v2615 = vld [vmem:[%s2606 + $0x40] sm:$0xff]
  %v2616 = vld [vmem:[%s2606 + $0x48] sm:$0xff]
  %v2617 = vld [vmem:[%s2606 + $0x50] sm:$0xff]
  %v2618 = vld [vmem:[%s2606 + $0x58] sm:$0xff]
  %v2619 = vld [vmem:[%s2606 + $0x60] sm:$0xff]
  %v2620 = vld [vmem:[%s2606 + $0x68] sm:$0xff]
  %v2621 = vld [vmem:[%s2606 + $0x70] sm:$0xff]
  %v2622 = vld [vmem:[%s2606 + $0x78] sm:$0xff]
  %v2623 = vpack.c.bf16 %v2511, %v2508
  %v2624 = vpack.c.bf16 %v2517, %v2514
  %v2625 = vpack.c.bf16 %v2523, %v2520
  %v2626 = vpack.c.bf16 %v2529, %v2526
  %v2627 = vpack.c.bf16 %v2535, %v2532
  %v2628 = vpack.c.bf16 %v2541, %v2538
  %v2629 = vpack.c.bf16 %v2547, %v2544
  %v2630 = vpack.c.bf16 %v2553, %v2550
  %2631 = vmatpush.bf16.msra.mxu0 %v2630
  %2632 = vmatpush.bf16.msra.mxu0 %v2629
  %2633 = vmatpush.bf16.msra.mxu0 %v2628
  %2634 = vmatpush.bf16.msra.mxu0 %v2627
  %2635 = vmatpush.bf16.msra.mxu0 %v2626
  %2636 = vmatpush.bf16.msra.mxu0 %v2625
  %2637 = vmatpush.bf16.msra.mxu0 %v2624
  %2638 = vmatpush.bf16.msra.mxu0 %v2623
  %2639 = vmatmul.bf16.gmra.mxu0 %v209
  %v2640 = vpop.f32.mrf.mxu0
  %v2641 = vadd.f32 0.0, %v2640
  %v2642 = vpop.f32.mrf.mxu0
  %v2643 = vadd.f32 0.0, %v2642
  %2644 = vmatmul.bf16.gmra.mxu0 %v210
  %v2645 = vpop.f32.mrf.mxu0
  %v2646 = vadd.f32 0.0, %v2645
  %v2647 = vpop.f32.mrf.mxu0
  %v2648 = vadd.f32 0.0, %v2647
  %2649 = vmatmul.bf16.gmra.mxu0 %v211
  %v2650 = vpop.f32.mrf.mxu0
  %v2651 = vadd.f32 0.0, %v2650
  %v2652 = vpop.f32.mrf.mxu0
  %v2653 = vadd.f32 0.0, %v2652
  %2654 = vmatmul.bf16.gmra.mxu0 %v212
  %v2655 = vpop.f32.mrf.mxu0
  %v2656 = vadd.f32 0.0, %v2655
  %v2657 = vpop.f32.mrf.mxu0
  %v2658 = vadd.f32 0.0, %v2657
  %2659 = vmatmul.bf16.gmra.mxu0 %v213
  %v2660 = vpop.f32.mrf.mxu0
  %v2661 = vadd.f32 0.0, %v2660
  %v2662 = vpop.f32.mrf.mxu0
  %v2663 = vadd.f32 0.0, %v2662
  %2664 = vmatmul.bf16.gmra.mxu0 %v214
  %v2665 = vpop.f32.mrf.mxu0
  %v2666 = vadd.f32 0.0, %v2665
  %v2667 = vpop.f32.mrf.mxu0
  %v2668 = vadd.f32 0.0, %v2667
  %2669 = vmatmul.bf16.gmra.mxu0 %v215
  %v2670 = vpop.f32.mrf.mxu0
  %v2671 = vadd.f32 0.0, %v2670
  %v2672 = vpop.f32.mrf.mxu0
  %v2673 = vadd.f32 0.0, %v2672
  %2674 = vmatmul.bf16.gmra.mxu0 %v216
  %v2675 = vpop.f32.mrf.mxu0
  %v2676 = vadd.f32 0.0, %v2675
  %v2677 = vpop.f32.mrf.mxu0
  %v2678 = vadd.f32 0.0, %v2677
  %2679 = vmatmul.bf16.gmra.mxu0 %v217
  %v2680 = vpop.f32.mrf.mxu0
  %v2681 = vadd.f32 0.0, %v2680
  %v2682 = vpop.f32.mrf.mxu0
  %v2683 = vadd.f32 0.0, %v2682
  %2684 = vmatmul.bf16.gmra.mxu0 %v218
  %v2685 = vpop.f32.mrf.mxu0
  %v2686 = vadd.f32 0.0, %v2685
  %v2687 = vpop.f32.mrf.mxu0
  %v2688 = vadd.f32 0.0, %v2687
  %2689 = vmatmul.bf16.gmra.mxu0 %v219
  %v2690 = vpop.f32.mrf.mxu0
  %v2691 = vadd.f32 0.0, %v2690
  %v2692 = vpop.f32.mrf.mxu0
  %v2693 = vadd.f32 0.0, %v2692
  %2694 = vmatmul.bf16.gmra.mxu0 %v220
  %v2695 = vpop.f32.mrf.mxu0
  %v2696 = vadd.f32 0.0, %v2695
  %v2697 = vpop.f32.mrf.mxu0
  %v2698 = vadd.f32 0.0, %v2697
  %2699 = vmatmul.bf16.gmra.mxu0 %v221
  %v2700 = vpop.f32.mrf.mxu0
  %v2701 = vadd.f32 0.0, %v2700
  %v2702 = vpop.f32.mrf.mxu0
  %v2703 = vadd.f32 0.0, %v2702
  %2704 = vmatmul.bf16.gmra.mxu0 %v222
  %v2705 = vpop.f32.mrf.mxu0
  %v2706 = vadd.f32 0.0, %v2705
  %v2707 = vpop.f32.mrf.mxu0
  %v2708 = vadd.f32 0.0, %v2707
  %2709 = vmatmul.bf16.gmra.mxu0 %v223
  %v2710 = vpop.f32.mrf.mxu0
  %v2711 = vadd.f32 0.0, %v2710
  %v2712 = vpop.f32.mrf.mxu0
  %v2713 = vadd.f32 0.0, %v2712
  %2714 = vmatmul.bf16.gmra.mxu0 %v224
  %v2715 = vpop.f32.mrf.mxu0
  %v2716 = vadd.f32 0.0, %v2715
  %v2717 = vpop.f32.mrf.mxu0
  %v2718 = vadd.f32 0.0, %v2717
  %2719 = vdwg.mxu0
  %v2720 = vmul.f32 %v2641, %v2556
  %v2721 = vmul.f32 %v2643, %v2557
  %v2722 = vmul.f32 %v2646, %v2558
  %v2723 = vmul.f32 %v2648, %v2559
  %v2724 = vmul.f32 %v2651, %v2560
  %v2725 = vmul.f32 %v2653, %v2561
  %v2726 = vmul.f32 %v2656, %v2562
  %v2727 = vmul.f32 %v2658, %v2563
  %v2728 = vmul.f32 %v2661, %v2564
  %v2729 = vmul.f32 %v2663, %v2565
  %v2730 = vmul.f32 %v2666, %v2566
  %v2731 = vmul.f32 %v2668, %v2567
  %v2732 = vmul.f32 %v2671, %v2568
  %v2733 = vmul.f32 %v2673, %v2569
  %v2734 = vmul.f32 %v2676, %v2570
  %v2735 = vmul.f32 %v2678, %v2571
  %v2736 = vmul.f32 %v2681, %v2573
  %v2737 = vmul.f32 %v2683, %v2574
  %v2738 = vmul.f32 %v2686, %v2575
  %v2739 = vmul.f32 %v2688, %v2576
  %v2740 = vmul.f32 %v2691, %v2577
  %v2741 = vmul.f32 %v2693, %v2578
  %v2742 = vmul.f32 %v2696, %v2579
  %v2743 = vmul.f32 %v2698, %v2580
  %v2744 = vmul.f32 %v2701, %v2581
  %v2745 = vmul.f32 %v2703, %v2582
  %v2746 = vmul.f32 %v2706, %v2583
  %v2747 = vmul.f32 %v2708, %v2584
  %v2748 = vmul.f32 %v2711, %v2585
  %v2749 = vmul.f32 %v2713, %v2586
  %v2750 = vmul.f32 %v2716, %v2587
  %v2751 = vmul.f32 %v2718, %v2588
  %v2752 = vsub.f32 %v2720, %v2736
  %v2753 = vsub.f32 %v2721, %v2737
  %v2754 = vsub.f32 %v2722, %v2738
  %v2755 = vsub.f32 %v2723, %v2739
  %v2756 = vsub.f32 %v2724, %v2740
  %v2757 = vsub.f32 %v2725, %v2741
  %v2758 = vsub.f32 %v2726, %v2742
  %v2759 = vsub.f32 %v2727, %v2743
  %v2760 = vsub.f32 %v2728, %v2744
  %v2761 = vsub.f32 %v2729, %v2745
  %v2762 = vsub.f32 %v2730, %v2746
  %v2763 = vsub.f32 %v2731, %v2747
  %v2764 = vsub.f32 %v2732, %v2748
  %v2765 = vsub.f32 %v2733, %v2749
  %v2766 = vsub.f32 %v2734, %v2750
  %v2767 = vsub.f32 %v2735, %v2751
  %v2768 = vmul.f32 %v2641, %v2573
  %v2769 = vmul.f32 %v2643, %v2574
  %v2770 = vmul.f32 %v2646, %v2575
  %v2771 = vmul.f32 %v2648, %v2576
  %v2772 = vmul.f32 %v2651, %v2577
  %v2773 = vmul.f32 %v2653, %v2578
  %v2774 = vmul.f32 %v2656, %v2579
  %v2775 = vmul.f32 %v2658, %v2580
  %v2776 = vmul.f32 %v2661, %v2581
  %v2777 = vmul.f32 %v2663, %v2582
  %v2778 = vmul.f32 %v2666, %v2583
  %v2779 = vmul.f32 %v2668, %v2584
  %v2780 = vmul.f32 %v2671, %v2585
  %v2781 = vmul.f32 %v2673, %v2586
  %v2782 = vmul.f32 %v2676, %v2587
  %v2783 = vmul.f32 %v2678, %v2588
  %v2784 = vmul.f32 %v2681, %v2556
  %v2785 = vmul.f32 %v2683, %v2557
  %v2786 = vmul.f32 %v2686, %v2558
  %v2787 = vmul.f32 %v2688, %v2559
  %v2788 = vmul.f32 %v2691, %v2560
  %v2789 = vmul.f32 %v2693, %v2561
  %v2790 = vmul.f32 %v2696, %v2562
  %v2791 = vmul.f32 %v2698, %v2563
  %v2792 = vmul.f32 %v2701, %v2564
  %v2793 = vmul.f32 %v2703, %v2565
  %v2794 = vmul.f32 %v2706, %v2566
  %v2795 = vmul.f32 %v2708, %v2567
  %v2796 = vmul.f32 %v2711, %v2568
  %v2797 = vmul.f32 %v2713, %v2569
  %v2798 = vmul.f32 %v2716, %v2570
  %v2799 = vmul.f32 %v2718, %v2571
  %v2800 = vadd.f32 %v2768, %v2784
  %v2801 = vadd.f32 %v2769, %v2785
  %v2802 = vadd.f32 %v2770, %v2786
  %v2803 = vadd.f32 %v2771, %v2787
  %v2804 = vadd.f32 %v2772, %v2788
  %v2805 = vadd.f32 %v2773, %v2789
  %v2806 = vadd.f32 %v2774, %v2790
  %v2807 = vadd.f32 %v2775, %v2791
  %v2808 = vadd.f32 %v2776, %v2792
  %v2809 = vadd.f32 %v2777, %v2793
  %v2810 = vadd.f32 %v2778, %v2794
  %v2811 = vadd.f32 %v2779, %v2795
  %v2812 = vadd.f32 %v2780, %v2796
  %v2813 = vadd.f32 %v2781, %v2797
  %v2814 = vadd.f32 %v2782, %v2798
  %v2815 = vadd.f32 %v2783, %v2799
  %v2816 = vpack.c.bf16 %v2753, %v2752
  %v2817 = vpack.c.bf16 %v2755, %v2754
  %v2818 = vpack.c.bf16 %v2757, %v2756
  %v2819 = vpack.c.bf16 %v2759, %v2758
  %v2820 = vpack.c.bf16 %v2761, %v2760
  %v2821 = vpack.c.bf16 %v2763, %v2762
  %v2822 = vpack.c.bf16 %v2765, %v2764
  %v2823 = vpack.c.bf16 %v2767, %v2766
  %v2824 = vpack.c.bf16 %v2801, %v2800
  %v2825 = vpack.c.bf16 %v2803, %v2802
  %v2826 = vpack.c.bf16 %v2805, %v2804
  %v2827 = vpack.c.bf16 %v2807, %v2806
  %v2828 = vpack.c.bf16 %v2809, %v2808
  %v2829 = vpack.c.bf16 %v2811, %v2810
  %v2830 = vpack.c.bf16 %v2813, %v2812
  %v2831 = vpack.c.bf16 %v2815, %v2814
  %v2848 = vunpack.c.l.b16 %v2607
  %v2849 = vunpack.c.h.b16 %v2607
  %v2850 = vunpack.c.l.b16 %v2608
  %v2851 = vunpack.c.h.b16 %v2608
  %v2852 = vunpack.c.l.b16 %v2609
  %v2853 = vunpack.c.h.b16 %v2609
  %v2854 = vunpack.c.l.b16 %v2610
  %v2855 = vunpack.c.h.b16 %v2610
  %v2856 = vunpack.c.l.b16 %v2611
  %v2857 = vunpack.c.h.b16 %v2611
  %v2858 = vunpack.c.l.b16 %v2612
  %v2859 = vunpack.c.h.b16 %v2612
  %v2860 = vunpack.c.l.b16 %v2613
  %v2861 = vunpack.c.h.b16 %v2613
  %v2862 = vunpack.c.l.b16 %v2614
  %v2863 = vunpack.c.h.b16 %v2614
  %v2864 = vunpack.c.l.b16 %v2615
  %v2865 = vunpack.c.h.b16 %v2615
  %v2866 = vunpack.c.l.b16 %v2616
  %v2867 = vunpack.c.h.b16 %v2616
  %v2868 = vunpack.c.l.b16 %v2617
  %v2869 = vunpack.c.h.b16 %v2617
  %v2870 = vunpack.c.l.b16 %v2618
  %v2871 = vunpack.c.h.b16 %v2618
  %v2872 = vunpack.c.l.b16 %v2619
  %v2873 = vunpack.c.h.b16 %v2619
  %v2874 = vunpack.c.l.b16 %v2620
  %v2875 = vunpack.c.h.b16 %v2620
  %v2876 = vunpack.c.l.b16 %v2621
  %v2877 = vunpack.c.h.b16 %v2621
  %v2878 = vunpack.c.l.b16 %v2622
  %v2879 = vunpack.c.h.b16 %v2622
  %v2880 = vpack.c.b16 %v2850, %v2848
  %v2881 = vpack.c.b16 %v2851, %v2849
  %v2882 = vpack.c.b16 %v2854, %v2852
  %v2883 = vpack.c.b16 %v2855, %v2853
  %v2884 = vpack.c.b16 %v2858, %v2856
  %v2885 = vpack.c.b16 %v2859, %v2857
  %v2886 = vpack.c.b16 %v2862, %v2860
  %v2887 = vpack.c.b16 %v2863, %v2861
  %v2888 = vpack.c.b16 %v2866, %v2864
  %v2889 = vpack.c.b16 %v2867, %v2865
  %v2890 = vpack.c.b16 %v2870, %v2868
  %v2891 = vpack.c.b16 %v2871, %v2869
  %v2892 = vpack.c.b16 %v2874, %v2872
  %v2893 = vpack.c.b16 %v2875, %v2873
  %v2894 = vpack.c.b16 %v2878, %v2876
  %v2895 = vpack.c.b16 %v2879, %v2877
  %2912 = vmatpush.bf16.msra.mxu0 %v2823
  %2913 = vmatpush.bf16.msra.mxu0 %v2822
  %2914 = vmatpush.bf16.msra.mxu0 %v2821
  %2915 = vmatpush.bf16.msra.mxu0 %v2820
  %2916 = vmatpush.bf16.msra.mxu0 %v2819
  %2917 = vmatpush.bf16.msra.mxu0 %v2818
  %2918 = vmatpush.bf16.msra.mxu0 %v2817
  %2919 = vmatpush.bf16.msra.mxu0 %v2816
  %2920 = vmatmul.bf16.gmra.mxu0 %v2880
  %v2921 = vpop.f32.mrf.mxu0
  %v2922 = vadd.f32 %v2590, %v2921
  %v2923 = vpop.f32.mrf.mxu0
  %v2924 = vadd.f32 %v2591, %v2923
  %2925 = vmatmul.bf16.gmra.mxu0 %v2882
  %v2926 = vpop.f32.mrf.mxu0
  %v2927 = vadd.f32 %v2592, %v2926
  %v2928 = vpop.f32.mrf.mxu0
  %v2929 = vadd.f32 %v2593, %v2928
  %2930 = vmatmul.bf16.gmra.mxu0 %v2884
  %v2931 = vpop.f32.mrf.mxu0
  %v2932 = vadd.f32 %v2594, %v2931
  %v2933 = vpop.f32.mrf.mxu0
  %v2934 = vadd.f32 %v2595, %v2933
  %2935 = vmatmul.bf16.gmra.mxu0 %v2886
  %v2936 = vpop.f32.mrf.mxu0
  %v2937 = vadd.f32 %v2596, %v2936
  %v2938 = vpop.f32.mrf.mxu0
  %v2939 = vadd.f32 %v2597, %v2938
  %2940 = vmatmul.bf16.gmra.mxu0 %v2888
  %v2941 = vpop.f32.mrf.mxu0
  %v2942 = vadd.f32 %v2598, %v2941
  %v2943 = vpop.f32.mrf.mxu0
  %v2944 = vadd.f32 %v2599, %v2943
  %2945 = vmatmul.bf16.gmra.mxu0 %v2890
  %v2946 = vpop.f32.mrf.mxu0
  %v2947 = vadd.f32 %v2600, %v2946
  %v2948 = vpop.f32.mrf.mxu0
  %v2949 = vadd.f32 %v2601, %v2948
  %2950 = vmatmul.bf16.gmra.mxu0 %v2892
  %v2951 = vpop.f32.mrf.mxu0
  %v2952 = vadd.f32 %v2602, %v2951
  %v2953 = vpop.f32.mrf.mxu0
  %v2954 = vadd.f32 %v2603, %v2953
  %2955 = vmatmul.bf16.gmra.mxu0 %v2894
  %v2956 = vpop.f32.mrf.mxu0
  %v2957 = vadd.f32 %v2604, %v2956
  %v2958 = vpop.f32.mrf.mxu0
  %v2959 = vadd.f32 %v2605, %v2958
  %2960 = vdwg.mxu0
  %2961 = vmatpush.bf16.msra.mxu0 %v2831
  %2962 = vmatpush.bf16.msra.mxu0 %v2830
  %2963 = vmatpush.bf16.msra.mxu0 %v2829
  %2964 = vmatpush.bf16.msra.mxu0 %v2828
  %2965 = vmatpush.bf16.msra.mxu0 %v2827
  %2966 = vmatpush.bf16.msra.mxu0 %v2826
  %2967 = vmatpush.bf16.msra.mxu0 %v2825
  %2968 = vmatpush.bf16.msra.mxu0 %v2824
  %2969 = vmatmul.bf16.gmra.mxu0 %v2881
  %v2970 = vpop.f32.mrf.mxu0
  %v2971 = vadd.f32 %v2922, %v2970
  %v2972 = vpop.f32.mrf.mxu0
  %v2973 = vadd.f32 %v2924, %v2972
  %2974 = vmatmul.bf16.gmra.mxu0 %v2883
  %v2975 = vpop.f32.mrf.mxu0
  %v2976 = vadd.f32 %v2927, %v2975
  %v2977 = vpop.f32.mrf.mxu0
  %v2978 = vadd.f32 %v2929, %v2977
  %2979 = vmatmul.bf16.gmra.mxu0 %v2885
  %v2980 = vpop.f32.mrf.mxu0
  %v2981 = vadd.f32 %v2932, %v2980
  %v2982 = vpop.f32.mrf.mxu0
  %v2983 = vadd.f32 %v2934, %v2982
  %2984 = vmatmul.bf16.gmra.mxu0 %v2887
  %v2985 = vpop.f32.mrf.mxu0
  %v2986 = vadd.f32 %v2937, %v2985
  %v2987 = vpop.f32.mrf.mxu0
  %v2988 = vadd.f32 %v2939, %v2987
  %2989 = vmatmul.bf16.gmra.mxu0 %v2889
  %v2990 = vpop.f32.mrf.mxu0
  %v2991 = vadd.f32 %v2942, %v2990
  %v2992 = vpop.f32.mrf.mxu0
  %v2993 = vadd.f32 %v2944, %v2992
  %2994 = vmatmul.bf16.gmra.mxu0 %v2891
  %v2995 = vpop.f32.mrf.mxu0
  %v2996 = vadd.f32 %v2947, %v2995
  %v2997 = vpop.f32.mrf.mxu0
  %v2998 = vadd.f32 %v2949, %v2997
  %2999 = vmatmul.bf16.gmra.mxu0 %v2893
  %v3000 = vpop.f32.mrf.mxu0
  %v3001 = vadd.f32 %v2952, %v3000
  %v3002 = vpop.f32.mrf.mxu0
  %v3003 = vadd.f32 %v2954, %v3002
  %3004 = vmatmul.bf16.gmra.mxu0 %v2895
  %v3005 = vpop.f32.mrf.mxu0
  %v3006 = vadd.f32 %v2957, %v3005
  %v3007 = vpop.f32.mrf.mxu0
  %v3008 = vadd.f32 %v2959, %v3007
  %3009 = vdwg.mxu0
  %vm3010 = vcmp.gt.f32.partialorder %v2971, 0.0
  %vm3011 = vcmp.gt.f32.partialorder %v2973, 0.0
  %vm3012 = vcmp.gt.f32.partialorder %v2976, 0.0
  %vm3013 = vcmp.gt.f32.partialorder %v2978, 0.0
  %vm3014 = vcmp.gt.f32.partialorder %v2981, 0.0
  %vm3015 = vcmp.gt.f32.partialorder %v2983, 0.0
  %vm3016 = vcmp.gt.f32.partialorder %v2986, 0.0
  %vm3017 = vcmp.gt.f32.partialorder %v2988, 0.0
  %vm3018 = vcmp.gt.f32.partialorder %v2991, 0.0
  %vm3019 = vcmp.gt.f32.partialorder %v2993, 0.0
  %vm3020 = vcmp.gt.f32.partialorder %v2996, 0.0
  %vm3021 = vcmp.gt.f32.partialorder %v2998, 0.0
  %vm3022 = vcmp.gt.f32.partialorder %v3001, 0.0
  %vm3023 = vcmp.gt.f32.partialorder %v3003, 0.0
  %vm3024 = vcmp.gt.f32.partialorder %v3006, 0.0
  %vm3025 = vcmp.gt.f32.partialorder %v3008, 0.0
  %v3026 = vmul.f32 %v2971, 0.2
  %v3027 = vmul.f32 %v2973, 0.2
  %v3028 = vmul.f32 %v2976, 0.2
  %v3029 = vmul.f32 %v2978, 0.2
  %v3030 = vmul.f32 %v2981, 0.2
  %v3031 = vmul.f32 %v2983, 0.2
  %v3032 = vmul.f32 %v2986, 0.2
  %v3033 = vmul.f32 %v2988, 0.2
  %v3034 = vmul.f32 %v2991, 0.2
  %v3035 = vmul.f32 %v2993, 0.2
  %v3036 = vmul.f32 %v2996, 0.2
  %v3037 = vmul.f32 %v2998, 0.2
  %v3038 = vmul.f32 %v3001, 0.2
  %v3039 = vmul.f32 %v3003, 0.2
  %v3040 = vmul.f32 %v3006, 0.2
  %v3041 = vmul.f32 %v3008, 0.2
  %v3042 = vsel %vm3010, %v2971, %v3026
  %v3043 = vsel %vm3011, %v2973, %v3027
  %v3044 = vsel %vm3012, %v2976, %v3028
  %v3045 = vsel %vm3013, %v2978, %v3029
  %v3046 = vsel %vm3014, %v2981, %v3030
  %v3047 = vsel %vm3015, %v2983, %v3031
  %v3048 = vsel %vm3016, %v2986, %v3032
  %v3049 = vsel %vm3017, %v2988, %v3033
  %v3050 = vsel %vm3018, %v2991, %v3034
  %v3051 = vsel %vm3019, %v2993, %v3035
  %v3052 = vsel %vm3020, %v2996, %v3036
  %v3053 = vsel %vm3021, %v2998, %v3037
  %v3054 = vsel %vm3022, %v3001, %v3038
  %v3055 = vsel %vm3023, %v3003, %v3039
  %v3056 = vsel %vm3024, %v3006, %v3040
  %v3057 = vsel %vm3025, %v3008, %v3041
  %s3058 = scalar_lea.vmem %s4, 192
  %v3059 = vld [vmem:[%s3058] sm:$0xff]
  %v3060 = vld [vmem:[%s3058 + $0x8] sm:$0xff]
  %v3061 = vld [vmem:[%s3058 + $0x10] sm:$0xff]
  %v3062 = vld [vmem:[%s3058 + $0x18] sm:$0xff]
  %s3063 = scalar_lea.vmem %s5, 6
  %v3064 = vld [vmem:[%s3063] sm:$0x1]
  %v3066 = vperm.slane %v3064, 0
  %v3069 = vsel %vm676, %v3042, 0
  %v3072 = vsel %vm676, %v3043, 0
  %v3075 = vsel %vm676, %v3044, 0
  %v3078 = vsel %vm676, %v3045, 0
  %v3081 = vsel %vm676, %v3046, 0
  %v3084 = vsel %vm676, %v3047, 0
  %v3087 = vsel %vm676, %v3048, 0
  %v3090 = vsel %vm676, %v3049, 0
  %v3093 = vsel %vm676, %v3050, 0
  %v3096 = vsel %vm676, %v3051, 0
  %v3099 = vsel %vm676, %v3052, 0
  %v3102 = vsel %vm676, %v3053, 0
  %v3105 = vsel %vm676, %v3054, 0
  %v3108 = vsel %vm676, %v3055, 0
  %v3111 = vsel %vm676, %v3056, 0
  %v3114 = vsel %vm676, %v3057, 0
  %3116 = vmatpush.msra.mxu0 0.0
  %3117 = vmatpush.msra.mxu0 0.0
  %3118 = vmatpush.msra.mxu0 0.0
  %3119 = vmatpush.msra.mxu0 0.0
  %3120 = vmatpush.msra.mxu0 0.0
  %3121 = vmatpush.msra.mxu0 0.0
  %3122 = vmatpush.msra.mxu0 0.0
  %3123 = vmatpush.msra.mxu0 0.0
  %3124 = vmatpush.msra.mxu0 0.0
  %3125 = vmatpush.msra.mxu0 0.0
  %3126 = vmatpush.msra.mxu0 0.0
  %3127 = vmatpush.msra.mxu0 0.0
  %3128 = vmatpush.msra.mxu0 %v3062
  %3129 = vmatpush.msra.mxu0 %v3061
  %3130 = vmatpush.msra.mxu0 %v3060
  %3131 = vmatpush.msra.mxu0 %v3059
  %3132 = vmatmul.f32.gmra.mxu0 %v3069
  %v3133 = vpop.f32.mrf.mxu0
  %v3134 = vadd.f32 %v3066, %v3133
  %3135 = vmatmul.f32.gmra.mxu0 %v3072
  %v3136 = vpop.f32.mrf.mxu0
  %v3137 = vadd.f32 %v3066, %v3136
  %3138 = vmatmul.f32.gmra.mxu0 %v3075
  %v3139 = vpop.f32.mrf.mxu0
  %v3140 = vadd.f32 %v3066, %v3139
  %3141 = vmatmul.f32.gmra.mxu0 %v3078
  %v3142 = vpop.f32.mrf.mxu0
  %v3143 = vadd.f32 %v3066, %v3142
  %3144 = vmatmul.f32.gmra.mxu0 %v3081
  %v3145 = vpop.f32.mrf.mxu0
  %v3146 = vadd.f32 %v3066, %v3145
  %3147 = vmatmul.f32.gmra.mxu0 %v3084
  %v3148 = vpop.f32.mrf.mxu0
  %v3149 = vadd.f32 %v3066, %v3148
  %3150 = vmatmul.f32.gmra.mxu0 %v3087
  %v3151 = vpop.f32.mrf.mxu0
  %v3152 = vadd.f32 %v3066, %v3151
  %3153 = vmatmul.f32.gmra.mxu0 %v3090
  %v3154 = vpop.f32.mrf.mxu0
  %v3155 = vadd.f32 %v3066, %v3154
  %3156 = vmatmul.f32.gmra.mxu0 %v3093
  %v3157 = vpop.f32.mrf.mxu0
  %v3158 = vadd.f32 %v3066, %v3157
  %3159 = vmatmul.f32.gmra.mxu0 %v3096
  %v3160 = vpop.f32.mrf.mxu0
  %v3161 = vadd.f32 %v3066, %v3160
  %3162 = vmatmul.f32.gmra.mxu0 %v3099
  %v3163 = vpop.f32.mrf.mxu0
  %v3164 = vadd.f32 %v3066, %v3163
  %3165 = vmatmul.f32.gmra.mxu0 %v3102
  %v3166 = vpop.f32.mrf.mxu0
  %v3167 = vadd.f32 %v3066, %v3166
  %3168 = vmatmul.f32.gmra.mxu0 %v3105
  %v3169 = vpop.f32.mrf.mxu0
  %v3170 = vadd.f32 %v3066, %v3169
  %3171 = vmatmul.f32.gmra.mxu0 %v3108
  %v3172 = vpop.f32.mrf.mxu0
  %v3173 = vadd.f32 %v3066, %v3172
  %3174 = vmatmul.f32.gmra.mxu0 %v3111
  %v3175 = vpop.f32.mrf.mxu0
  %v3176 = vadd.f32 %v3066, %v3175
  %3177 = vmatmul.f32.gmra.mxu0 %v3114
  %v3178 = vpop.f32.mrf.mxu0
  %v3179 = vadd.f32 %v3066, %v3178
  %3180 = vdwg.mxu0
  %vm3181 = vcmp.gt.f32.partialorder %v3134, 0.0
  %vm3182 = vcmp.gt.f32.partialorder %v3137, 0.0
  %vm3183 = vcmp.gt.f32.partialorder %v3140, 0.0
  %vm3184 = vcmp.gt.f32.partialorder %v3143, 0.0
  %vm3185 = vcmp.gt.f32.partialorder %v3146, 0.0
  %vm3186 = vcmp.gt.f32.partialorder %v3149, 0.0
  %vm3187 = vcmp.gt.f32.partialorder %v3152, 0.0
  %vm3188 = vcmp.gt.f32.partialorder %v3155, 0.0
  %vm3189 = vcmp.gt.f32.partialorder %v3158, 0.0
  %vm3190 = vcmp.gt.f32.partialorder %v3161, 0.0
  %vm3191 = vcmp.gt.f32.partialorder %v3164, 0.0
  %vm3192 = vcmp.gt.f32.partialorder %v3167, 0.0
  %vm3193 = vcmp.gt.f32.partialorder %v3170, 0.0
  %vm3194 = vcmp.gt.f32.partialorder %v3173, 0.0
  %vm3195 = vcmp.gt.f32.partialorder %v3176, 0.0
  %vm3196 = vcmp.gt.f32.partialorder %v3179, 0.0
  %v3197 = vmul.f32 %v3134, 0.2
  %v3198 = vmul.f32 %v3137, 0.2
  %v3199 = vmul.f32 %v3140, 0.2
  %v3200 = vmul.f32 %v3143, 0.2
  %v3201 = vmul.f32 %v3146, 0.2
  %v3202 = vmul.f32 %v3149, 0.2
  %v3203 = vmul.f32 %v3152, 0.2
  %v3204 = vmul.f32 %v3155, 0.2
  %v3205 = vmul.f32 %v3158, 0.2
  %v3206 = vmul.f32 %v3161, 0.2
  %v3207 = vmul.f32 %v3164, 0.2
  %v3208 = vmul.f32 %v3167, 0.2
  %v3209 = vmul.f32 %v3170, 0.2
  %v3210 = vmul.f32 %v3173, 0.2
  %v3211 = vmul.f32 %v3176, 0.2
  %v3212 = vmul.f32 %v3179, 0.2
  %v3213 = vsel %vm3181, %v3134, %v3197
  %v3214 = vsel %vm3182, %v3137, %v3198
  %v3215 = vsel %vm3183, %v3140, %v3199
  %v3216 = vsel %vm3184, %v3143, %v3200
  %v3217 = vsel %vm3185, %v3146, %v3201
  %v3218 = vsel %vm3186, %v3149, %v3202
  %v3219 = vsel %vm3187, %v3152, %v3203
  %v3220 = vsel %vm3188, %v3155, %v3204
  %v3221 = vsel %vm3189, %v3158, %v3205
  %v3222 = vsel %vm3190, %v3161, %v3206
  %v3223 = vsel %vm3191, %v3164, %v3207
  %v3224 = vsel %vm3192, %v3167, %v3208
  %v3225 = vsel %vm3193, %v3170, %v3209
  %v3226 = vsel %vm3194, %v3173, %v3210
  %v3227 = vsel %vm3195, %v3176, %v3211
  %v3228 = vsel %vm3196, %v3179, %v3212
  %s3229 = scalar_lea.vmem %s4, 224
  %v3230 = vld [vmem:[%s3229] sm:$0xff]
  %v3231 = vld [vmem:[%s3229 + $0x8] sm:$0xff]
  %v3232 = vld [vmem:[%s3229 + $0x10] sm:$0xff]
  %v3233 = vld [vmem:[%s3229 + $0x18] sm:$0xff]
  %s3234 = scalar_lea.vmem %s5, 7
  %v3235 = vld [vmem:[%s3234] sm:$0x1]
  %v3237 = vperm.slane %v3235, 0
  %v3240 = vsel %vm676, %v3213, 0
  %v3243 = vsel %vm676, %v3214, 0
  %v3246 = vsel %vm676, %v3215, 0
  %v3249 = vsel %vm676, %v3216, 0
  %v3252 = vsel %vm676, %v3217, 0
  %v3255 = vsel %vm676, %v3218, 0
  %v3258 = vsel %vm676, %v3219, 0
  %v3261 = vsel %vm676, %v3220, 0
  %v3264 = vsel %vm676, %v3221, 0
  %v3267 = vsel %vm676, %v3222, 0
  %v3270 = vsel %vm676, %v3223, 0
  %v3273 = vsel %vm676, %v3224, 0
  %v3276 = vsel %vm676, %v3225, 0
  %v3279 = vsel %vm676, %v3226, 0
  %v3282 = vsel %vm676, %v3227, 0
  %v3285 = vsel %vm676, %v3228, 0
  %3287 = vmatpush.msra.mxu0 0.0
  %3288 = vmatpush.msra.mxu0 0.0
  %3289 = vmatpush.msra.mxu0 0.0
  %3290 = vmatpush.msra.mxu0 0.0
  %3291 = vmatpush.msra.mxu0 0.0
  %3292 = vmatpush.msra.mxu0 0.0
  %3293 = vmatpush.msra.mxu0 0.0
  %3294 = vmatpush.msra.mxu0 0.0
  %3295 = vmatpush.msra.mxu0 0.0
  %3296 = vmatpush.msra.mxu0 0.0
  %3297 = vmatpush.msra.mxu0 0.0
  %3298 = vmatpush.msra.mxu0 0.0
  %3299 = vmatpush.msra.mxu0 %v3233
  %3300 = vmatpush.msra.mxu0 %v3232
  %3301 = vmatpush.msra.mxu0 %v3231
  %3302 = vmatpush.msra.mxu0 %v3230
  %3303 = vmatmul.f32.gmra.mxu0 %v3240
  %v3304 = vpop.f32.mrf.mxu0
  %v3305 = vadd.f32 %v3237, %v3304
  %3306 = vmatmul.f32.gmra.mxu0 %v3243
  %v3307 = vpop.f32.mrf.mxu0
  %v3308 = vadd.f32 %v3237, %v3307
  %3309 = vmatmul.f32.gmra.mxu0 %v3246
  %v3310 = vpop.f32.mrf.mxu0
  %v3311 = vadd.f32 %v3237, %v3310
  %3312 = vmatmul.f32.gmra.mxu0 %v3249
  %v3313 = vpop.f32.mrf.mxu0
  %v3314 = vadd.f32 %v3237, %v3313
  %3315 = vmatmul.f32.gmra.mxu0 %v3252
  %v3316 = vpop.f32.mrf.mxu0
  %v3317 = vadd.f32 %v3237, %v3316
  %3318 = vmatmul.f32.gmra.mxu0 %v3255
  %v3319 = vpop.f32.mrf.mxu0
  %v3320 = vadd.f32 %v3237, %v3319
  %3321 = vmatmul.f32.gmra.mxu0 %v3258
  %v3322 = vpop.f32.mrf.mxu0
  %v3323 = vadd.f32 %v3237, %v3322
  %3324 = vmatmul.f32.gmra.mxu0 %v3261
  %v3325 = vpop.f32.mrf.mxu0
  %v3326 = vadd.f32 %v3237, %v3325
  %3327 = vmatmul.f32.gmra.mxu0 %v3264
  %v3328 = vpop.f32.mrf.mxu0
  %v3329 = vadd.f32 %v3237, %v3328
  %3330 = vmatmul.f32.gmra.mxu0 %v3267
  %v3331 = vpop.f32.mrf.mxu0
  %v3332 = vadd.f32 %v3237, %v3331
  %3333 = vmatmul.f32.gmra.mxu0 %v3270
  %v3334 = vpop.f32.mrf.mxu0
  %v3335 = vadd.f32 %v3237, %v3334
  %3336 = vmatmul.f32.gmra.mxu0 %v3273
  %v3337 = vpop.f32.mrf.mxu0
  %v3338 = vadd.f32 %v3237, %v3337
  %3339 = vmatmul.f32.gmra.mxu0 %v3276
  %v3340 = vpop.f32.mrf.mxu0
  %v3341 = vadd.f32 %v3237, %v3340
  %3342 = vmatmul.f32.gmra.mxu0 %v3279
  %v3343 = vpop.f32.mrf.mxu0
  %v3344 = vadd.f32 %v3237, %v3343
  %3345 = vmatmul.f32.gmra.mxu0 %v3282
  %v3346 = vpop.f32.mrf.mxu0
  %v3347 = vadd.f32 %v3237, %v3346
  %3348 = vmatmul.f32.gmra.mxu0 %v3285
  %v3349 = vpop.f32.mrf.mxu0
  %v3350 = vadd.f32 %v3237, %v3349
  %3351 = vdwg.mxu0
  %3352 = vst.msk [vmem:[%s6] sm:$0xff] %vm676, %v3305
  %3353 = vst.msk [vmem:[%s6 + $0x8] sm:$0xff] %vm676, %v3308
  %3354 = vst.msk [vmem:[%s6 + $0x10] sm:$0xff] %vm676, %v3311
  %3355 = vst.msk [vmem:[%s6 + $0x18] sm:$0xff] %vm676, %v3314
  %3356 = vst.msk [vmem:[%s6 + $0x20] sm:$0xff] %vm676, %v3317
  %3357 = vst.msk [vmem:[%s6 + $0x28] sm:$0xff] %vm676, %v3320
  %3358 = vst.msk [vmem:[%s6 + $0x30] sm:$0xff] %vm676, %v3323
  %3359 = vst.msk [vmem:[%s6 + $0x38] sm:$0xff] %vm676, %v3326
  %3360 = vst.msk [vmem:[%s6 + $0x40] sm:$0xff] %vm676, %v3329
  %3361 = vst.msk [vmem:[%s6 + $0x48] sm:$0xff] %vm676, %v3332
  %3362 = vst.msk [vmem:[%s6 + $0x50] sm:$0xff] %vm676, %v3335
  %3363 = vst.msk [vmem:[%s6 + $0x58] sm:$0xff] %vm676, %v3338
  %3364 = vst.msk [vmem:[%s6 + $0x60] sm:$0xff] %vm676, %v3341
  %3365 = vst.msk [vmem:[%s6 + $0x68] sm:$0xff] %vm676, %v3344
  %3366 = vst.msk [vmem:[%s6 + $0x70] sm:$0xff] %vm676, %v3347
  %3367 = vst.msk [vmem:[%s6 + $0x78] sm:$0xff] %vm676, %v3350
  // Predicated region
  $region26: #{tpu_custom_call.1} parent=0 // pred_check
    _
  $region27: #{tpu_custom_call.1} parent=0 // pred_check_branch
    %3369 = sbr.rel (0) target = $region29
  $region28: #{tpu_custom_call.1} parent=0 // pred_region
    _
  $region29: #{tpu_custom_call.1} parent=0 // pred_fallthru
    _
  // Predicated region
  $region30: #{tpu_custom_call.1} parent=0 // pred_check
    _
  $region31: #{tpu_custom_call.1} parent=0 // pred_check_branch
    %3371 = sbr.rel (0) target = $region33
  $region32: #{tpu_custom_call.1} parent=0 // pred_region
    _
  $region33: #{tpu_custom_call.1} parent=0 // pred_fallthru
    _

</llo_original>
